<compile_context>
chip_gen: v7x
topology: tpu7x:2x2x1
jax: 0.10.0
libtpu: 0.0.40
codegen_flags: <defaults>
</compile_context>

<pallas_src>
import jax
import jax.numpy as jnp
from jax import lax
from jax.experimental import pallas as pl
from jax.experimental.pallas import tpu as pltpu

BN_EPS = 1e-5
LN_EPS = 1e-5
BF16 = jnp.bfloat16


def _pick_vmem_limit():
    """Per-generation scoped-VMEM budget (review item: 32-48 MiB on v7x, more on v5e/v6e)."""
    try:
        cap = int(pltpu.get_tpu_info().vmem_capacity_bytes)
    except Exception:
        cap = 64 * 1024 * 1024
    return max(32 * 1024 * 1024, min(cap - 16 * 1024 * 1024, 96 * 1024 * 1024))


VMEM_LIMIT = _pick_vmem_limit()


# ------------------------------ in-kernel building blocks ------------------------------
def _rows(x3):
    """(N, L, C) -> (N*L, C).  L is a multiple of 8, so this is a free view."""
    n, l, c = x3.shape
    return x3.reshape(n * l, c)


def _bdot(x2, w_bf16):
    """MXU matmul: bf16 operands, f32 accumulation."""
    return jnp.dot(x2.astype(BF16), w_bf16, preferred_element_type=jnp.float32)


def _mm(x3, w_bf16):
    """Channels-last 1x1 conv / dense: (N*L, Ci) @ (Ci, Co) as one MXU matmul."""
    n, l, _ = x3.shape
    return _bdot(_rows(x3), w_bf16).reshape(n, l, w_bf16.shape[1])


def _conv3(x3, w3, b):
    """Conv1d(kernel_size=3, padding=1), channels-last.

    x3: (N, L, Ci) f32; w3: (3, Ci, Co) bf16 (taps [l-1, l, l+1]); b: (1, Co) f32.
    Three shifted K=Ci matmuls accumulated into one f32 accumulator (no 3*Ci concat
    buffer; on v5e the MXU is 128-deep so the fused K=3*Ci layout buys nothing anyway).
    """
    n, l, ci = x3.shape
    co = w3.shape[2]
    zrow = jnp.zeros((n, 1, ci), x3.dtype)
    x_m1 = jnp.concatenate([zrow, x3[:, : l - 1, :]], axis=1)   # x[l-1] (zero pad at l=0)
    x_p1 = jnp.concatenate([x3[:, 1:, :], zrow], axis=1)        # x[l+1] (zero pad at l=L-1)
    # TODO(synk): once L is tiled, fetch the +-1 halo rows via overlapping BlockSpec
    # windows (or pltpu.roll on the sublane axis) instead of shifted VMEM copies.
    y = _bdot(_rows(x_m1), w3[0])
    y = y + _bdot(_rows(x3), w3[1])
    y = y + _bdot(_rows(x_p1), w3[2])
    return y.reshape(n, l, co) + b[None]


def _bn_train(h3, g, b):
    """BatchNorm1d with training-mode batch statistics over (N, L), all in f32.

    Two-pass centered variance (numerically stable vs E[x^2]-E[x]^2).
    running_mean / running_var buffer updates are not modelled (forward only).
    """
    n, l, _ = h3.shape
    inv_cnt = 1.0 / float(n * l)
    mean = jnp.sum(h3, axis=(0, 1), keepdims=True) * inv_cnt
    d = h3 - mean
    var = jnp.sum(d * d, axis=(0, 1), keepdims=True) * inv_cnt
    scale = g[None] * lax.rsqrt(var + BN_EPS)
    return d * scale + b[None]


def _res_block(x3, w1, b1, g1, be1, w2, b2, g2, be2, ws, bs, gs, bes):
    """ResidualBlock: conv3/bn/relu/conv3/bn + (conv1x1/bn) shortcut, final relu."""
    sc = _bn_train(_mm(x3, ws) + bs[None], gs, bes)              # shortcut path
    h = jnp.maximum(_bn_train(_conv3(x3, w1, b1), g1, be1), 0.0)
    h = _bn_train(_conv3(h, w2, b2), g2, be2)
    return jnp.maximum(h + sc, 0.0)


def _se_block(h3, w1, w2):
    """Squeeze-and-excitation: mean over L, two bias-free FCs, sigmoid gate (EUP rcp)."""
    y = jnp.mean(h3, axis=1)                                     # (N, C) f32
    y = jnp.maximum(_bdot(y, w1), 0.0)                           # (N, C/r)
    y = _bdot(y, w2)                                             # (N, C)
    gate = pl.reciprocal(1.0 + jnp.exp(-y), approx=True)         # sigmoid via exp + vrcp
    return h3 * gate[:, None, :]


# ------------------------------------- kernel -------------------------------------
def emg_encoder_kernel(*refs):
    """Full forward: trunk + self-attention + pooling + output head, VMEM-resident.

    BatchNorm training-mode stats couple all of (N, L), and the test batch is tiny, so
    the whole forward runs as a single invocation (no feats HBM round trip, no
    grid-overhead-bound second call).
    """
    (x_ref, wp, bp,
     r1w1, r1b1, r1g1, r1be1, r1w2, r1b2, r1g2, r1be2, r1ws, r1bs, r1gs, r1bes,
     s1w1, s1w2,
     r2w1, r2b1, r2g1, r2be1, r2w2, r2b2, r2g2, r2be2, r2ws, r2bs, r2gs, r2bes,
     s2w1, s2w2,
     wqkv, bqkv, wo, bo, lng, lnb,
     o_ref) = refs

    x = x_ref[...].astype(jnp.float32)
    n, l, _ = x.shape

    # ---- trunk: input_proj -> res1 -> se1 -> res2 -> se2 ----
    h = _mm(x, wp[...]) + bp[...][None]                          # input_proj (1x1 conv)
    h = _res_block(h, r1w1[...], r1b1[...], r1g1[...], r1be1[...],
                   r1w2[...], r1b2[...], r1g2[...], r1be2[...],
                   r1ws[...], r1bs[...], r1gs[...], r1bes[...])
    h = _se_block(h, s1w1[...], s1w2[...])
    h = _res_block(h, r2w1[...], r2b1[...], r2g1[...], r2be1[...],
                   r2w2[...], r2b2[...], r2g2[...], r2be2[...],
                   r2ws[...], r2bs[...], r2gs[...], r2bes[...])
    h = _se_block(h, s2w1[...], s2w2[...])                       # (N, L, 4H) f32

    # ---- self-attention (fused Q|K|V projection, batched over N in-kernel) ----
    c = h.shape[-1]
    scale = 1.0 / (float(c) ** 0.5)
    qkv = (_bdot(_rows(h), wqkv[...]) + bqkv[...]).reshape(n, l, 3 * c)
    q = qkv[..., :c]                                             # lane-aligned slices
    k = qkv[..., c:2 * c]
    v = qkv[..., 2 * c:]
    # attn[i, j] = softmax_j(<q_i, k_j> * scale); out_i = sum_j attn[i,j] * v_j
    s = lax.dot_general(q.astype(BF16), k.astype(BF16),
                        (((2,), (2,)), ((0,), (0,))),
                        preferred_element_type=jnp.float32) * scale
    s = s - jnp.max(s, axis=-1, keepdims=True)
    e = jnp.exp(s)
    p = e * pl.reciprocal(jnp.sum(e, axis=-1, keepdims=True), approx=True)
    a = lax.dot_general(p.astype(BF16), v.astype(BF16),
                        (((2,), (1,)), ((0,), (0,))),
                        preferred_element_type=jnp.float32) + h  # residual, (N, L, 4H)

    # ---- global avg+max pool + Linear + LayerNorm + ReLU ----
    feat = jnp.concatenate([jnp.mean(a, axis=1), jnp.max(a, axis=1)], axis=-1)  # (N, 8H)
    z = _bdot(feat, wo[...]) + bo[...]
    mu = jnp.mean(z, axis=-1, keepdims=True)
    var = jnp.mean((z - mu) * (z - mu), axis=-1, keepdims=True)
    z = (z - mu) * lax.rsqrt(var + LN_EPS) * lng[...] + lnb[...]
    # TODO(synk): nn.Dropout(0.2) is the identity here (inference behaviour); a
    # training-mode mask would need pltpu.prng_seed / pltpu.prng_random_bits.
    o_ref[...] = jnp.maximum(z, 0.0).astype(o_ref.dtype)


# ------------------------------------- wrapper -------------------------------------
@jax.jit
def emg_encoder_forward(x, params):
    """x: (N, L, input_dim) float32 -- the layout the PyTorch module is called with."""
    n, l, _ = x.shape
    c2 = params["wo"].shape[1]
    r1, r2 = params["res1"], params["res2"]

    def w(a):                       # MXU operand -> bf16 (biases / BN / LN stay f32)
        return a.astype(BF16)

    wqkv = jnp.concatenate([params["wq"], params["wk"], params["wv"]], axis=1)  # (C2, 3C2)
    bqkv = jnp.concatenate([params["bq"], params["bk"], params["bv"]], axis=1)  # (1, 3C2)

    inputs = (
        x,
        w(params["wp"]), params["bp"],
        w(r1[0]), r1[1], r1[2], r1[3], w(r1[4]), r1[5], r1[6], r1[7],
        w(r1[8]), r1[9], r1[10], r1[11],
        w(params["se1"][0]), w(params["se1"][1]),
        w(r2[0]), r2[1], r2[2], r2[3], w(r2[4]), r2[5], r2[6], r2[7],
        w(r2[8]), r2[9], r2[10], r2[11],
        w(params["se2"][0]), w(params["se2"][1]),
        w(wqkv), bqkv, w(params["wo"]), params["bo"],
        params["lng"], params["lnb"],
    )
    vmem = pl.BlockSpec(memory_space=pltpu.MemorySpace.VMEM)
    return pl.pallas_call(
        emg_encoder_kernel,
        out_shape=jax.ShapeDtypeStruct((n, c2), jnp.float32),
        in_specs=[vmem] * len(inputs),
        out_specs=vmem,
        compiler_params=pltpu.CompilerParams(vmem_limit_bytes=VMEM_LIMIT),
    )(*inputs)


# --------------------------------- pure-JAX reference ---------------------------------
def _ref_forward(x, P):
    """Reference with the same numerics contract as the kernel: bf16 MXU operands with
    f32 accumulation, f32 BN/LN/softmax statistics.  (The kernel additionally uses EUP
    approx reciprocals for sigmoid / softmax normalization, ~1e-3 relative.)"""
    f32 = jnp.float32

    def bdot(a, b):
        return jnp.dot(a.astype(BF16), b.astype(BF16), preferred_element_type=f32)

    def proj(h, wmat, b=None):
        out = jnp.einsum("nlc,co->nlo", h.astype(BF16), wmat.astype(BF16),
                         preferred_element_type=f32)
        return out if b is None else out + b[None]

    def conv3(h, w3, b):
        nb, l, ci = h.shape
        z = jnp.zeros((nb, 1, ci), h.dtype)
        hm = jnp.concatenate([z, h[:, : l - 1]], axis=1)
        hp = jnp.concatenate([h[:, 1:], z], axis=1)
        return proj(hm, w3[0]) + proj(h, w3[1]) + proj(hp, w3[2]) + b[None]

    def bn(h, g, b):
        m = h.mean(axis=(0, 1), keepdims=True)
        v = ((h - m) ** 2).mean(axis=(0, 1), keepdims=True)
        return (h - m) * lax.rsqrt(v + BN_EPS) * g[None] + b[None]

    def resblock(h, p):
        w1, b1, g1, be1, w2, b2, g2, be2, ws, bs, gs, bes = p
        sc = bn(proj(h, ws, bs), gs, bes)
        y = jax.nn.relu(bn(conv3(h, w1, b1), g1, be1))
        y = bn(conv3(y, w2, b2), g2, be2)
        return jax.nn.relu(y + sc)

    def se(h, w1, w2):
        y = h.mean(axis=1)
        y = jax.nn.sigmoid(bdot(jax.nn.relu(bdot(y, w1)), w2))
        return h * y[:, None, :]

    x = x.astype(f32)
    h = proj(x, P["wp"], P["bp"])
    h = se(resblock(h, P["res1"]), *P["se1"])
    h = se(resblock(h, P["res2"]), *P["se2"])

    dim = h.shape[-1]
    q = proj(h, P["wq"], P["bq"])
    k = proj(h, P["wk"], P["bk"])
    v = proj(h, P["wv"], P["bv"])
    attn = jax.nn.softmax(
        jnp.einsum("nic,njc->nij", q.astype(BF16), k.astype(BF16),
                   preferred_element_type=f32) * (dim ** -0.5), axis=-1)
    a = jnp.einsum("nij,njc->nic", attn.astype(BF16), v.astype(BF16),
                   preferred_element_type=f32) + h

    feat = jnp.concatenate([a.mean(axis=1), a.max(axis=1)], axis=-1)     # (N, 8H)
    z = bdot(feat, P["wo"]) + P["bo"]
    mu = z.mean(axis=-1, keepdims=True)
    var = ((z - mu) ** 2).mean(axis=-1, keepdims=True)
    z = (z - mu) * lax.rsqrt(var + LN_EPS) * P["lng"] + P["lnb"]
    return jax.nn.relu(z)                       # Dropout(0.2) == identity (inference)


# --------------------------------------- main ---------------------------------------
if __name__ == "__main__":
    N, L, D_IN, HIDDEN = 2, 16, 8, 32          # channels: 32 -> 64 -> 128
    C1, C2 = 2 * HIDDEN, 4 * HIDDEN

    keys = iter(jax.random.split(jax.random.PRNGKey(0), 48))

    def nrm(shape, s=0.1):
        return s * jax.random.normal(next(keys), shape, jnp.float32)

    def make_res(cin, cout):
        return (nrm((3, cin, cout)), nrm((1, cout)),            # conv1 w (k, Ci, Co), b
                1.0 + nrm((1, cout)), nrm((1, cout)),           # bn1 gamma, beta
                nrm((3, cout, cout)), nrm((1, cout)),           # conv2 w, b
                1.0 + nrm((1, cout)), nrm((1, cout)),           # bn2 gamma, beta
                nrm((cin, cout)), nrm((1, cout)),               # shortcut conv1x1 w, b
                1.0 + nrm((1, cout)), nrm((1, cout)))           # shortcut bn gamma, beta

    def make_se(c, red=16):
        return (nrm((c, c // red)), nrm((c // red, c)))         # bias-free FCs

    params = dict(
        wp=nrm((D_IN, HIDDEN)), bp=nrm((1, HIDDEN)),            # input_proj (1x1 conv)
        res1=make_res(HIDDEN, C1), se1=make_se(C1),
        res2=make_res(C1, C2), se2=make_se(C2),
        wq=nrm((C2, C2)), bq=nrm((1, C2)),
        wk=nrm((C2, C2)), bk=nrm((1, C2)),
        wv=nrm((C2, C2)), bv=nrm((1, C2)),
        wo=nrm((2 * C2, C2)), bo=nrm((1, C2)),                  # Linear(8H -> 4H)
        lng=1.0 + nrm((1, C2)), lnb=nrm((1, C2)),               # LayerNorm(4H)
    )
    x = jax.random.normal(next(keys), (N, L, D_IN), jnp.float32)

    out = jax.block_until_ready(emg_encoder_forward(x, params))
    ref = jax.block_until_ready(_ref_forward(x, params))

    assert out.shape == (N, C2), out.shape
    max_err = float(jnp.max(jnp.abs(out - ref)))
    # Tolerance covers the kernel's EUP approx reciprocals (~1e-3 rel) and MXU
    # accumulation-order differences on top of the shared bf16-operand contract.
    assert jnp.allclose(out, ref, atol=1e-2, rtol=1e-2), max_err
    print("KERNEL_OK")
</pallas_src>

<mosaic_0001>
module attributes {stable_mosaic.version = 11 : i64} {
  func.func @emg_encoder_kernel(%arg0: memref<2x16x8xf32, #tpu.memory_space<vmem>>, %arg1: memref<8x32xbf16, #tpu.memory_space<vmem>>, %arg2: memref<1x32xf32, #tpu.memory_space<vmem>>, %arg3: memref<3x32x64xbf16, #tpu.memory_space<vmem>>, %arg4: memref<1x64xf32, #tpu.memory_space<vmem>>, %arg5: memref<1x64xf32, #tpu.memory_space<vmem>>, %arg6: memref<1x64xf32, #tpu.memory_space<vmem>>, %arg7: memref<3x64x64xbf16, #tpu.memory_space<vmem>>, %arg8: memref<1x64xf32, #tpu.memory_space<vmem>>, %arg9: memref<1x64xf32, #tpu.memory_space<vmem>>, %arg10: memref<1x64xf32, #tpu.memory_space<vmem>>, %arg11: memref<32x64xbf16, #tpu.memory_space<vmem>>, %arg12: memref<1x64xf32, #tpu.memory_space<vmem>>, %arg13: memref<1x64xf32, #tpu.memory_space<vmem>>, %arg14: memref<1x64xf32, #tpu.memory_space<vmem>>, %arg15: memref<64x4xbf16, #tpu.memory_space<vmem>>, %arg16: memref<4x64xbf16, #tpu.memory_space<vmem>>, %arg17: memref<3x64x128xbf16, #tpu.memory_space<vmem>>, %arg18: memref<1x128xf32, #tpu.memory_space<vmem>>, %arg19: memref<1x128xf32, #tpu.memory_space<vmem>>, %arg20: memref<1x128xf32, #tpu.memory_space<vmem>>, %arg21: memref<3x128x128xbf16, #tpu.memory_space<vmem>>, %arg22: memref<1x128xf32, #tpu.memory_space<vmem>>, %arg23: memref<1x128xf32, #tpu.memory_space<vmem>>, %arg24: memref<1x128xf32, #tpu.memory_space<vmem>>, %arg25: memref<64x128xbf16, #tpu.memory_space<vmem>>, %arg26: memref<1x128xf32, #tpu.memory_space<vmem>>, %arg27: memref<1x128xf32, #tpu.memory_space<vmem>>, %arg28: memref<1x128xf32, #tpu.memory_space<vmem>>, %arg29: memref<128x8xbf16, #tpu.memory_space<vmem>>, %arg30: memref<8x128xbf16, #tpu.memory_space<vmem>>, %arg31: memref<128x384xbf16, #tpu.memory_space<vmem>>, %arg32: memref<1x384xf32, #tpu.memory_space<vmem>>, %arg33: memref<256x128xbf16, #tpu.memory_space<vmem>>, %arg34: memref<1x128xf32, #tpu.memory_space<vmem>>, %arg35: memref<1x128xf32, #tpu.memory_space<vmem>>, %arg36: memref<1x128xf32, #tpu.memory_space<vmem>>, %arg37: memref<2x128xf32, #tpu.memory_space<vmem>>) attributes {dimension_semantics = [], scalar_prefetch = 0 : i64, scratch_operands = 0 : i64, tpu.core_type = #tpu.core_type<tc>} {
    %c0 = arith.constant 0 : index
    %c0_0 = arith.constant 0 : index
    %c0_1 = arith.constant 0 : index
    %0 = vector.load %arg0[%c0, %c0_0, %c0_1] : memref<2x16x8xf32, #tpu.memory_space<vmem>>, vector<2x16x8xf32>
    %c0_2 = arith.constant 0 : index
    %c0_3 = arith.constant 0 : index
    %1 = vector.load %arg1[%c0_2, %c0_3] : memref<8x32xbf16, #tpu.memory_space<vmem>>, vector<8x32xbf16>
    %2 = vector.shape_cast %0 : vector<2x16x8xf32> to vector<32x8xf32>
    %3 = arith.truncf %2 : vector<32x8xf32> to vector<32x8xbf16>
    %cst = arith.constant dense<0.000000e+00> : vector<32x32xf32>
    %4 = tpu.matmul %3, %1, %cst {dimension_numbers = #tpu.dot_dimension_numbers<[1], [0], [0], [1], [0, 0, 1, 1], [], []>} : vector<32x8xbf16>, vector<8x32xbf16>, vector<32x32xf32> -> vector<32x32xf32>
    %5 = vector.shape_cast %4 : vector<32x32xf32> to vector<2x16x32xf32>
    %c0_4 = arith.constant 0 : index
    %c0_5 = arith.constant 0 : index
    %6 = vector.load %arg2[%c0_4, %c0_5] : memref<1x32xf32, #tpu.memory_space<vmem>>, vector<1x32xf32>
    %7 = vector.shape_cast %6 : vector<1x32xf32> to vector<1x1x32xf32>
    %8 = vector.broadcast %7 : vector<1x1x32xf32> to vector<2x16x32xf32>
    %9 = arith.addf %5, %8 : vector<2x16x32xf32>
    %c0_6 = arith.constant 0 : index
    %c0_7 = arith.constant 0 : index
    %c0_8 = arith.constant 0 : index
    %10 = vector.load %arg3[%c0_6, %c0_7, %c0_8] : memref<3x32x64xbf16, #tpu.memory_space<vmem>>, vector<3x32x64xbf16>
    %c0_9 = arith.constant 0 : index
    %c0_10 = arith.constant 0 : index
    %11 = vector.load %arg4[%c0_9, %c0_10] : memref<1x64xf32, #tpu.memory_space<vmem>>, vector<1x64xf32>
    %c0_11 = arith.constant 0 : index
    %c0_12 = arith.constant 0 : index
    %12 = vector.load %arg5[%c0_11, %c0_12] : memref<1x64xf32, #tpu.memory_space<vmem>>, vector<1x64xf32>
    %c0_13 = arith.constant 0 : index
    %c0_14 = arith.constant 0 : index
    %13 = vector.load %arg6[%c0_13, %c0_14] : memref<1x64xf32, #tpu.memory_space<vmem>>, vector<1x64xf32>
    %c0_15 = arith.constant 0 : index
    %c0_16 = arith.constant 0 : index
    %c0_17 = arith.constant 0 : index
    %14 = vector.load %arg7[%c0_15, %c0_16, %c0_17] : memref<3x64x64xbf16, #tpu.memory_space<vmem>>, vector<3x64x64xbf16>
    %c0_18 = arith.constant 0 : index
    %c0_19 = arith.constant 0 : index
    %15 = vector.load %arg8[%c0_18, %c0_19] : memref<1x64xf32, #tpu.memory_space<vmem>>, vector<1x64xf32>
    %c0_20 = arith.constant 0 : index
    %c0_21 = arith.constant 0 : index
    %16 = vector.load %arg9[%c0_20, %c0_21] : memref<1x64xf32, #tpu.memory_space<vmem>>, vector<1x64xf32>
    %c0_22 = arith.constant 0 : index
    %c0_23 = arith.constant 0 : index
    %17 = vector.load %arg10[%c0_22, %c0_23] : memref<1x64xf32, #tpu.memory_space<vmem>>, vector<1x64xf32>
    %c0_24 = arith.constant 0 : index
    %c0_25 = arith.constant 0 : index
    %18 = vector.load %arg11[%c0_24, %c0_25] : memref<32x64xbf16, #tpu.memory_space<vmem>>, vector<32x64xbf16>
    %c0_26 = arith.constant 0 : index
    %c0_27 = arith.constant 0 : index
    %19 = vector.load %arg12[%c0_26, %c0_27] : memref<1x64xf32, #tpu.memory_space<vmem>>, vector<1x64xf32>
    %c0_28 = arith.constant 0 : index
    %c0_29 = arith.constant 0 : index
    %20 = vector.load %arg13[%c0_28, %c0_29] : memref<1x64xf32, #tpu.memory_space<vmem>>, vector<1x64xf32>
    %c0_30 = arith.constant 0 : index
    %c0_31 = arith.constant 0 : index
    %21 = vector.load %arg14[%c0_30, %c0_31] : memref<1x64xf32, #tpu.memory_space<vmem>>, vector<1x64xf32>
    %22 = vector.shape_cast %9 : vector<2x16x32xf32> to vector<32x32xf32>
    %23 = arith.truncf %22 : vector<32x32xf32> to vector<32x32xbf16>
    %cst_32 = arith.constant dense<0.000000e+00> : vector<32x64xf32>
    %24 = tpu.matmul %23, %18, %cst_32 {dimension_numbers = #tpu.dot_dimension_numbers<[1], [0], [0], [1], [0, 0, 1, 1], [], []>} : vector<32x32xbf16>, vector<32x64xbf16>, vector<32x64xf32> -> vector<32x64xf32>
    %25 = vector.shape_cast %24 : vector<32x64xf32> to vector<2x16x64xf32>
    %26 = vector.shape_cast %19 : vector<1x64xf32> to vector<1x1x64xf32>
    %27 = vector.broadcast %26 : vector<1x1x64xf32> to vector<2x16x64xf32>
    %28 = arith.addf %25, %27 : vector<2x16x64xf32>
    %cst_33 = arith.constant dense<0.000000e+00> : vector<64xf32>
    %29 = vector.multi_reduction <add>, %28, %cst_33 [0, 1] : vector<2x16x64xf32> to vector<64xf32>
    %30 = vector.shape_cast %29 : vector<64xf32> to vector<1x1x64xf32>
    %cst_34 = arith.constant 3.125000e-02 : f32
    %31 = vector.broadcast %cst_34 : f32 to vector<1x1x64xf32>
    %32 = arith.mulf %30, %31 : vector<1x1x64xf32>
    %33 = vector.broadcast %32 : vector<1x1x64xf32> to vector<2x16x64xf32>
    %34 = arith.subf %28, %33 : vector<2x16x64xf32>
    %35 = arith.mulf %34, %34 : vector<2x16x64xf32>
    %cst_35 = arith.constant dense<0.000000e+00> : vector<64xf32>
    %36 = vector.multi_reduction <add>, %35, %cst_35 [0, 1] : vector<2x16x64xf32> to vector<64xf32>
    %37 = vector.shape_cast %36 : vector<64xf32> to vector<1x1x64xf32>
    %cst_36 = arith.constant 3.125000e-02 : f32
    %38 = vector.broadcast %cst_36 : f32 to vector<1x1x64xf32>
    %39 = arith.mulf %37, %38 : vector<1x1x64xf32>
    %40 = vector.shape_cast %20 : vector<1x64xf32> to vector<1x1x64xf32>
    %cst_37 = arith.constant 9.99999974E-6 : f32
    %41 = vector.broadcast %cst_37 : f32 to vector<1x1x64xf32>
    %42 = arith.addf %39, %41 : vector<1x1x64xf32>
    %43 = math.rsqrt %42 : vector<1x1x64xf32>
    %44 = arith.mulf %40, %43 : vector<1x1x64xf32>
    %45 = vector.broadcast %44 : vector<1x1x64xf32> to vector<2x16x64xf32>
    %46 = arith.mulf %34, %45 : vector<2x16x64xf32>
    %47 = vector.shape_cast %21 : vector<1x64xf32> to vector<1x1x64xf32>
    %48 = vector.broadcast %47 : vector<1x1x64xf32> to vector<2x16x64xf32>
    %49 = arith.addf %46, %48 : vector<2x16x64xf32>
    %cst_38 = arith.constant 0.000000e+00 : f32
    %50 = vector.broadcast %cst_38 : f32 to vector<2x1x32xf32>
    %51 = vector.extract_strided_slice %9 {offsets = [0, 0, 0], sizes = [2, 15, 32], strides = [1, 1, 1]} : vector<2x16x32xf32> to vector<2x15x32xf32>
    %52 = tpu.concatenate %50, %51 in 1 : vector<2x1x32xf32>, vector<2x15x32xf32> -> vector<2x16x32xf32>
    %53 = vector.extract_strided_slice %9 {offsets = [0, 1, 0], sizes = [2, 15, 32], strides = [1, 1, 1]} : vector<2x16x32xf32> to vector<2x15x32xf32>
    %54 = tpu.concatenate %53, %50 in 1 : vector<2x15x32xf32>, vector<2x1x32xf32> -> vector<2x16x32xf32>
    %55 = vector.shape_cast %52 : vector<2x16x32xf32> to vector<32x32xf32>
    %56 = vector.extract_strided_slice %10 {offsets = [0, 0, 0], sizes = [1, 32, 64], strides = [1, 1, 1]} : vector<3x32x64xbf16> to vector<1x32x64xbf16>
    %57 = vector.shape_cast %56 : vector<1x32x64xbf16> to vector<32x64xbf16>
    %58 = arith.truncf %55 : vector<32x32xf32> to vector<32x32xbf16>
    %cst_39 = arith.constant dense<0.000000e+00> : vector<32x64xf32>
    %59 = tpu.matmul %58, %57, %cst_39 {dimension_numbers = #tpu.dot_dimension_numbers<[1], [0], [0], [1], [0, 0, 1, 1], [], []>} : vector<32x32xbf16>, vector<32x64xbf16>, vector<32x64xf32> -> vector<32x64xf32>
    %60 = vector.shape_cast %9 : vector<2x16x32xf32> to vector<32x32xf32>
    %61 = vector.extract_strided_slice %10 {offsets = [1, 0, 0], sizes = [1, 32, 64], strides = [1, 1, 1]} : vector<3x32x64xbf16> to vector<1x32x64xbf16>
    %62 = vector.shape_cast %61 : vector<1x32x64xbf16> to vector<32x64xbf16>
    %63 = arith.truncf %60 : vector<32x32xf32> to vector<32x32xbf16>
    %cst_40 = arith.constant dense<0.000000e+00> : vector<32x64xf32>
    %64 = tpu.matmul %63, %62, %cst_40 {dimension_numbers = #tpu.dot_dimension_numbers<[1], [0], [0], [1], [0, 0, 1, 1], [], []>} : vector<32x32xbf16>, vector<32x64xbf16>, vector<32x64xf32> -> vector<32x64xf32>
    %65 = arith.addf %59, %64 : vector<32x64xf32>
    %66 = vector.shape_cast %54 : vector<2x16x32xf32> to vector<32x32xf32>
    %67 = vector.extract_strided_slice %10 {offsets = [2, 0, 0], sizes = [1, 32, 64], strides = [1, 1, 1]} : vector<3x32x64xbf16> to vector<1x32x64xbf16>
    %68 = vector.shape_cast %67 : vector<1x32x64xbf16> to vector<32x64xbf16>
    %69 = arith.truncf %66 : vector<32x32xf32> to vector<32x32xbf16>
    %cst_41 = arith.constant dense<0.000000e+00> : vector<32x64xf32>
    %70 = tpu.matmul %69, %68, %cst_41 {dimension_numbers = #tpu.dot_dimension_numbers<[1], [0], [0], [1], [0, 0, 1, 1], [], []>} : vector<32x32xbf16>, vector<32x64xbf16>, vector<32x64xf32> -> vector<32x64xf32>
    %71 = arith.addf %65, %70 : vector<32x64xf32>
    %72 = vector.shape_cast %71 : vector<32x64xf32> to vector<2x16x64xf32>
    %73 = vector.shape_cast %11 : vector<1x64xf32> to vector<1x1x64xf32>
    %74 = vector.broadcast %73 : vector<1x1x64xf32> to vector<2x16x64xf32>
    %75 = arith.addf %72, %74 : vector<2x16x64xf32>
    %cst_42 = arith.constant dense<0.000000e+00> : vector<64xf32>
    %76 = vector.multi_reduction <add>, %75, %cst_42 [0, 1] : vector<2x16x64xf32> to vector<64xf32>
    %77 = vector.shape_cast %76 : vector<64xf32> to vector<1x1x64xf32>
    %cst_43 = arith.constant 3.125000e-02 : f32
    %78 = vector.broadcast %cst_43 : f32 to vector<1x1x64xf32>
    %79 = arith.mulf %77, %78 : vector<1x1x64xf32>
    %80 = vector.broadcast %79 : vector<1x1x64xf32> to vector<2x16x64xf32>
    %81 = arith.subf %75, %80 : vector<2x16x64xf32>
    %82 = arith.mulf %81, %81 : vector<2x16x64xf32>
    %cst_44 = arith.constant dense<0.000000e+00> : vector<64xf32>
    %83 = vector.multi_reduction <add>, %82, %cst_44 [0, 1] : vector<2x16x64xf32> to vector<64xf32>
    %84 = vector.shape_cast %83 : vector<64xf32> to vector<1x1x64xf32>
    %cst_45 = arith.constant 3.125000e-02 : f32
    %85 = vector.broadcast %cst_45 : f32 to vector<1x1x64xf32>
    %86 = arith.mulf %84, %85 : vector<1x1x64xf32>
    %87 = vector.shape_cast %12 : vector<1x64xf32> to vector<1x1x64xf32>
    %cst_46 = arith.constant 9.99999974E-6 : f32
    %88 = vector.broadcast %cst_46 : f32 to vector<1x1x64xf32>
    %89 = arith.addf %86, %88 : vector<1x1x64xf32>
    %90 = math.rsqrt %89 : vector<1x1x64xf32>
    %91 = arith.mulf %87, %90 : vector<1x1x64xf32>
    %92 = vector.broadcast %91 : vector<1x1x64xf32> to vector<2x16x64xf32>
    %93 = arith.mulf %81, %92 : vector<2x16x64xf32>
    %94 = vector.shape_cast %13 : vector<1x64xf32> to vector<1x1x64xf32>
    %95 = vector.broadcast %94 : vector<1x1x64xf32> to vector<2x16x64xf32>
    %96 = arith.addf %93, %95 : vector<2x16x64xf32>
    %cst_47 = arith.constant 0.000000e+00 : f32
    %97 = vector.broadcast %cst_47 : f32 to vector<2x16x64xf32>
    %98 = arith.maximumf %96, %97 : vector<2x16x64xf32>
    %cst_48 = arith.constant 0.000000e+00 : f32
    %99 = vector.broadcast %cst_48 : f32 to vector<2x1x64xf32>
    %100 = vector.extract_strided_slice %98 {offsets = [0, 0, 0], sizes = [2, 15, 64], strides = [1, 1, 1]} : vector<2x16x64xf32> to vector<2x15x64xf32>
    %101 = tpu.concatenate %99, %100 in 1 : vector<2x1x64xf32>, vector<2x15x64xf32> -> vector<2x16x64xf32>
    %102 = vector.extract_strided_slice %98 {offsets = [0, 1, 0], sizes = [2, 15, 64], strides = [1, 1, 1]} : vector<2x16x64xf32> to vector<2x15x64xf32>
    %103 = tpu.concatenate %102, %99 in 1 : vector<2x15x64xf32>, vector<2x1x64xf32> -> vector<2x16x64xf32>
    %104 = vector.shape_cast %101 : vector<2x16x64xf32> to vector<32x64xf32>
    %105 = vector.extract_strided_slice %14 {offsets = [0, 0, 0], sizes = [1, 64, 64], strides = [1, 1, 1]} : vector<3x64x64xbf16> to vector<1x64x64xbf16>
    %106 = vector.shape_cast %105 : vector<1x64x64xbf16> to vector<64x64xbf16>
    %107 = arith.truncf %104 : vector<32x64xf32> to vector<32x64xbf16>
    %cst_49 = arith.constant dense<0.000000e+00> : vector<32x64xf32>
    %108 = tpu.matmul %107, %106, %cst_49 {dimension_numbers = #tpu.dot_dimension_numbers<[1], [0], [0], [1], [0, 0, 1, 1], [], []>} : vector<32x64xbf16>, vector<64x64xbf16>, vector<32x64xf32> -> vector<32x64xf32>
    %109 = vector.shape_cast %98 : vector<2x16x64xf32> to vector<32x64xf32>
    %110 = vector.extract_strided_slice %14 {offsets = [1, 0, 0], sizes = [1, 64, 64], strides = [1, 1, 1]} : vector<3x64x64xbf16> to vector<1x64x64xbf16>
    %111 = vector.shape_cast %110 : vector<1x64x64xbf16> to vector<64x64xbf16>
    %112 = arith.truncf %109 : vector<32x64xf32> to vector<32x64xbf16>
    %cst_50 = arith.constant dense<0.000000e+00> : vector<32x64xf32>
    %113 = tpu.matmul %112, %111, %cst_50 {dimension_numbers = #tpu.dot_dimension_numbers<[1], [0], [0], [1], [0, 0, 1, 1], [], []>} : vector<32x64xbf16>, vector<64x64xbf16>, vector<32x64xf32> -> vector<32x64xf32>
    %114 = arith.addf %108, %113 : vector<32x64xf32>
    %115 = vector.shape_cast %103 : vector<2x16x64xf32> to vector<32x64xf32>
    %116 = vector.extract_strided_slice %14 {offsets = [2, 0, 0], sizes = [1, 64, 64], strides = [1, 1, 1]} : vector<3x64x64xbf16> to vector<1x64x64xbf16>
    %117 = vector.shape_cast %116 : vector<1x64x64xbf16> to vector<64x64xbf16>
    %118 = arith.truncf %115 : vector<32x64xf32> to vector<32x64xbf16>
    %cst_51 = arith.constant dense<0.000000e+00> : vector<32x64xf32>
    %119 = tpu.matmul %118, %117, %cst_51 {dimension_numbers = #tpu.dot_dimension_numbers<[1], [0], [0], [1], [0, 0, 1, 1], [], []>} : vector<32x64xbf16>, vector<64x64xbf16>, vector<32x64xf32> -> vector<32x64xf32>
    %120 = arith.addf %114, %119 : vector<32x64xf32>
    %121 = vector.shape_cast %120 : vector<32x64xf32> to vector<2x16x64xf32>
    %122 = vector.shape_cast %15 : vector<1x64xf32> to vector<1x1x64xf32>
    %123 = vector.broadcast %122 : vector<1x1x64xf32> to vector<2x16x64xf32>
    %124 = arith.addf %121, %123 : vector<2x16x64xf32>
    %cst_52 = arith.constant dense<0.000000e+00> : vector<64xf32>
    %125 = vector.multi_reduction <add>, %124, %cst_52 [0, 1] : vector<2x16x64xf32> to vector<64xf32>
    %126 = vector.shape_cast %125 : vector<64xf32> to vector<1x1x64xf32>
    %cst_53 = arith.constant 3.125000e-02 : f32
    %127 = vector.broadcast %cst_53 : f32 to vector<1x1x64xf32>
    %128 = arith.mulf %126, %127 : vector<1x1x64xf32>
    %129 = vector.broadcast %128 : vector<1x1x64xf32> to vector<2x16x64xf32>
    %130 = arith.subf %124, %129 : vector<2x16x64xf32>
    %131 = arith.mulf %130, %130 : vector<2x16x64xf32>
    %cst_54 = arith.constant dense<0.000000e+00> : vector<64xf32>
    %132 = vector.multi_reduction <add>, %131, %cst_54 [0, 1] : vector<2x16x64xf32> to vector<64xf32>
    %133 = vector.shape_cast %132 : vector<64xf32> to vector<1x1x64xf32>
    %cst_55 = arith.constant 3.125000e-02 : f32
    %134 = vector.broadcast %cst_55 : f32 to vector<1x1x64xf32>
    %135 = arith.mulf %133, %134 : vector<1x1x64xf32>
    %136 = vector.shape_cast %16 : vector<1x64xf32> to vector<1x1x64xf32>
    %cst_56 = arith.constant 9.99999974E-6 : f32
    %137 = vector.broadcast %cst_56 : f32 to vector<1x1x64xf32>
    %138 = arith.addf %135, %137 : vector<1x1x64xf32>
    %139 = math.rsqrt %138 : vector<1x1x64xf32>
    %140 = arith.mulf %136, %139 : vector<1x1x64xf32>
    %141 = vector.broadcast %140 : vector<1x1x64xf32> to vector<2x16x64xf32>
    %142 = arith.mulf %130, %141 : vector<2x16x64xf32>
    %143 = vector.shape_cast %17 : vector<1x64xf32> to vector<1x1x64xf32>
    %144 = vector.broadcast %143 : vector<1x1x64xf32> to vector<2x16x64xf32>
    %145 = arith.addf %142, %144 : vector<2x16x64xf32>
    %146 = arith.addf %145, %49 : vector<2x16x64xf32>
    %cst_57 = arith.constant 0.000000e+00 : f32
    %147 = vector.broadcast %cst_57 : f32 to vector<2x16x64xf32>
    %148 = arith.maximumf %146, %147 : vector<2x16x64xf32>
    %c0_58 = arith.constant 0 : index
    %c0_59 = arith.constant 0 : index
    %149 = vector.load %arg15[%c0_58, %c0_59] : memref<64x4xbf16, #tpu.memory_space<vmem>>, vector<64x4xbf16>
    %c0_60 = arith.constant 0 : index
    %c0_61 = arith.constant 0 : index
    %150 = vector.load %arg16[%c0_60, %c0_61] : memref<4x64xbf16, #tpu.memory_space<vmem>>, vector<4x64xbf16>
    %cst_62 = arith.constant dense<0.000000e+00> : vector<2x64xf32>
    %151 = vector.multi_reduction <add>, %148, %cst_62 [1] : vector<2x16x64xf32> to vector<2x64xf32>
    %cst_63 = arith.constant 1.600000e+01 : f32
    %152 = vector.broadcast %cst_63 : f32 to vector<2x64xf32>
    %153 = arith.divf %151, %152 : vector<2x64xf32>
    %154 = arith.truncf %153 : vector<2x64xf32> to vector<2x64xbf16>
    %cst_64 = arith.constant dense<0.000000e+00> : vector<2x4xf32>
    %155 = tpu.matmul %154, %149, %cst_64 {dimension_numbers = #tpu.dot_dimension_numbers<[1], [0], [0], [1], [0, 0, 1, 1], [], []>} : vector<2x64xbf16>, vector<64x4xbf16>, vector<2x4xf32> -> vector<2x4xf32>
    %cst_65 = arith.constant 0.000000e+00 : f32
    %156 = vector.broadcast %cst_65 : f32 to vector<2x4xf32>
    %157 = arith.maximumf %155, %156 : vector<2x4xf32>
    %158 = arith.truncf %157 : vector<2x4xf32> to vector<2x4xbf16>
    %cst_66 = arith.constant dense<0.000000e+00> : vector<2x64xf32>
    %159 = tpu.matmul %158, %150, %cst_66 {dimension_numbers = #tpu.dot_dimension_numbers<[1], [0], [0], [1], [0, 0, 1, 1], [], []>} : vector<2x4xbf16>, vector<4x64xbf16>, vector<2x64xf32> -> vector<2x64xf32>
    %cst_67 = arith.constant 0.000000e+00 : f32
    %160 = vector.broadcast %cst_67 : f32 to vector<2x64xf32>
    %161 = arith.subf %160, %159 : vector<2x64xf32>
    %162 = math.exp %161 : vector<2x64xf32>
    %cst_68 = arith.constant 1.000000e+00 : f32
    %163 = vector.broadcast %cst_68 : f32 to vector<2x64xf32>
    %164 = arith.addf %163, %162 : vector<2x64xf32>
    %165 = tpu.reciprocal %164 {approx = true} : vector<2x64xf32> -> vector<2x64xf32>
    %166 = vector.shape_cast %165 : vector<2x64xf32> to vector<2x1x64xf32>
    %167 = vector.broadcast %166 : vector<2x1x64xf32> to vector<2x16x64xf32>
    %168 = arith.mulf %148, %167 : vector<2x16x64xf32>
    %c0_69 = arith.constant 0 : index
    %c0_70 = arith.constant 0 : index
    %c0_71 = arith.constant 0 : index
    %169 = vector.load %arg17[%c0_69, %c0_70, %c0_71] : memref<3x64x128xbf16, #tpu.memory_space<vmem>>, vector<3x64x128xbf16>
    %c0_72 = arith.constant 0 : index
    %c0_73 = arith.constant 0 : index
    %170 = vector.load %arg18[%c0_72, %c0_73] : memref<1x128xf32, #tpu.memory_space<vmem>>, vector<1x128xf32>
    %c0_74 = arith.constant 0 : index
    %c0_75 = arith.constant 0 : index
    %171 = vector.load %arg19[%c0_74, %c0_75] : memref<1x128xf32, #tpu.memory_space<vmem>>, vector<1x128xf32>
    %c0_76 = arith.constant 0 : index
    %c0_77 = arith.constant 0 : index
    %172 = vector.load %arg20[%c0_76, %c0_77] : memref<1x128xf32, #tpu.memory_space<vmem>>, vector<1x128xf32>
    %c0_78 = arith.constant 0 : index
    %c0_79 = arith.constant 0 : index
    %c0_80 = arith.constant 0 : index
    %173 = vector.load %arg21[%c0_78, %c0_79, %c0_80] : memref<3x128x128xbf16, #tpu.memory_space<vmem>>, vector<3x128x128xbf16>
    %c0_81 = arith.constant 0 : index
    %c0_82 = arith.constant 0 : index
    %174 = vector.load %arg22[%c0_81, %c0_82] : memref<1x128xf32, #tpu.memory_space<vmem>>, vector<1x128xf32>
    %c0_83 = arith.constant 0 : index
    %c0_84 = arith.constant 0 : index
    %175 = vector.load %arg23[%c0_83, %c0_84] : memref<1x128xf32, #tpu.memory_space<vmem>>, vector<1x128xf32>
    %c0_85 = arith.constant 0 : index
    %c0_86 = arith.constant 0 : index
    %176 = vector.load %arg24[%c0_85, %c0_86] : memref<1x128xf32, #tpu.memory_space<vmem>>, vector<1x128xf32>
    %c0_87 = arith.constant 0 : index
    %c0_88 = arith.constant 0 : index
    %177 = vector.load %arg25[%c0_87, %c0_88] : memref<64x128xbf16, #tpu.memory_space<vmem>>, vector<64x128xbf16>
    %c0_89 = arith.constant 0 : index
    %c0_90 = arith.constant 0 : index
    %178 = vector.load %arg26[%c0_89, %c0_90] : memref<1x128xf32, #tpu.memory_space<vmem>>, vector<1x128xf32>
    %c0_91 = arith.constant 0 : index
    %c0_92 = arith.constant 0 : index
    %179 = vector.load %arg27[%c0_91, %c0_92] : memref<1x128xf32, #tpu.memory_space<vmem>>, vector<1x128xf32>
    %c0_93 = arith.constant 0 : index
    %c0_94 = arith.constant 0 : index
    %180 = vector.load %arg28[%c0_93, %c0_94] : memref<1x128xf32, #tpu.memory_space<vmem>>, vector<1x128xf32>
    %181 = vector.shape_cast %168 : vector<2x16x64xf32> to vector<32x64xf32>
    %182 = arith.truncf %181 : vector<32x64xf32> to vector<32x64xbf16>
    %cst_95 = arith.constant dense<0.000000e+00> : vector<32x128xf32>
    %183 = tpu.matmul %182, %177, %cst_95 {dimension_numbers = #tpu.dot_dimension_numbers<[1], [0], [0], [1], [0, 0, 1, 1], [], []>} : vector<32x64xbf16>, vector<64x128xbf16>, vector<32x128xf32> -> vector<32x128xf32>
    %184 = vector.shape_cast %183 : vector<32x128xf32> to vector<2x16x128xf32>
    %185 = vector.shape_cast %178 : vector<1x128xf32> to vector<1x1x128xf32>
    %186 = vector.broadcast %185 : vector<1x1x128xf32> to vector<2x16x128xf32>
    %187 = arith.addf %184, %186 : vector<2x16x128xf32>
    %cst_96 = arith.constant dense<0.000000e+00> : vector<128xf32>
    %188 = vector.multi_reduction <add>, %187, %cst_96 [0, 1] : vector<2x16x128xf32> to vector<128xf32>
    %189 = vector.shape_cast %188 : vector<128xf32> to vector<1x1x128xf32>
    %cst_97 = arith.constant 3.125000e-02 : f32
    %190 = vector.broadcast %cst_97 : f32 to vector<1x1x128xf32>
    %191 = arith.mulf %189, %190 : vector<1x1x128xf32>
    %192 = vector.broadcast %191 : vector<1x1x128xf32> to vector<2x16x128xf32>
    %193 = arith.subf %187, %192 : vector<2x16x128xf32>
    %194 = arith.mulf %193, %193 : vector<2x16x128xf32>
    %cst_98 = arith.constant dense<0.000000e+00> : vector<128xf32>
    %195 = vector.multi_reduction <add>, %194, %cst_98 [0, 1] : vector<2x16x128xf32> to vector<128xf32>
    %196 = vector.shape_cast %195 : vector<128xf32> to vector<1x1x128xf32>
    %cst_99 = arith.constant 3.125000e-02 : f32
    %197 = vector.broadcast %cst_99 : f32 to vector<1x1x128xf32>
    %198 = arith.mulf %196, %197 : vector<1x1x128xf32>
    %199 = vector.shape_cast %179 : vector<1x128xf32> to vector<1x1x128xf32>
    %cst_100 = arith.constant 9.99999974E-6 : f32
    %200 = vector.broadcast %cst_100 : f32 to vector<1x1x128xf32>
    %201 = arith.addf %198, %200 : vector<1x1x128xf32>
    %202 = math.rsqrt %201 : vector<1x1x128xf32>
    %203 = arith.mulf %199, %202 : vector<1x1x128xf32>
    %204 = vector.broadcast %203 : vector<1x1x128xf32> to vector<2x16x128xf32>
    %205 = arith.mulf %193, %204 : vector<2x16x128xf32>
    %206 = vector.shape_cast %180 : vector<1x128xf32> to vector<1x1x128xf32>
    %207 = vector.broadcast %206 : vector<1x1x128xf32> to vector<2x16x128xf32>
    %208 = arith.addf %205, %207 : vector<2x16x128xf32>
    %cst_101 = arith.constant 0.000000e+00 : f32
    %209 = vector.broadcast %cst_101 : f32 to vector<2x1x64xf32>
    %210 = vector.extract_strided_slice %168 {offsets = [0, 0, 0], sizes = [2, 15, 64], strides = [1, 1, 1]} : vector<2x16x64xf32> to vector<2x15x64xf32>
    %211 = tpu.concatenate %209, %210 in 1 : vector<2x1x64xf32>, vector<2x15x64xf32> -> vector<2x16x64xf32>
    %212 = vector.extract_strided_slice %168 {offsets = [0, 1, 0], sizes = [2, 15, 64], strides = [1, 1, 1]} : vector<2x16x64xf32> to vector<2x15x64xf32>
    %213 = tpu.concatenate %212, %209 in 1 : vector<2x15x64xf32>, vector<2x1x64xf32> -> vector<2x16x64xf32>
    %214 = vector.shape_cast %211 : vector<2x16x64xf32> to vector<32x64xf32>
    %215 = vector.extract_strided_slice %169 {offsets = [0, 0, 0], sizes = [1, 64, 128], strides = [1, 1, 1]} : vector<3x64x128xbf16> to vector<1x64x128xbf16>
    %216 = vector.shape_cast %215 : vector<1x64x128xbf16> to vector<64x128xbf16>
    %217 = arith.truncf %214 : vector<32x64xf32> to vector<32x64xbf16>
    %cst_102 = arith.constant dense<0.000000e+00> : vector<32x128xf32>
    %218 = tpu.matmul %217, %216, %cst_102 {dimension_numbers = #tpu.dot_dimension_numbers<[1], [0], [0], [1], [0, 0, 1, 1], [], []>} : vector<32x64xbf16>, vector<64x128xbf16>, vector<32x128xf32> -> vector<32x128xf32>
    %219 = vector.shape_cast %168 : vector<2x16x64xf32> to vector<32x64xf32>
    %220 = vector.extract_strided_slice %169 {offsets = [1, 0, 0], sizes = [1, 64, 128], strides = [1, 1, 1]} : vector<3x64x128xbf16> to vector<1x64x128xbf16>
    %221 = vector.shape_cast %220 : vector<1x64x128xbf16> to vector<64x128xbf16>
    %222 = arith.truncf %219 : vector<32x64xf32> to vector<32x64xbf16>
    %cst_103 = arith.constant dense<0.000000e+00> : vector<32x128xf32>
    %223 = tpu.matmul %222, %221, %cst_103 {dimension_numbers = #tpu.dot_dimension_numbers<[1], [0], [0], [1], [0, 0, 1, 1], [], []>} : vector<32x64xbf16>, vector<64x128xbf16>, vector<32x128xf32> -> vector<32x128xf32>
    %224 = arith.addf %218, %223 : vector<32x128xf32>
    %225 = vector.shape_cast %213 : vector<2x16x64xf32> to vector<32x64xf32>
    %226 = vector.extract_strided_slice %169 {offsets = [2, 0, 0], sizes = [1, 64, 128], strides = [1, 1, 1]} : vector<3x64x128xbf16> to vector<1x64x128xbf16>
    %227 = vector.shape_cast %226 : vector<1x64x128xbf16> to vector<64x128xbf16>
    %228 = arith.truncf %225 : vector<32x64xf32> to vector<32x64xbf16>
    %cst_104 = arith.constant dense<0.000000e+00> : vector<32x128xf32>
    %229 = tpu.matmul %228, %227, %cst_104 {dimension_numbers = #tpu.dot_dimension_numbers<[1], [0], [0], [1], [0, 0, 1, 1], [], []>} : vector<32x64xbf16>, vector<64x128xbf16>, vector<32x128xf32> -> vector<32x128xf32>
    %230 = arith.addf %224, %229 : vector<32x128xf32>
    %231 = vector.shape_cast %230 : vector<32x128xf32> to vector<2x16x128xf32>
    %232 = vector.shape_cast %170 : vector<1x128xf32> to vector<1x1x128xf32>
    %233 = vector.broadcast %232 : vector<1x1x128xf32> to vector<2x16x128xf32>
    %234 = arith.addf %231, %233 : vector<2x16x128xf32>
    %cst_105 = arith.constant dense<0.000000e+00> : vector<128xf32>
    %235 = vector.multi_reduction <add>, %234, %cst_105 [0, 1] : vector<2x16x128xf32> to vector<128xf32>
    %236 = vector.shape_cast %235 : vector<128xf32> to vector<1x1x128xf32>
    %cst_106 = arith.constant 3.125000e-02 : f32
    %237 = vector.broadcast %cst_106 : f32 to vector<1x1x128xf32>
    %238 = arith.mulf %236, %237 : vector<1x1x128xf32>
    %239 = vector.broadcast %238 : vector<1x1x128xf32> to vector<2x16x128xf32>
    %240 = arith.subf %234, %239 : vector<2x16x128xf32>
    %241 = arith.mulf %240, %240 : vector<2x16x128xf32>
    %cst_107 = arith.constant dense<0.000000e+00> : vector<128xf32>
    %242 = vector.multi_reduction <add>, %241, %cst_107 [0, 1] : vector<2x16x128xf32> to vector<128xf32>
    %243 = vector.shape_cast %242 : vector<128xf32> to vector<1x1x128xf32>
    %cst_108 = arith.constant 3.125000e-02 : f32
    %244 = vector.broadcast %cst_108 : f32 to vector<1x1x128xf32>
    %245 = arith.mulf %243, %244 : vector<1x1x128xf32>
    %246 = vector.shape_cast %171 : vector<1x128xf32> to vector<1x1x128xf32>
    %cst_109 = arith.constant 9.99999974E-6 : f32
    %247 = vector.broadcast %cst_109 : f32 to vector<1x1x128xf32>
    %248 = arith.addf %245, %247 : vector<1x1x128xf32>
    %249 = math.rsqrt %248 : vector<1x1x128xf32>
    %250 = arith.mulf %246, %249 : vector<1x1x128xf32>
    %251 = vector.broadcast %250 : vector<1x1x128xf32> to vector<2x16x128xf32>
    %252 = arith.mulf %240, %251 : vector<2x16x128xf32>
    %253 = vector.shape_cast %172 : vector<1x128xf32> to vector<1x1x128xf32>
    %254 = vector.broadcast %253 : vector<1x1x128xf32> to vector<2x16x128xf32>
    %255 = arith.addf %252, %254 : vector<2x16x128xf32>
    %cst_110 = arith.constant 0.000000e+00 : f32
    %256 = vector.broadcast %cst_110 : f32 to vector<2x16x128xf32>
    %257 = arith.maximumf %255, %256 : vector<2x16x128xf32>
    %cst_111 = arith.constant 0.000000e+00 : f32
    %258 = vector.broadcast %cst_111 : f32 to vector<2x1x128xf32>
    %259 = vector.extract_strided_slice %257 {offsets = [0, 0, 0], sizes = [2, 15, 128], strides = [1, 1, 1]} : vector<2x16x128xf32> to vector<2x15x128xf32>
    %260 = tpu.concatenate %258, %259 in 1 : vector<2x1x128xf32>, vector<2x15x128xf32> -> vector<2x16x128xf32>
    %261 = vector.extract_strided_slice %257 {offsets = [0, 1, 0], sizes = [2, 15, 128], strides = [1, 1, 1]} : vector<2x16x128xf32> to vector<2x15x128xf32>
    %262 = tpu.concatenate %261, %258 in 1 : vector<2x15x128xf32>, vector<2x1x128xf32> -> vector<2x16x128xf32>
    %263 = vector.shape_cast %260 : vector<2x16x128xf32> to vector<32x128xf32>
    %264 = vector.extract_strided_slice %173 {offsets = [0, 0, 0], sizes = [1, 128, 128], strides = [1, 1, 1]} : vector<3x128x128xbf16> to vector<1x128x128xbf16>
    %265 = vector.shape_cast %264 : vector<1x128x128xbf16> to vector<128x128xbf16>
    %266 = arith.truncf %263 : vector<32x128xf32> to vector<32x128xbf16>
    %cst_112 = arith.constant dense<0.000000e+00> : vector<32x128xf32>
    %267 = tpu.matmul %266, %265, %cst_112 {dimension_numbers = #tpu.dot_dimension_numbers<[1], [0], [0], [1], [0, 0, 1, 1], [], []>} : vector<32x128xbf16>, vector<128x128xbf16>, vector<32x128xf32> -> vector<32x128xf32>
    %268 = vector.shape_cast %257 : vector<2x16x128xf32> to vector<32x128xf32>
    %269 = vector.extract_strided_slice %173 {offsets = [1, 0, 0], sizes = [1, 128, 128], strides = [1, 1, 1]} : vector<3x128x128xbf16> to vector<1x128x128xbf16>
    %270 = vector.shape_cast %269 : vector<1x128x128xbf16> to vector<128x128xbf16>
    %271 = arith.truncf %268 : vector<32x128xf32> to vector<32x128xbf16>
    %cst_113 = arith.constant dense<0.000000e+00> : vector<32x128xf32>
    %272 = tpu.matmul %271, %270, %cst_113 {dimension_numbers = #tpu.dot_dimension_numbers<[1], [0], [0], [1], [0, 0, 1, 1], [], []>} : vector<32x128xbf16>, vector<128x128xbf16>, vector<32x128xf32> -> vector<32x128xf32>
    %273 = arith.addf %267, %272 : vector<32x128xf32>
    %274 = vector.shape_cast %262 : vector<2x16x128xf32> to vector<32x128xf32>
    %275 = vector.extract_strided_slice %173 {offsets = [2, 0, 0], sizes = [1, 128, 128], strides = [1, 1, 1]} : vector<3x128x128xbf16> to vector<1x128x128xbf16>
    %276 = vector.shape_cast %275 : vector<1x128x128xbf16> to vector<128x128xbf16>
    %277 = arith.truncf %274 : vector<32x128xf32> to vector<32x128xbf16>
    %cst_114 = arith.constant dense<0.000000e+00> : vector<32x128xf32>
    %278 = tpu.matmul %277, %276, %cst_114 {dimension_numbers = #tpu.dot_dimension_numbers<[1], [0], [0], [1], [0, 0, 1, 1], [], []>} : vector<32x128xbf16>, vector<128x128xbf16>, vector<32x128xf32> -> vector<32x128xf32>
    %279 = arith.addf %273, %278 : vector<32x128xf32>
    %280 = vector.shape_cast %279 : vector<32x128xf32> to vector<2x16x128xf32>
    %281 = vector.shape_cast %174 : vector<1x128xf32> to vector<1x1x128xf32>
    %282 = vector.broadcast %281 : vector<1x1x128xf32> to vector<2x16x128xf32>
    %283 = arith.addf %280, %282 : vector<2x16x128xf32>
    %cst_115 = arith.constant dense<0.000000e+00> : vector<128xf32>
    %284 = vector.multi_reduction <add>, %283, %cst_115 [0, 1] : vector<2x16x128xf32> to vector<128xf32>
    %285 = vector.shape_cast %284 : vector<128xf32> to vector<1x1x128xf32>
    %cst_116 = arith.constant 3.125000e-02 : f32
    %286 = vector.broadcast %cst_116 : f32 to vector<1x1x128xf32>
    %287 = arith.mulf %285, %286 : vector<1x1x128xf32>
    %288 = vector.broadcast %287 : vector<1x1x128xf32> to vector<2x16x128xf32>
    %289 = arith.subf %283, %288 : vector<2x16x128xf32>
    %290 = arith.mulf %289, %289 : vector<2x16x128xf32>
    %cst_117 = arith.constant dense<0.000000e+00> : vector<128xf32>
    %291 = vector.multi_reduction <add>, %290, %cst_117 [0, 1] : vector<2x16x128xf32> to vector<128xf32>
    %292 = vector.shape_cast %291 : vector<128xf32> to vector<1x1x128xf32>
    %cst_118 = arith.constant 3.125000e-02 : f32
    %293 = vector.broadcast %cst_118 : f32 to vector<1x1x128xf32>
    %294 = arith.mulf %292, %293 : vector<1x1x128xf32>
    %295 = vector.shape_cast %175 : vector<1x128xf32> to vector<1x1x128xf32>
    %cst_119 = arith.constant 9.99999974E-6 : f32
    %296 = vector.broadcast %cst_119 : f32 to vector<1x1x128xf32>
    %297 = arith.addf %294, %296 : vector<1x1x128xf32>
    %298 = math.rsqrt %297 : vector<1x1x128xf32>
    %299 = arith.mulf %295, %298 : vector<1x1x128xf32>
    %300 = vector.broadcast %299 : vector<1x1x128xf32> to vector<2x16x128xf32>
    %301 = arith.mulf %289, %300 : vector<2x16x128xf32>
    %302 = vector.shape_cast %176 : vector<1x128xf32> to vector<1x1x128xf32>
    %303 = vector.broadcast %302 : vector<1x1x128xf32> to vector<2x16x128xf32>
    %304 = arith.addf %301, %303 : vector<2x16x128xf32>
    %305 = arith.addf %304, %208 : vector<2x16x128xf32>
    %cst_120 = arith.constant 0.000000e+00 : f32
    %306 = vector.broadcast %cst_120 : f32 to vector<2x16x128xf32>
    %307 = arith.maximumf %305, %306 : vector<2x16x128xf32>
    %c0_121 = arith.constant 0 : index
    %c0_122 = arith.constant 0 : index
    %308 = vector.load %arg29[%c0_121, %c0_122] : memref<128x8xbf16, #tpu.memory_space<vmem>>, vector<128x8xbf16>
    %c0_123 = arith.constant 0 : index
    %c0_124 = arith.constant 0 : index
    %309 = vector.load %arg30[%c0_123, %c0_124] : memref<8x128xbf16, #tpu.memory_space<vmem>>, vector<8x128xbf16>
    %cst_125 = arith.constant dense<0.000000e+00> : vector<2x128xf32>
    %310 = vector.multi_reduction <add>, %307, %cst_125 [1] : vector<2x16x128xf32> to vector<2x128xf32>
    %cst_126 = arith.constant 1.600000e+01 : f32
    %311 = vector.broadcast %cst_126 : f32 to vector<2x128xf32>
    %312 = arith.divf %310, %311 : vector<2x128xf32>
    %313 = arith.truncf %312 : vector<2x128xf32> to vector<2x128xbf16>
    %cst_127 = arith.constant dense<0.000000e+00> : vector<2x8xf32>
    %314 = tpu.matmul %313, %308, %cst_127 {dimension_numbers = #tpu.dot_dimension_numbers<[1], [0], [0], [1], [0, 0, 1, 1], [], []>} : vector<2x128xbf16>, vector<128x8xbf16>, vector<2x8xf32> -> vector<2x8xf32>
    %cst_128 = arith.constant 0.000000e+00 : f32
    %315 = vector.broadcast %cst_128 : f32 to vector<2x8xf32>
    %316 = arith.maximumf %314, %315 : vector<2x8xf32>
    %317 = arith.truncf %316 : vector<2x8xf32> to vector<2x8xbf16>
    %cst_129 = arith.constant dense<0.000000e+00> : vector<2x128xf32>
    %318 = tpu.matmul %317, %309, %cst_129 {dimension_numbers = #tpu.dot_dimension_numbers<[1], [0], [0], [1], [0, 0, 1, 1], [], []>} : vector<2x8xbf16>, vector<8x128xbf16>, vector<2x128xf32> -> vector<2x128xf32>
    %cst_130 = arith.constant 0.000000e+00 : f32
    %319 = vector.broadcast %cst_130 : f32 to vector<2x128xf32>
    %320 = arith.subf %319, %318 : vector<2x128xf32>
    %321 = math.exp %320 : vector<2x128xf32>
    %cst_131 = arith.constant 1.000000e+00 : f32
    %322 = vector.broadcast %cst_131 : f32 to vector<2x128xf32>
    %323 = arith.addf %322, %321 : vector<2x128xf32>
    %324 = tpu.reciprocal %323 {approx = true} : vector<2x128xf32> -> vector<2x128xf32>
    %325 = vector.shape_cast %324 : vector<2x128xf32> to vector<2x1x128xf32>
    %326 = vector.broadcast %325 : vector<2x1x128xf32> to vector<2x16x128xf32>
    %327 = arith.mulf %307, %326 : vector<2x16x128xf32>
    %328 = vector.shape_cast %327 : vector<2x16x128xf32> to vector<32x128xf32>
    %c0_132 = arith.constant 0 : index
    %c0_133 = arith.constant 0 : index
    %329 = vector.load %arg31[%c0_132, %c0_133] : memref<128x384xbf16, #tpu.memory_space<vmem>>, vector<128x384xbf16>
    %330 = arith.truncf %328 : vector<32x128xf32> to vector<32x128xbf16>
    %cst_134 = arith.constant dense<0.000000e+00> : vector<32x384xf32>
    %331 = tpu.matmul %330, %329, %cst_134 {dimension_numbers = #tpu.dot_dimension_numbers<[1], [0], [0], [1], [0, 0, 1, 1], [], []>} : vector<32x128xbf16>, vector<128x384xbf16>, vector<32x384xf32> -> vector<32x384xf32>
    %c0_135 = arith.constant 0 : index
    %c0_136 = arith.constant 0 : index
    %332 = vector.load %arg32[%c0_135, %c0_136] : memref<1x384xf32, #tpu.memory_space<vmem>>, vector<1x384xf32>
    %333 = vector.broadcast %332 : vector<1x384xf32> to vector<32x384xf32>
    %334 = arith.addf %331, %333 : vector<32x384xf32>
    %335 = vector.shape_cast %334 : vector<32x384xf32> to vector<2x16x384xf32>
    %336 = vector.extract_strided_slice %335 {offsets = [0, 0, 0], sizes = [2, 16, 128], strides = [1, 1, 1]} : vector<2x16x384xf32> to vector<2x16x128xf32>
    %337 = vector.extract_strided_slice %335 {offsets = [0, 0, 128], sizes = [2, 16, 128], strides = [1, 1, 1]} : vector<2x16x384xf32> to vector<2x16x128xf32>
    %338 = vector.extract_strided_slice %335 {offsets = [0, 0, 256], sizes = [2, 16, 128], strides = [1, 1, 1]} : vector<2x16x384xf32> to vector<2x16x128xf32>
    %339 = arith.truncf %336 : vector<2x16x128xf32> to vector<2x16x128xbf16>
    %340 = arith.truncf %337 : vector<2x16x128xf32> to vector<2x16x128xbf16>
    %cst_137 = arith.constant dense<0.000000e+00> : vector<2x16x16xf32>
    %341 = tpu.matmul %339, %340, %cst_137 {dimension_numbers = #tpu.dot_dimension_numbers<[2], [2], [1], [1], [0, 0, 0, 1, 1, 1], [0], [0]>} : vector<2x16x128xbf16>, vector<2x16x128xbf16>, vector<2x16x16xf32> -> vector<2x16x16xf32>
    %cst_138 = arith.constant 0.0883883461 : f32
    %342 = vector.broadcast %cst_138 : f32 to vector<2x16x16xf32>
    %343 = arith.mulf %341, %342 : vector<2x16x16xf32>
    %cst_139 = arith.constant dense<0xFF800000> : vector<2x16xf32>
    %344 = vector.multi_reduction <maximumf>, %343, %cst_139 [2] : vector<2x16x16xf32> to vector<2x16xf32>
    %345 = vector.shape_cast %344 : vector<2x16xf32> to vector<2x16x1xf32>
    %346 = vector.broadcast %345 : vector<2x16x1xf32> to vector<2x16x16xf32>
    %347 = arith.subf %343, %346 : vector<2x16x16xf32>
    %348 = math.exp %347 : vector<2x16x16xf32>
    %cst_140 = arith.constant dense<0.000000e+00> : vector<2x16xf32>
    %349 = vector.multi_reduction <add>, %348, %cst_140 [2] : vector<2x16x16xf32> to vector<2x16xf32>
    %350 = vector.shape_cast %349 : vector<2x16xf32> to vector<2x16x1xf32>
    %351 = tpu.reciprocal %350 {approx = true} : vector<2x16x1xf32> -> vector<2x16x1xf32>
    %352 = vector.broadcast %351 : vector<2x16x1xf32> to vector<2x16x16xf32>
    %353 = arith.mulf %348, %352 : vector<2x16x16xf32>
    %354 = arith.truncf %353 : vector<2x16x16xf32> to vector<2x16x16xbf16>
    %355 = arith.truncf %338 : vector<2x16x128xf32> to vector<2x16x128xbf16>
    %cst_141 = arith.constant dense<0.000000e+00> : vector<2x16x128xf32>
    %356 = tpu.matmul %354, %355, %cst_141 {dimension_numbers = #tpu.dot_dimension_numbers<[2], [1], [1], [2], [0, 0, 0, 1, 1, 2], [0], [0]>} : vector<2x16x16xbf16>, vector<2x16x128xbf16>, vector<2x16x128xf32> -> vector<2x16x128xf32>
    %357 = arith.addf %356, %327 : vector<2x16x128xf32>
    %cst_142 = arith.constant dense<0.000000e+00> : vector<2x128xf32>
    %358 = vector.multi_reduction <add>, %357, %cst_142 [1] : vector<2x16x128xf32> to vector<2x128xf32>
    %cst_143 = arith.constant 1.600000e+01 : f32
    %359 = vector.broadcast %cst_143 : f32 to vector<2x128xf32>
    %360 = arith.divf %358, %359 : vector<2x128xf32>
    %cst_144 = arith.constant dense<0xFF800000> : vector<2x128xf32>
    %361 = vector.multi_reduction <maximumf>, %357, %cst_144 [1] : vector<2x16x128xf32> to vector<2x128xf32>
    %362 = tpu.concatenate %360, %361 in 1 : vector<2x128xf32>, vector<2x128xf32> -> vector<2x256xf32>
    %c0_145 = arith.constant 0 : index
    %c0_146 = arith.constant 0 : index
    %363 = vector.load %arg33[%c0_145, %c0_146] : memref<256x128xbf16, #tpu.memory_space<vmem>>, vector<256x128xbf16>
    %364 = arith.truncf %362 : vector<2x256xf32> to vector<2x256xbf16>
    %cst_147 = arith.constant dense<0.000000e+00> : vector<2x128xf32>
    %365 = tpu.matmul %364, %363, %cst_147 {dimension_numbers = #tpu.dot_dimension_numbers<[1], [0], [0], [1], [0, 0, 1, 1], [], []>} : vector<2x256xbf16>, vector<256x128xbf16>, vector<2x128xf32> -> vector<2x128xf32>
    %c0_148 = arith.constant 0 : index
    %c0_149 = arith.constant 0 : index
    %366 = vector.load %arg34[%c0_148, %c0_149] : memref<1x128xf32, #tpu.memory_space<vmem>>, vector<1x128xf32>
    %367 = vector.broadcast %366 : vector<1x128xf32> to vector<2x128xf32>
    %368 = arith.addf %365, %367 : vector<2x128xf32>
    %cst_150 = arith.constant dense<0.000000e+00> : vector<2xf32>
    %369 = vector.multi_reduction <add>, %368, %cst_150 [1] : vector<2x128xf32> to vector<2xf32>
    %370 = vector.shape_cast %369 : vector<2xf32> to vector<2x1xf32>
    %cst_151 = arith.constant 1.280000e+02 : f32
    %371 = vector.broadcast %cst_151 : f32 to vector<2x1xf32>
    %372 = arith.divf %370, %371 : vector<2x1xf32>
    %373 = vector.broadcast %372 : vector<2x1xf32> to vector<2x128xf32>
    %374 = arith.subf %368, %373 : vector<2x128xf32>
    %375 = vector.broadcast %372 : vector<2x1xf32> to vector<2x128xf32>
    %376 = arith.subf %368, %375 : vector<2x128xf32>
    %377 = arith.mulf %374, %376 : vector<2x128xf32>
    %cst_152 = arith.constant dense<0.000000e+00> : vector<2xf32>
    %378 = vector.multi_reduction <add>, %377, %cst_152 [1] : vector<2x128xf32> to vector<2xf32>
    %379 = vector.shape_cast %378 : vector<2xf32> to vector<2x1xf32>
    %cst_153 = arith.constant 1.280000e+02 : f32
    %380 = vector.broadcast %cst_153 : f32 to vector<2x1xf32>
    %381 = arith.divf %379, %380 : vector<2x1xf32>
    %382 = vector.broadcast %372 : vector<2x1xf32> to vector<2x128xf32>
    %383 = arith.subf %368, %382 : vector<2x128xf32>
    %cst_154 = arith.constant 9.99999974E-6 : f32
    %384 = vector.broadcast %cst_154 : f32 to vector<2x1xf32>
    %385 = arith.addf %381, %384 : vector<2x1xf32>
    %386 = math.rsqrt %385 : vector<2x1xf32>
    %387 = vector.broadcast %386 : vector<2x1xf32> to vector<2x128xf32>
    %388 = arith.mulf %383, %387 : vector<2x128xf32>
    %c0_155 = arith.constant 0 : index
    %c0_156 = arith.constant 0 : index
    %389 = vector.load %arg35[%c0_155, %c0_156] : memref<1x128xf32, #tpu.memory_space<vmem>>, vector<1x128xf32>
    %390 = vector.broadcast %389 : vector<1x128xf32> to vector<2x128xf32>
    %391 = arith.mulf %388, %390 : vector<2x128xf32>
    %c0_157 = arith.constant 0 : index
    %c0_158 = arith.constant 0 : index
    %392 = vector.load %arg36[%c0_157, %c0_158] : memref<1x128xf32, #tpu.memory_space<vmem>>, vector<1x128xf32>
    %393 = vector.broadcast %392 : vector<1x128xf32> to vector<2x128xf32>
    %394 = arith.addf %391, %393 : vector<2x128xf32>
    %cst_159 = arith.constant 0.000000e+00 : f32
    %395 = vector.broadcast %cst_159 : f32 to vector<2x128xf32>
    %396 = arith.maximumf %394, %395 : vector<2x128xf32>
    %c0_160 = arith.constant 0 : index
    %c0_161 = arith.constant 0 : index
    %397 = vector.load %arg37[%c0_160, %c0_161] : memref<2x128xf32, #tpu.memory_space<vmem>>, vector<2x128xf32>
    tpu.vector_store %arg37[%c0_160, %c0_161], %396 {strides = array<i32>} : memref<2x128xf32, #tpu.memory_space<vmem>>, vector<2x128xf32>,
    return
  }
}

</mosaic_0001>

<llo_original>
// kernel: emg_encoder_forward.1
$region0: #{emg_encoder_forward.1}
  #allocation0 [shape = 'u32[]', space=smem, size = 0x4, offset = 0x4, fixed_abs, tag = 'smem constant byte address 0x4 - core index']
  #allocation1 [shape = 'u32[144,128]{1,0:T(1,128)}', space=vmem, size = 0x12000, scoped, tag = 'internal scratch']
  %s0 = inlined_call_operand.smem [shape: u32[38], index: -1, kind: input, shape index: {}]
  %s1 = sld [smem:[%s0]]
  %s2 = scalar_lea.smem %s0, 1
  %s3 = sld [smem:[%s2]]
  %s4 = scalar_lea.smem %s0, 2
  %s5 = sld [smem:[%s4]]
  %s6 = scalar_lea.smem %s0, 3
  %s7 = sld [smem:[%s6]]
  %s8 = scalar_lea.smem %s0, 4
  %s9 = sld [smem:[%s8]]
  %s10 = scalar_lea.smem %s0, 5
  %s11 = sld [smem:[%s10]]
  %s12 = scalar_lea.smem %s0, 6
  %s13 = sld [smem:[%s12]]
  %s14 = scalar_lea.smem %s0, 7
  %s15 = sld [smem:[%s14]]
  %s16 = scalar_lea.smem %s0, 8
  %s17 = sld [smem:[%s16]]
  %s18 = scalar_lea.smem %s0, 9
  %s19 = sld [smem:[%s18]]
  %s20 = scalar_lea.smem %s0, 10
  %s21 = sld [smem:[%s20]]
  %s22 = scalar_lea.smem %s0, 11
  %s23 = sld [smem:[%s22]]
  %s24 = scalar_lea.smem %s0, 12
  %s25 = sld [smem:[%s24]]
  %s26 = scalar_lea.smem %s0, 13
  %s27 = sld [smem:[%s26]]
  %s28 = scalar_lea.smem %s0, 14
  %s29 = sld [smem:[%s28]]
  %s30 = scalar_lea.smem %s0, 15
  %s31 = sld [smem:[%s30]]
  %s32 = scalar_lea.smem %s0, 16
  %s33 = sld [smem:[%s32]]
  %s34 = scalar_lea.smem %s0, 17
  %s35 = sld [smem:[%s34]]
  %s36 = scalar_lea.smem %s0, 18
  %s37 = sld [smem:[%s36]]
  %s38 = scalar_lea.smem %s0, 19
  %s39 = sld [smem:[%s38]]
  %s40 = scalar_lea.smem %s0, 20
  %s41 = sld [smem:[%s40]]
  %s42 = scalar_lea.smem %s0, 21
  %s43 = sld [smem:[%s42]]
  %s44 = scalar_lea.smem %s0, 22
  %s45 = sld [smem:[%s44]]
  %s46 = scalar_lea.smem %s0, 23
  %s47 = sld [smem:[%s46]]
  %s48 = scalar_lea.smem %s0, 24
  %s49 = sld [smem:[%s48]]
  %s50 = scalar_lea.smem %s0, 25
  %s51 = sld [smem:[%s50]]
  %s52 = scalar_lea.smem %s0, 26
  %s53 = sld [smem:[%s52]]
  %s54 = scalar_lea.smem %s0, 27
  %s55 = sld [smem:[%s54]]
  %s56 = scalar_lea.smem %s0, 28
  %s57 = sld [smem:[%s56]]
  %s58 = scalar_lea.smem %s0, 29
  %s59 = sld [smem:[%s58]]
  %s60 = scalar_lea.smem %s0, 30
  %s61 = sld [smem:[%s60]]
  %s62 = scalar_lea.smem %s0, 31
  %s63 = sld [smem:[%s62]]
  %s64 = scalar_lea.smem %s0, 32
  %s65 = sld [smem:[%s64]]
  %s66 = scalar_lea.smem %s0, 33
  %s67 = sld [smem:[%s66]]
  %s68 = scalar_lea.smem %s0, 34
  %s69 = sld [smem:[%s68]]
  %s70 = scalar_lea.smem %s0, 35
  %s71 = sld [smem:[%s70]]
  %s72 = scalar_lea.smem %s0, 36
  %s73 = sld [smem:[%s72]]
  %s74 = scalar_lea.smem %s0, 37
  %s75 = sld [smem:[%s74]]
  %s76 = sld [smem:[#allocation0]]
  $region158: #{emg_encoder_forward.1} parent=0
    _
  %s78 = ssub.s32 1, %s76
  %s79 = scalar_select 0, %s78, %s76
  $region1: #{emg_encoder_forward.1} parent=0
    #allocation2 [shape = 'u8[1024]{0}', space=vmem, size = 0x400, scoped, tag = 'output window, operand 0, single buffered']
    #allocation3 [shape = 's32[1]{0}', space=sflag, size = 0x4, scoped, tag = 'scoped memory for emg_encoder_forward.1']
    %80 = vsyncpa [#allocation3], 0
    // Predicated region
    $region2: #{emg_encoder_forward.1} parent=1 // pred_check
      _
    $region3: #{emg_encoder_forward.1} parent=1 // pred_check_branch
      %82 = sbr.rel (0) target = $region5
    $region4: #{emg_encoder_forward.1} parent=1 // pred_region
      _
    $region5: #{emg_encoder_forward.1} parent=1 // pred_fallthru
      _
    // Predicated region
    $region6: #{emg_encoder_forward.1} parent=1 // pred_check
      _
    $region7: #{emg_encoder_forward.1} parent=1 // pred_check_branch
      %84 = sbr.rel (0) target = $region9
    $region8: #{emg_encoder_forward.1} parent=1 // pred_region
      _
    $region9: #{emg_encoder_forward.1} parent=1 // pred_fallthru
      _
    // Predicated region
    $region10: #{emg_encoder_forward.1} parent=1 // pred_check
      _
    $region11: #{emg_encoder_forward.1} parent=1 // pred_check_branch
      %86 = sbr.rel (0) target = $region13
    $region12: #{emg_encoder_forward.1} parent=1 // pred_region
      _
    $region13: #{emg_encoder_forward.1} parent=1 // pred_fallthru
      _
    // Predicated region
    $region14: #{emg_encoder_forward.1} parent=1 // pred_check
      _
    $region15: #{emg_encoder_forward.1} parent=1 // pred_check_branch
      %88 = sbr.rel (0) target = $region17
    $region16: #{emg_encoder_forward.1} parent=1 // pred_region
      _
    $region17: #{emg_encoder_forward.1} parent=1 // pred_fallthru
      _
    // Predicated region
    $region18: #{emg_encoder_forward.1} parent=1 // pred_check
      _
    $region19: #{emg_encoder_forward.1} parent=1 // pred_check_branch
      %90 = sbr.rel (0) target = $region21
    $region20: #{emg_encoder_forward.1} parent=1 // pred_region
      _
    $region21: #{emg_encoder_forward.1} parent=1 // pred_fallthru
      _
    // Predicated region
    $region22: #{emg_encoder_forward.1} parent=1 // pred_check
      _
    $region23: #{emg_encoder_forward.1} parent=1 // pred_check_branch
      %92 = sbr.rel (0) target = $region25
    $region24: #{emg_encoder_forward.1} parent=1 // pred_region
      _
    $region25: #{emg_encoder_forward.1} parent=1 // pred_fallthru
      _
    // Predicated region
    $region26: #{emg_encoder_forward.1} parent=1 // pred_check
      _
    $region27: #{emg_encoder_forward.1} parent=1 // pred_check_branch
      %94 = sbr.rel (0) target = $region29
    $region28: #{emg_encoder_forward.1} parent=1 // pred_region
      _
    $region29: #{emg_encoder_forward.1} parent=1 // pred_fallthru
      _
    // Predicated region
    $region30: #{emg_encoder_forward.1} parent=1 // pred_check
      _
    $region31: #{emg_encoder_forward.1} parent=1 // pred_check_branch
      %96 = sbr.rel (0) target = $region33
    $region32: #{emg_encoder_forward.1} parent=1 // pred_region
      _
    $region33: #{emg_encoder_forward.1} parent=1 // pred_fallthru
      _
    // Predicated region
    $region34: #{emg_encoder_forward.1} parent=1 // pred_check
      _
    $region35: #{emg_encoder_forward.1} parent=1 // pred_check_branch
      %98 = sbr.rel (0) target = $region37
    $region36: #{emg_encoder_forward.1} parent=1 // pred_region
      _
    $region37: #{emg_encoder_forward.1} parent=1 // pred_fallthru
      _
    // Predicated region
    $region38: #{emg_encoder_forward.1} parent=1 // pred_check
      _
    $region39: #{emg_encoder_forward.1} parent=1 // pred_check_branch
      %100 = sbr.rel (0) target = $region41
    $region40: #{emg_encoder_forward.1} parent=1 // pred_region
      _
    $region41: #{emg_encoder_forward.1} parent=1 // pred_fallthru
      _
    // Predicated region
    $region42: #{emg_encoder_forward.1} parent=1 // pred_check
      _
    $region43: #{emg_encoder_forward.1} parent=1 // pred_check_branch
      %102 = sbr.rel (0) target = $region45
    $region44: #{emg_encoder_forward.1} parent=1 // pred_region
      _
    $region45: #{emg_encoder_forward.1} parent=1 // pred_fallthru
      _
    // Predicated region
    $region46: #{emg_encoder_forward.1} parent=1 // pred_check
      _
    $region47: #{emg_encoder_forward.1} parent=1 // pred_check_branch
      %104 = sbr.rel (0) target = $region49
    $region48: #{emg_encoder_forward.1} parent=1 // pred_region
      _
    $region49: #{emg_encoder_forward.1} parent=1 // pred_fallthru
      _
    // Predicated region
    $region50: #{emg_encoder_forward.1} parent=1 // pred_check
      _
    $region51: #{emg_encoder_forward.1} parent=1 // pred_check_branch
      %106 = sbr.rel (0) target = $region53
    $region52: #{emg_encoder_forward.1} parent=1 // pred_region
      _
    $region53: #{emg_encoder_forward.1} parent=1 // pred_fallthru
      _
    // Predicated region
    $region54: #{emg_encoder_forward.1} parent=1 // pred_check
      _
    $region55: #{emg_encoder_forward.1} parent=1 // pred_check_branch
      %108 = sbr.rel (0) target = $region57
    $region56: #{emg_encoder_forward.1} parent=1 // pred_region
      _
    $region57: #{emg_encoder_forward.1} parent=1 // pred_fallthru
      _
    // Predicated region
    $region58: #{emg_encoder_forward.1} parent=1 // pred_check
      _
    $region59: #{emg_encoder_forward.1} parent=1 // pred_check_branch
      %110 = sbr.rel (0) target = $region61
    $region60: #{emg_encoder_forward.1} parent=1 // pred_region
      _
    $region61: #{emg_encoder_forward.1} parent=1 // pred_fallthru
      _
    // Predicated region
    $region62: #{emg_encoder_forward.1} parent=1 // pred_check
      _
    $region63: #{emg_encoder_forward.1} parent=1 // pred_check_branch
      %112 = sbr.rel (0) target = $region65
    $region64: #{emg_encoder_forward.1} parent=1 // pred_region
      _
    $region65: #{emg_encoder_forward.1} parent=1 // pred_fallthru
      _
    // Predicated region
    $region66: #{emg_encoder_forward.1} parent=1 // pred_check
      _
    $region67: #{emg_encoder_forward.1} parent=1 // pred_check_branch
      %114 = sbr.rel (0) target = $region69
    $region68: #{emg_encoder_forward.1} parent=1 // pred_region
      _
    $region69: #{emg_encoder_forward.1} parent=1 // pred_fallthru
      _
    // Predicated region
    $region70: #{emg_encoder_forward.1} parent=1 // pred_check
      _
    $region71: #{emg_encoder_forward.1} parent=1 // pred_check_branch
      %116 = sbr.rel (0) target = $region73
    $region72: #{emg_encoder_forward.1} parent=1 // pred_region
      _
    $region73: #{emg_encoder_forward.1} parent=1 // pred_fallthru
      _
    // Predicated region
    $region74: #{emg_encoder_forward.1} parent=1 // pred_check
      _
    $region75: #{emg_encoder_forward.1} parent=1 // pred_check_branch
      %118 = sbr.rel (0) target = $region77
    $region76: #{emg_encoder_forward.1} parent=1 // pred_region
      _
    $region77: #{emg_encoder_forward.1} parent=1 // pred_fallthru
      _
    // Predicated region
    $region78: #{emg_encoder_forward.1} parent=1 // pred_check
      _
    $region79: #{emg_encoder_forward.1} parent=1 // pred_check_branch
      %120 = sbr.rel (0) target = $region81
    $region80: #{emg_encoder_forward.1} parent=1 // pred_region
      _
    $region81: #{emg_encoder_forward.1} parent=1 // pred_fallthru
      _
    // Predicated region
    $region82: #{emg_encoder_forward.1} parent=1 // pred_check
      _
    $region83: #{emg_encoder_forward.1} parent=1 // pred_check_branch
      %122 = sbr.rel (0) target = $region85
    $region84: #{emg_encoder_forward.1} parent=1 // pred_region
      _
    $region85: #{emg_encoder_forward.1} parent=1 // pred_fallthru
      _
    // Predicated region
    $region86: #{emg_encoder_forward.1} parent=1 // pred_check
      _
    $region87: #{emg_encoder_forward.1} parent=1 // pred_check_branch
      %124 = sbr.rel (0) target = $region89
    $region88: #{emg_encoder_forward.1} parent=1 // pred_region
      _
    $region89: #{emg_encoder_forward.1} parent=1 // pred_fallthru
      _
    // Predicated region
    $region90: #{emg_encoder_forward.1} parent=1 // pred_check
      _
    $region91: #{emg_encoder_forward.1} parent=1 // pred_check_branch
      %126 = sbr.rel (0) target = $region93
    $region92: #{emg_encoder_forward.1} parent=1 // pred_region
      _
    $region93: #{emg_encoder_forward.1} parent=1 // pred_fallthru
      _
    // Predicated region
    $region94: #{emg_encoder_forward.1} parent=1 // pred_check
      _
    $region95: #{emg_encoder_forward.1} parent=1 // pred_check_branch
      %128 = sbr.rel (0) target = $region97
    $region96: #{emg_encoder_forward.1} parent=1 // pred_region
      _
    $region97: #{emg_encoder_forward.1} parent=1 // pred_fallthru
      _
    // Predicated region
    $region98: #{emg_encoder_forward.1} parent=1 // pred_check
      _
    $region99: #{emg_encoder_forward.1} parent=1 // pred_check_branch
      %130 = sbr.rel (0) target = $region101
    $region100: #{emg_encoder_forward.1} parent=1 // pred_region
      _
    $region101: #{emg_encoder_forward.1} parent=1 // pred_fallthru
      _
    // Predicated region
    $region102: #{emg_encoder_forward.1} parent=1 // pred_check
      _
    $region103: #{emg_encoder_forward.1} parent=1 // pred_check_branch
      %132 = sbr.rel (0) target = $region105
    $region104: #{emg_encoder_forward.1} parent=1 // pred_region
      _
    $region105: #{emg_encoder_forward.1} parent=1 // pred_fallthru
      _
    // Predicated region
    $region106: #{emg_encoder_forward.1} parent=1 // pred_check
      _
    $region107: #{emg_encoder_forward.1} parent=1 // pred_check_branch
      %134 = sbr.rel (0) target = $region109
    $region108: #{emg_encoder_forward.1} parent=1 // pred_region
      _
    $region109: #{emg_encoder_forward.1} parent=1 // pred_fallthru
      _
    // Predicated region
    $region110: #{emg_encoder_forward.1} parent=1 // pred_check
      _
    $region111: #{emg_encoder_forward.1} parent=1 // pred_check_branch
      %136 = sbr.rel (0) target = $region113
    $region112: #{emg_encoder_forward.1} parent=1 // pred_region
      _
    $region113: #{emg_encoder_forward.1} parent=1 // pred_fallthru
      _
    // Predicated region
    $region114: #{emg_encoder_forward.1} parent=1 // pred_check
      _
    $region115: #{emg_encoder_forward.1} parent=1 // pred_check_branch
      %138 = sbr.rel (0) target = $region117
    $region116: #{emg_encoder_forward.1} parent=1 // pred_region
      _
    $region117: #{emg_encoder_forward.1} parent=1 // pred_fallthru
      _
    // Predicated region
    $region118: #{emg_encoder_forward.1} parent=1 // pred_check
      _
    $region119: #{emg_encoder_forward.1} parent=1 // pred_check_branch
      %140 = sbr.rel (0) target = $region121
    $region120: #{emg_encoder_forward.1} parent=1 // pred_region
      _
    $region121: #{emg_encoder_forward.1} parent=1 // pred_fallthru
      _
    // Predicated region
    $region122: #{emg_encoder_forward.1} parent=1 // pred_check
      _
    $region123: #{emg_encoder_forward.1} parent=1 // pred_check_branch
      %142 = sbr.rel (0) target = $region125
    $region124: #{emg_encoder_forward.1} parent=1 // pred_region
      _
    $region125: #{emg_encoder_forward.1} parent=1 // pred_fallthru
      _
    // Predicated region
    $region126: #{emg_encoder_forward.1} parent=1 // pred_check
      _
    $region127: #{emg_encoder_forward.1} parent=1 // pred_check_branch
      %144 = sbr.rel (0) target = $region129
    $region128: #{emg_encoder_forward.1} parent=1 // pred_region
      _
    $region129: #{emg_encoder_forward.1} parent=1 // pred_fallthru
      _
    // Predicated region
    $region130: #{emg_encoder_forward.1} parent=1 // pred_check
      _
    $region131: #{emg_encoder_forward.1} parent=1 // pred_check_branch
      %146 = sbr.rel (0) target = $region133
    $region132: #{emg_encoder_forward.1} parent=1 // pred_region
      _
    $region133: #{emg_encoder_forward.1} parent=1 // pred_fallthru
      _
    // Predicated region
    $region134: #{emg_encoder_forward.1} parent=1 // pred_check
      _
    $region135: #{emg_encoder_forward.1} parent=1 // pred_check_branch
      %148 = sbr.rel (0) target = $region137
    $region136: #{emg_encoder_forward.1} parent=1 // pred_region
      _
    $region137: #{emg_encoder_forward.1} parent=1 // pred_fallthru
      _
    // Predicated region
    $region138: #{emg_encoder_forward.1} parent=1 // pred_check
      _
    $region139: #{emg_encoder_forward.1} parent=1 // pred_check_branch
      %150 = sbr.rel (0) target = $region141
    $region140: #{emg_encoder_forward.1} parent=1 // pred_region
      _
    $region141: #{emg_encoder_forward.1} parent=1 // pred_fallthru
      _
    // Predicated region
    $region142: #{emg_encoder_forward.1} parent=1 // pred_check
      _
    $region143: #{emg_encoder_forward.1} parent=1 // pred_check_branch
      %152 = sbr.rel (0) target = $region145
    $region144: #{emg_encoder_forward.1} parent=1 // pred_region
      _
    $region145: #{emg_encoder_forward.1} parent=1 // pred_fallthru
      _
    // Predicated region
    $region146: #{emg_encoder_forward.1} parent=1 // pred_check
      _
    $region147: #{emg_encoder_forward.1} parent=1 // pred_check_branch
      %154 = sbr.rel (0) target = $region149
    $region148: #{emg_encoder_forward.1} parent=1 // pred_region
      _
    $region149: #{emg_encoder_forward.1} parent=1 // pred_fallthru
      _
    %v156 = vld [vmem:[%s1] sm:$0xff]
    %v157 = vld [vmem:[%s1 + $0x8] sm:$0xff]
    %v158 = vld [vmem:[%s1 + $0x10] sm:$0xff]
    %v159 = vld [vmem:[%s1 + $0x18] sm:$0xff]
    %v160 = vld [vmem:[%s3] sm:$0xf]
    %v161 = vpack.c.bf16 %v157, %v156
    %v162 = vpack.c.bf16 %v159, %v158
    %vm163 = vcmask 64512
    %v165 = vsel %vm163, %v161, 0
    %v168 = vsel %vm163, %v162, 0
    %vm170 = vcmask 1043456
    %v172 = vsel %vm170, %v160, 0
    %174 = vmatprep.subr.bf16.mxu0 0
    %175 = vmatpush1.bf16.msra.mxu0 %v172
    %176 = vmatprep.subr.bf16.mxu0 0
    %177 = vmatpush1.bf16.msra.mxu0 0
    %178 = vmatprep.subr.bf16.mxu0 0
    %179 = vmatpush1.bf16.msra.mxu0 0
    %180 = vmatprep.subr.bf16.mxu0 0
    %181 = vmatpush1.bf16.msra.mxu0 0
    %182 = vmatprep.subr.bf16.mxu0 0
    %183 = vmatpush1.bf16.msra.mxu0 0
    %184 = vmatprep.subr.bf16.mxu0 0
    %185 = vmatpush1.bf16.msra.mxu0 0
    %186 = vmatprep.subr.bf16.mxu0 0
    %187 = vmatpush1.bf16.msra.mxu0 0
    %188 = vmatprep.subr.bf16.mxu0 0
    %189 = vmatpush1.bf16.msra.mxu0 0
    %190 = vmatprep.subr.bf16.mxu0 0
    %191 = vmatpush1.bf16.msra.mxu0 0
    %192 = vmatprep.subr.bf16.mxu0 0
    %193 = vmatpush1.bf16.msra.mxu0 0
    %194 = vmatprep.subr.bf16.mxu0 0
    %195 = vmatpush1.bf16.msra.mxu0 0
    %196 = vmatprep.subr.bf16.mxu0 0
    %197 = vmatpush1.bf16.msra.mxu0 0
    %198 = vmatprep.subr.bf16.mxu0 0
    %199 = vmatpush1.bf16.msra.mxu0 0
    %200 = vmatprep.subr.bf16.mxu0 0
    %201 = vmatpush1.bf16.msra.mxu0 0
    %202 = vmatprep.subr.bf16.mxu0 0
    %203 = vmatpush1.bf16.msra.mxu0 0
    %204 = vmatprep.subr.bf16.mxu0 0
    %205 = vmatpush1.bf16.msra.mxu0 0
    %206 = vmatprep.mubr.bf16.mxu0 0
    %207 = vmatmul.mubr.bf16.gmra.mrb[0].mxu0 %v165
    %v208 = vpop.f32.mrb[0].mxu0
    %v209 = vadd.f32 0.0, %v208
    %v210 = vpop.f32.mrb[0].mxu0
    %v211 = vpop.f32.mrb[0].mxu0
    %v212 = vadd.f32 0.0, %v211
    %v213 = vpop.f32.mrb[0].mxu0
    %214 = vmatprep.mubr.bf16.mxu0 0
    %215 = vmatmul.mubr.bf16.gmra.mrb[0].mxu0 %v168
    %v216 = vpop.f32.mrb[0].mxu0
    %v217 = vadd.f32 0.0, %v216
    %v218 = vpop.f32.mrb[0].mxu0
    %v219 = vpop.f32.mrb[0].mxu0
    %v220 = vadd.f32 0.0, %v219
    %v221 = vpop.f32.mrb[0].mxu0
    %222 = vdwg.mxu0
    %v223 = vld [vmem:[%s5] sm:$0x1]
    %v225 = vlaneseq
    %v226 = vshrl.u32 %v225, 7
    %v227 = vsub.s32 0, %v226
    %v228 = vrot.slane %v223, %v227
    %v230 = vadd.f32 %v209, %v228
    %v231 = vadd.f32 %v212, %v228
    %v232 = vadd.f32 %v217, %v228
    %v233 = vadd.f32 %v220, %v228
    %v234 = vld [vmem:[%s7] sm:$0xf]
    %v235 = vld [vmem:[%s7 + $0x4] sm:$0xf]
    %v236 = vld [vmem:[%s7 + $0x8] sm:$0xf]
    %v237 = vld [vmem:[%s7 + $0xc] sm:$0xf]
    %v238 = vld [vmem:[%s7 + $0x10] sm:$0xf]
    %v239 = vld [vmem:[%s7 + $0x14] sm:$0xf]
    %v240 = vld [vmem:[%s7 + $0x18] sm:$0xf]
    %v241 = vld [vmem:[%s7 + $0x1c] sm:$0xf]
    %v242 = vld [vmem:[%s7 + $0x20] sm:$0xf]
    %v243 = vld [vmem:[%s7 + $0x24] sm:$0xf]
    %v244 = vld [vmem:[%s7 + $0x28] sm:$0xf]
    %v245 = vld [vmem:[%s7 + $0x2c] sm:$0xf]
    %v246 = vld [vmem:[%s9] sm:$0x1]
    %v247 = vld [vmem:[%s11] sm:$0x1]
    %v248 = vld [vmem:[%s13] sm:$0x1]
    %v249 = vld [vmem:[%s15] sm:$0xf]
    %v250 = vld [vmem:[%s15 + $0x4] sm:$0xf]
    %v251 = vld [vmem:[%s15 + $0x8] sm:$0xf]
    %v252 = vld [vmem:[%s15 + $0xc] sm:$0xf]
    %v253 = vld [vmem:[%s15 + $0x10] sm:$0xf]
    %v254 = vld [vmem:[%s15 + $0x14] sm:$0xf]
    %v255 = vld [vmem:[%s15 + $0x18] sm:$0xf]
    %v256 = vld [vmem:[%s15 + $0x1c] sm:$0xf]
    %v257 = vld [vmem:[%s15 + $0x20] sm:$0xf]
    %v258 = vld [vmem:[%s15 + $0x24] sm:$0xf]
    %v259 = vld [vmem:[%s15 + $0x28] sm:$0xf]
    %v260 = vld [vmem:[%s15 + $0x2c] sm:$0xf]
    %v261 = vld [vmem:[%s15 + $0x30] sm:$0xf]
    %v262 = vld [vmem:[%s15 + $0x34] sm:$0xf]
    %v263 = vld [vmem:[%s15 + $0x38] sm:$0xf]
    %v264 = vld [vmem:[%s15 + $0x3c] sm:$0xf]
    %v265 = vld [vmem:[%s15 + $0x40] sm:$0xf]
    %v266 = vld [vmem:[%s15 + $0x44] sm:$0xf]
    %v267 = vld [vmem:[%s15 + $0x48] sm:$0xf]
    %v268 = vld [vmem:[%s15 + $0x4c] sm:$0xf]
    %v269 = vld [vmem:[%s15 + $0x50] sm:$0xf]
    %v270 = vld [vmem:[%s15 + $0x54] sm:$0xf]
    %v271 = vld [vmem:[%s15 + $0x58] sm:$0xf]
    %v272 = vld [vmem:[%s15 + $0x5c] sm:$0xf]
    %v273 = vld [vmem:[%s17] sm:$0x1]
    %v274 = vld [vmem:[%s19] sm:$0x1]
    %v275 = vld [vmem:[%s21] sm:$0x1]
    %v276 = vld [vmem:[%s23] sm:$0xf]
    %v277 = vld [vmem:[%s23 + $0x4] sm:$0xf]
    %v278 = vld [vmem:[%s23 + $0x8] sm:$0xf]
    %v279 = vld [vmem:[%s23 + $0xc] sm:$0xf]
    %v280 = vld [vmem:[%s25] sm:$0x1]
    %v281 = vld [vmem:[%s27] sm:$0x1]
    %v282 = vld [vmem:[%s29] sm:$0x1]
    %v283 = vpack.c.bf16 %v231, %v230
    %v284 = vpack.c.bf16 %v233, %v232
    %v289 = vunpack.c.l.b16 %v276
    %v290 = vunpack.c.l.b16 %v277
    %v291 = vunpack.c.l.b16 %v278
    %v292 = vunpack.c.l.b16 %v279
    %v293 = vpack.c.b16 %v290, %v289
    %v294 = vpack.c.b16 %v292, %v291
    %vm297 = vcmask 261120
    %v299 = vsel %vm297, %v283, 0
    %v302 = vsel %vm297, %v284, 0
    %304 = vmatprep.subr.bf16.mxu0 0
    %305 = vmatpush1.bf16.msra.mxu0 %v293
    %306 = vmatprep.subr.bf16.mxu0 0
    %307 = vmatpush1.bf16.msra.mxu0 %v294
    %308 = vmatprep.subr.bf16.mxu0 0
    %309 = vmatpush1.bf16.msra.mxu0 0
    %310 = vmatprep.subr.bf16.mxu0 0
    %311 = vmatpush1.bf16.msra.mxu0 0
    %312 = vmatprep.subr.bf16.mxu0 0
    %313 = vmatpush1.bf16.msra.mxu0 0
    %314 = vmatprep.subr.bf16.mxu0 0
    %315 = vmatpush1.bf16.msra.mxu0 0
    %316 = vmatprep.subr.bf16.mxu0 0
    %317 = vmatpush1.bf16.msra.mxu0 0
    %318 = vmatprep.subr.bf16.mxu0 0
    %319 = vmatpush1.bf16.msra.mxu0 0
    %320 = vmatprep.subr.bf16.mxu0 0
    %321 = vmatpush1.bf16.msra.mxu0 0
    %322 = vmatprep.subr.bf16.mxu0 0
    %323 = vmatpush1.bf16.msra.mxu0 0
    %324 = vmatprep.subr.bf16.mxu0 0
    %325 = vmatpush1.bf16.msra.mxu0 0
    %326 = vmatprep.subr.bf16.mxu0 0
    %327 = vmatpush1.bf16.msra.mxu0 0
    %328 = vmatprep.subr.bf16.mxu0 0
    %329 = vmatpush1.bf16.msra.mxu0 0
    %330 = vmatprep.subr.bf16.mxu0 0
    %331 = vmatpush1.bf16.msra.mxu0 0
    %332 = vmatprep.subr.bf16.mxu0 0
    %333 = vmatpush1.bf16.msra.mxu0 0
    %334 = vmatprep.subr.bf16.mxu0 0
    %335 = vmatpush1.bf16.msra.mxu0 0
    %336 = vmatprep.mubr.bf16.mxu0 0
    %337 = vmatmul.mubr.bf16.gmra.mrb[0].mxu0 %v299
    %v338 = vpop.f32.mrb[0].mxu0
    %v339 = vadd.f32 0.0, %v338
    %v340 = vpop.f32.mrb[0].mxu0
    %v341 = vpop.f32.mrb[0].mxu0
    %v342 = vadd.f32 0.0, %v341
    %v343 = vpop.f32.mrb[0].mxu0
    %344 = vmatprep.mubr.bf16.mxu0 0
    %345 = vmatmul.mubr.bf16.gmra.mrb[0].mxu0 %v302
    %v346 = vpop.f32.mrb[0].mxu0
    %v347 = vadd.f32 0.0, %v346
    %v348 = vpop.f32.mrb[0].mxu0
    %v349 = vpop.f32.mrb[0].mxu0
    %v350 = vadd.f32 0.0, %v349
    %v351 = vpop.f32.mrb[0].mxu0
    %352 = vdwg.mxu0
    %v354 = vlaneseq
    %v355 = vshrl.u32 %v354, 7
    %v356 = vsub.s32 0, %v355
    %v357 = vrot.slane %v280, %v356
    %v359 = vadd.f32 %v339, %v357
    %v360 = vadd.f32 %v342, %v357
    %v361 = vadd.f32 %v347, %v357
    %v362 = vadd.f32 %v350, %v357
    %vm363 = vcmask 523264
    %v364 = vsel %vm363, %v359, 0.0
    %v365 = vsel %vm363, %v360, 0.0
    %v366 = vadd.f32 %v364, %v365
    %v367 = vsel %vm363, %v361, 0.0
    %v368 = vadd.f32 %v366, %v367
    %v369 = vsel %vm363, %v362, 0.0
    %v370 = vadd.f32 %v368, %v369
    %v371 = vrot.slane %v370, 4
    %v372 = vadd.f32 %v370, %v371
    %v373 = vrot.slane %v372, 2
    %v374 = vadd.f32 %v372, %v373
    %v375 = vrot.slane %v374, 1
    %v376 = vadd.f32 %v374, %v375
    %v377 = vmul.f32 %v376, 0.03125
    %v378 = vsub.f32 %v359, %v377
    %v379 = vsub.f32 %v360, %v377
    %v380 = vsub.f32 %v361, %v377
    %v381 = vsub.f32 %v362, %v377
    %v382 = vmul.f32 %v378, %v378
    %v383 = vmul.f32 %v379, %v379
    %v384 = vmul.f32 %v380, %v380
    %v385 = vmul.f32 %v381, %v381
    %v386 = vsel %vm363, %v382, 0.0
    %v387 = vsel %vm363, %v383, 0.0
    %v388 = vadd.f32 %v386, %v387
    %v389 = vsel %vm363, %v384, 0.0
    %v390 = vadd.f32 %v388, %v389
    %v391 = vsel %vm363, %v385, 0.0
    %v392 = vadd.f32 %v390, %v391
    %v393 = vrot.slane %v392, 4
    %v394 = vadd.f32 %v392, %v393
    %v395 = vrot.slane %v394, 2
    %v396 = vadd.f32 %v394, %v395
    %v397 = vrot.slane %v396, 1
    %v398 = vadd.f32 %v396, %v397
    %v399 = vmul.f32 %v398, 0.03125
    %v400 = vadd.f32 %v399, 1e-05
    %v401 = vrsqrt.pop %v400
    %v402 = vmul.f32 %v281, %v401
    %v404 = vlaneseq
    %v405 = vshrl.u32 %v404, 7
    %v406 = vsub.s32 0, %v405
    %v407 = vrot.slane %v402, %v406
    %v409 = vmul.f32 %v378, %v407
    %v410 = vmul.f32 %v379, %v407
    %v411 = vmul.f32 %v380, %v407
    %v412 = vmul.f32 %v381, %v407
    %v414 = vlaneseq
    %v415 = vshrl.u32 %v414, 7
    %v416 = vsub.s32 0, %v415
    %v417 = vrot.slane %v282, %v416
    %v419 = vadd.f32 %v409, %v417
    %v420 = vadd.f32 %v410, %v417
    %v421 = vadd.f32 %v411, %v417
    %v422 = vadd.f32 %v412, %v417
    %vm427 = vcmask 1040384
    %v428 = vrot.slane %v230, 7
    %v429 = vrot.slane %v231, 7
    %v430 = vsel %vm427, %v428, %v429
    %v431 = vrot.slane %v232, 7
    %v432 = vrot.slane %v233, 7
    %v433 = vsel %vm427, %v431, %v432
    %v438 = vsel %vm427, 0.0, %v428
    %v439 = vsel %vm427, 0.0, %v431
    %vm440 = vcmask 1046528
    %v441 = vrot.slane %v230, 1
    %v442 = vrot.slane %v231, 1
    %v443 = vsel %vm440, %v441, %v442
    %v444 = vrot.slane %v232, 1
    %v445 = vrot.slane %v233, 1
    %v446 = vsel %vm440, %v444, %v445
    %v451 = vsel %vm440, %v442, 0.0
    %v452 = vsel %vm440, %v445, 0.0
    %v453 = vpack.c.bf16 %v430, %v438
    %v454 = vpack.c.bf16 %v433, %v439
    %v459 = vunpack.c.l.b16 %v238
    %v460 = vunpack.c.l.b16 %v239
    %v461 = vunpack.c.l.b16 %v240
    %v462 = vunpack.c.l.b16 %v241
    %v463 = vpack.c.b16 %v460, %v459
    %v464 = vpack.c.b16 %v462, %v461
    %467 = vmatprep.subr.bf16.mxu0 0
    %468 = vmatpush1.bf16.msra.mxu0 %v463
    %469 = vmatprep.subr.bf16.mxu0 0
    %470 = vmatpush1.bf16.msra.mxu0 %v464
    %471 = vmatprep.subr.bf16.mxu0 0
    %472 = vmatpush1.bf16.msra.mxu0 0
    %473 = vmatprep.subr.bf16.mxu0 0
    %474 = vmatpush1.bf16.msra.mxu0 0
    %475 = vmatprep.subr.bf16.mxu0 0
    %476 = vmatpush1.bf16.msra.mxu0 0
    %477 = vmatprep.subr.bf16.mxu0 0
    %478 = vmatpush1.bf16.msra.mxu0 0
    %479 = vmatprep.subr.bf16.mxu0 0
    %480 = vmatpush1.bf16.msra.mxu0 0
    %481 = vmatprep.subr.bf16.mxu0 0
    %482 = vmatpush1.bf16.msra.mxu0 0
    %483 = vmatprep.subr.bf16.mxu0 0
    %484 = vmatpush1.bf16.msra.mxu0 0
    %485 = vmatprep.subr.bf16.mxu0 0
    %486 = vmatpush1.bf16.msra.mxu0 0
    %487 = vmatprep.subr.bf16.mxu0 0
    %488 = vmatpush1.bf16.msra.mxu0 0
    %489 = vmatprep.subr.bf16.mxu0 0
    %490 = vmatpush1.bf16.msra.mxu0 0
    %491 = vmatprep.subr.bf16.mxu0 0
    %492 = vmatpush1.bf16.msra.mxu0 0
    %493 = vmatprep.subr.bf16.mxu0 0
    %494 = vmatpush1.bf16.msra.mxu0 0
    %495 = vmatprep.subr.bf16.mxu0 0
    %496 = vmatpush1.bf16.msra.mxu0 0
    %497 = vmatprep.subr.bf16.mxu0 0
    %498 = vmatpush1.bf16.msra.mxu0 0
    %499 = vmatprep.mubr.bf16.mxu0 0
    %500 = vmatmul.mubr.bf16.gmra.mrb[0].mxu0 %v299
    %v501 = vpop.f32.mrb[0].mxu0
    %v502 = vadd.f32 0.0, %v501
    %v503 = vpop.f32.mrb[0].mxu0
    %v504 = vpop.f32.mrb[0].mxu0
    %v505 = vadd.f32 0.0, %v504
    %v506 = vpop.f32.mrb[0].mxu0
    %507 = vmatprep.mubr.bf16.mxu0 0
    %508 = vmatmul.mubr.bf16.gmra.mrb[0].mxu0 %v302
    %v509 = vpop.f32.mrb[0].mxu0
    %v510 = vadd.f32 0.0, %v509
    %v511 = vpop.f32.mrb[0].mxu0
    %v512 = vpop.f32.mrb[0].mxu0
    %v513 = vadd.f32 0.0, %v512
    %v514 = vpop.f32.mrb[0].mxu0
    %515 = vdwg.mxu0
    %v520 = vunpack.c.l.b16 %v234
    %v521 = vunpack.c.l.b16 %v235
    %v522 = vunpack.c.l.b16 %v236
    %v523 = vunpack.c.l.b16 %v237
    %v524 = vpack.c.b16 %v521, %v520
    %v525 = vpack.c.b16 %v523, %v522
    %v529 = vsel %vm297, %v453, 0
    %v532 = vsel %vm297, %v454, 0
    %534 = vmatprep.subr.bf16.mxu0 0
    %535 = vmatpush1.bf16.msra.mxu0 %v524
    %536 = vmatprep.subr.bf16.mxu0 0
    %537 = vmatpush1.bf16.msra.mxu0 %v525
    %538 = vmatprep.subr.bf16.mxu0 0
    %539 = vmatpush1.bf16.msra.mxu0 0
    %540 = vmatprep.subr.bf16.mxu0 0
    %541 = vmatpush1.bf16.msra.mxu0 0
    %542 = vmatprep.subr.bf16.mxu0 0
    %543 = vmatpush1.bf16.msra.mxu0 0
    %544 = vmatprep.subr.bf16.mxu0 0
    %545 = vmatpush1.bf16.msra.mxu0 0
    %546 = vmatprep.subr.bf16.mxu0 0
    %547 = vmatpush1.bf16.msra.mxu0 0
    %548 = vmatprep.subr.bf16.mxu0 0
    %549 = vmatpush1.bf16.msra.mxu0 0
    %550 = vmatprep.subr.bf16.mxu0 0
    %551 = vmatpush1.bf16.msra.mxu0 0
    %552 = vmatprep.subr.bf16.mxu0 0
    %553 = vmatpush1.bf16.msra.mxu0 0
    %554 = vmatprep.subr.bf16.mxu0 0
    %555 = vmatpush1.bf16.msra.mxu0 0
    %556 = vmatprep.subr.bf16.mxu0 0
    %557 = vmatpush1.bf16.msra.mxu0 0
    %558 = vmatprep.subr.bf16.mxu0 0
    %559 = vmatpush1.bf16.msra.mxu0 0
    %560 = vmatprep.subr.bf16.mxu0 0
    %561 = vmatpush1.bf16.msra.mxu0 0
    %562 = vmatprep.subr.bf16.mxu0 0
    %563 = vmatpush1.bf16.msra.mxu0 0
    %564 = vmatprep.subr.bf16.mxu0 0
    %565 = vmatpush1.bf16.msra.mxu0 0
    %566 = vmatprep.mubr.bf16.mxu0 0
    %567 = vmatmul.mubr.bf16.gmra.mrb[0].mxu0 %v529
    %v568 = vpop.f32.mrb[0].mxu0
    %v569 = vadd.f32 %v502, %v568
    %v570 = vpop.f32.mrb[0].mxu0
    %v571 = vpop.f32.mrb[0].mxu0
    %v572 = vadd.f32 %v505, %v571
    %v573 = vpop.f32.mrb[0].mxu0
    %574 = vmatprep.mubr.bf16.mxu0 0
    %575 = vmatmul.mubr.bf16.gmra.mrb[0].mxu0 %v532
    %v576 = vpop.f32.mrb[0].mxu0
    %v577 = vadd.f32 %v510, %v576
    %v578 = vpop.f32.mrb[0].mxu0
    %v579 = vpop.f32.mrb[0].mxu0
    %v580 = vadd.f32 %v513, %v579
    %v581 = vpop.f32.mrb[0].mxu0
    %582 = vdwg.mxu0
    %v583 = vpack.c.bf16 %v451, %v443
    %v584 = vpack.c.bf16 %v452, %v446
    %v589 = vunpack.c.l.b16 %v242
    %v590 = vunpack.c.l.b16 %v243
    %v591 = vunpack.c.l.b16 %v244
    %v592 = vunpack.c.l.b16 %v245
    %v593 = vpack.c.b16 %v590, %v589
    %v594 = vpack.c.b16 %v592, %v591
    %v598 = vsel %vm297, %v583, 0
    %v601 = vsel %vm297, %v584, 0
    %603 = vmatprep.subr.bf16.mxu0 0
    %604 = vmatpush1.bf16.msra.mxu0 %v593
    %605 = vmatprep.subr.bf16.mxu0 0
    %606 = vmatpush1.bf16.msra.mxu0 %v594
    %607 = vmatprep.subr.bf16.mxu0 0
    %608 = vmatpush1.bf16.msra.mxu0 0
    %609 = vmatprep.subr.bf16.mxu0 0
    %610 = vmatpush1.bf16.msra.mxu0 0
    %611 = vmatprep.subr.bf16.mxu0 0
    %612 = vmatpush1.bf16.msra.mxu0 0
    %613 = vmatprep.subr.bf16.mxu0 0
    %614 = vmatpush1.bf16.msra.mxu0 0
    %615 = vmatprep.subr.bf16.mxu0 0
    %616 = vmatpush1.bf16.msra.mxu0 0
    %617 = vmatprep.subr.bf16.mxu0 0
    %618 = vmatpush1.bf16.msra.mxu0 0
    %619 = vmatprep.subr.bf16.mxu0 0
    %620 = vmatpush1.bf16.msra.mxu0 0
    %621 = vmatprep.subr.bf16.mxu0 0
    %622 = vmatpush1.bf16.msra.mxu0 0
    %623 = vmatprep.subr.bf16.mxu0 0
    %624 = vmatpush1.bf16.msra.mxu0 0
    %625 = vmatprep.subr.bf16.mxu0 0
    %626 = vmatpush1.bf16.msra.mxu0 0
    %627 = vmatprep.subr.bf16.mxu0 0
    %628 = vmatpush1.bf16.msra.mxu0 0
    %629 = vmatprep.subr.bf16.mxu0 0
    %630 = vmatpush1.bf16.msra.mxu0 0
    %631 = vmatprep.subr.bf16.mxu0 0
    %632 = vmatpush1.bf16.msra.mxu0 0
    %633 = vmatprep.subr.bf16.mxu0 0
    %634 = vmatpush1.bf16.msra.mxu0 0
    %635 = vmatprep.mubr.bf16.mxu0 0
    %636 = vmatmul.mubr.bf16.gmra.mrb[0].mxu0 %v598
    %v637 = vpop.f32.mrb[0].mxu0
    %v638 = vadd.f32 0.0, %v637
    %v639 = vpop.f32.mrb[0].mxu0
    %v640 = vpop.f32.mrb[0].mxu0
    %v641 = vadd.f32 0.0, %v640
    %v642 = vpop.f32.mrb[0].mxu0
    %643 = vmatprep.mubr.bf16.mxu0 0
    %644 = vmatmul.mubr.bf16.gmra.mrb[0].mxu0 %v601
    %v645 = vpop.f32.mrb[0].mxu0
    %v646 = vadd.f32 0.0, %v645
    %v647 = vpop.f32.mrb[0].mxu0
    %v648 = vpop.f32.mrb[0].mxu0
    %v649 = vadd.f32 0.0, %v648
    %v650 = vpop.f32.mrb[0].mxu0
    %651 = vdwg.mxu0
    %v652 = vadd.f32 %v569, %v638
    %v653 = vadd.f32 %v572, %v641
    %v654 = vadd.f32 %v577, %v646
    %v655 = vadd.f32 %v580, %v649
    %v657 = vlaneseq
    %v658 = vshrl.u32 %v657, 7
    %v659 = vsub.s32 0, %v658
    %v660 = vrot.slane %v246, %v659
    %v662 = vadd.f32 %v652, %v660
    %v663 = vadd.f32 %v653, %v660
    %v664 = vadd.f32 %v654, %v660
    %v665 = vadd.f32 %v655, %v660
    %v666 = vsel %vm363, %v662, 0.0
    %v667 = vsel %vm363, %v663, 0.0
    %v668 = vadd.f32 %v666, %v667
    %v669 = vsel %vm363, %v664, 0.0
    %v670 = vadd.f32 %v668, %v669
    %v671 = vsel %vm363, %v665, 0.0
    %v672 = vadd.f32 %v670, %v671
    %v673 = vrot.slane %v672, 4
    %v674 = vadd.f32 %v672, %v673
    %v675 = vrot.slane %v674, 2
    %v676 = vadd.f32 %v674, %v675
    %v677 = vrot.slane %v676, 1
    %v678 = vadd.f32 %v676, %v677
    %v679 = vmul.f32 %v678, 0.03125
    %v680 = vsub.f32 %v662, %v679
    %v681 = vsub.f32 %v663, %v679
    %v682 = vsub.f32 %v664, %v679
    %v683 = vsub.f32 %v665, %v679
    %v684 = vmul.f32 %v680, %v680
    %v685 = vmul.f32 %v681, %v681
    %v686 = vmul.f32 %v682, %v682
    %v687 = vmul.f32 %v683, %v683
    %v688 = vsel %vm363, %v684, 0.0
    %v689 = vsel %vm363, %v685, 0.0
    %v690 = vadd.f32 %v688, %v689
    %v691 = vsel %vm363, %v686, 0.0
    %v692 = vadd.f32 %v690, %v691
    %v693 = vsel %vm363, %v687, 0.0
    %v694 = vadd.f32 %v692, %v693
    %v695 = vrot.slane %v694, 4
    %v696 = vadd.f32 %v694, %v695
    %v697 = vrot.slane %v696, 2
    %v698 = vadd.f32 %v696, %v697
    %v699 = vrot.slane %v698, 1
    %v700 = vadd.f32 %v698, %v699
    %v701 = vmul.f32 %v700, 0.03125
    %v702 = vadd.f32 %v701, 1e-05
    %v703 = vrsqrt.pop %v702
    %v704 = vmul.f32 %v247, %v703
    %v706 = vlaneseq
    %v707 = vshrl.u32 %v706, 7
    %v708 = vsub.s32 0, %v707
    %v709 = vrot.slane %v704, %v708
    %v711 = vmul.f32 %v680, %v709
    %v712 = vmul.f32 %v681, %v709
    %v713 = vmul.f32 %v682, %v709
    %v714 = vmul.f32 %v683, %v709
    %v716 = vlaneseq
    %v717 = vshrl.u32 %v716, 7
    %v718 = vsub.s32 0, %v717
    %v719 = vrot.slane %v248, %v718
    %v721 = vadd.f32 %v711, %v719
    %v722 = vadd.f32 %v712, %v719
    %v723 = vadd.f32 %v713, %v719
    %v724 = vadd.f32 %v714, %v719
    %v725 = vmax.f32 %v721, 0.0
    %v726 = vmax.f32 %v722, 0.0
    %v727 = vmax.f32 %v723, 0.0
    %v728 = vmax.f32 %v724, 0.0
    %v733 = vrot.slane %v725, 7
    %v734 = vrot.slane %v726, 7
    %v735 = vsel %vm427, %v733, %v734
    %v736 = vrot.slane %v727, 7
    %v737 = vrot.slane %v728, 7
    %v738 = vsel %vm427, %v736, %v737
    %v743 = vsel %vm427, 0.0, %v733
    %v744 = vsel %vm427, 0.0, %v736
    %v745 = vrot.slane %v725, 1
    %v746 = vrot.slane %v726, 1
    %v747 = vsel %vm440, %v745, %v746
    %v748 = vrot.slane %v727, 1
    %v749 = vrot.slane %v728, 1
    %v750 = vsel %vm440, %v748, %v749
    %v755 = vsel %vm440, %v746, 0.0
    %v756 = vsel %vm440, %v749, 0.0
    %v757 = vpack.c.bf16 %v735, %v743
    %v758 = vpack.c.bf16 %v738, %v744
    %v759 = vpack.c.bf16 %v726, %v725
    %v760 = vpack.c.bf16 %v728, %v727
    %v769 = vunpack.c.l.b16 %v257
    %v770 = vunpack.c.l.b16 %v258
    %v771 = vunpack.c.l.b16 %v259
    %v772 = vunpack.c.l.b16 %v260
    %v773 = vunpack.c.l.b16 %v261
    %v774 = vunpack.c.l.b16 %v262
    %v775 = vunpack.c.l.b16 %v263
    %v776 = vunpack.c.l.b16 %v264
    %v777 = vpack.c.b16 %v770, %v769
    %v778 = vpack.c.b16 %v772, %v771
    %v779 = vpack.c.b16 %v774, %v773
    %v780 = vpack.c.b16 %v776, %v775
    %v786 = vsel %vm363, %v759, 0
    %v789 = vsel %vm363, %v760, 0
    %791 = vmatprep.subr.bf16.mxu0 0
    %792 = vmatpush1.bf16.msra.mxu0 %v777
    %793 = vmatprep.subr.bf16.mxu0 0
    %794 = vmatpush1.bf16.msra.mxu0 %v778
    %795 = vmatprep.subr.bf16.mxu0 0
    %796 = vmatpush1.bf16.msra.mxu0 %v779
    %797 = vmatprep.subr.bf16.mxu0 0
    %798 = vmatpush1.bf16.msra.mxu0 %v780
    %799 = vmatprep.subr.bf16.mxu0 0
    %800 = vmatpush1.bf16.msra.mxu0 0
    %801 = vmatprep.subr.bf16.mxu0 0
    %802 = vmatpush1.bf16.msra.mxu0 0
    %803 = vmatprep.subr.bf16.mxu0 0
    %804 = vmatpush1.bf16.msra.mxu0 0
    %805 = vmatprep.subr.bf16.mxu0 0
    %806 = vmatpush1.bf16.msra.mxu0 0
    %807 = vmatprep.subr.bf16.mxu0 0
    %808 = vmatpush1.bf16.msra.mxu0 0
    %809 = vmatprep.subr.bf16.mxu0 0
    %810 = vmatpush1.bf16.msra.mxu0 0
    %811 = vmatprep.subr.bf16.mxu0 0
    %812 = vmatpush1.bf16.msra.mxu0 0
    %813 = vmatprep.subr.bf16.mxu0 0
    %814 = vmatpush1.bf16.msra.mxu0 0
    %815 = vmatprep.subr.bf16.mxu0 0
    %816 = vmatpush1.bf16.msra.mxu0 0
    %817 = vmatprep.subr.bf16.mxu0 0
    %818 = vmatpush1.bf16.msra.mxu0 0
    %819 = vmatprep.subr.bf16.mxu0 0
    %820 = vmatpush1.bf16.msra.mxu0 0
    %821 = vmatprep.subr.bf16.mxu0 0
    %822 = vmatpush1.bf16.msra.mxu0 0
    %823 = vmatprep.mubr.bf16.mxu0 0
    %824 = vmatmul.mubr.bf16.gmra.mrb[0].mxu0 %v786
    %v825 = vpop.f32.mrb[0].mxu0
    %v826 = vadd.f32 0.0, %v825
    %v827 = vpop.f32.mrb[0].mxu0
    %v828 = vpop.f32.mrb[0].mxu0
    %v829 = vadd.f32 0.0, %v828
    %v830 = vpop.f32.mrb[0].mxu0
    %831 = vmatprep.mubr.bf16.mxu0 0
    %832 = vmatmul.mubr.bf16.gmra.mrb[0].mxu0 %v789
    %v833 = vpop.f32.mrb[0].mxu0
    %v834 = vadd.f32 0.0, %v833
    %v835 = vpop.f32.mrb[0].mxu0
    %v836 = vpop.f32.mrb[0].mxu0
    %v837 = vadd.f32 0.0, %v836
    %v838 = vpop.f32.mrb[0].mxu0
    %839 = vdwg.mxu0
    %v848 = vunpack.c.l.b16 %v249
    %v849 = vunpack.c.l.b16 %v250
    %v850 = vunpack.c.l.b16 %v251
    %v851 = vunpack.c.l.b16 %v252
    %v852 = vunpack.c.l.b16 %v253
    %v853 = vunpack.c.l.b16 %v254
    %v854 = vunpack.c.l.b16 %v255
    %v855 = vunpack.c.l.b16 %v256
    %v856 = vpack.c.b16 %v849, %v848
    %v857 = vpack.c.b16 %v851, %v850
    %v858 = vpack.c.b16 %v853, %v852
    %v859 = vpack.c.b16 %v855, %v854
    %v865 = vsel %vm363, %v757, 0
    %v868 = vsel %vm363, %v758, 0
    %870 = vmatprep.subr.bf16.mxu0 0
    %871 = vmatpush1.bf16.msra.mxu0 %v856
    %872 = vmatprep.subr.bf16.mxu0 0
    %873 = vmatpush1.bf16.msra.mxu0 %v857
    %874 = vmatprep.subr.bf16.mxu0 0
    %875 = vmatpush1.bf16.msra.mxu0 %v858
    %876 = vmatprep.subr.bf16.mxu0 0
    %877 = vmatpush1.bf16.msra.mxu0 %v859
    %878 = vmatprep.subr.bf16.mxu0 0
    %879 = vmatpush1.bf16.msra.mxu0 0
    %880 = vmatprep.subr.bf16.mxu0 0
    %881 = vmatpush1.bf16.msra.mxu0 0
    %882 = vmatprep.subr.bf16.mxu0 0
    %883 = vmatpush1.bf16.msra.mxu0 0
    %884 = vmatprep.subr.bf16.mxu0 0
    %885 = vmatpush1.bf16.msra.mxu0 0
    %886 = vmatprep.subr.bf16.mxu0 0
    %887 = vmatpush1.bf16.msra.mxu0 0
    %888 = vmatprep.subr.bf16.mxu0 0
    %889 = vmatpush1.bf16.msra.mxu0 0
    %890 = vmatprep.subr.bf16.mxu0 0
    %891 = vmatpush1.bf16.msra.mxu0 0
    %892 = vmatprep.subr.bf16.mxu0 0
    %893 = vmatpush1.bf16.msra.mxu0 0
    %894 = vmatprep.subr.bf16.mxu0 0
    %895 = vmatpush1.bf16.msra.mxu0 0
    %896 = vmatprep.subr.bf16.mxu0 0
    %897 = vmatpush1.bf16.msra.mxu0 0
    %898 = vmatprep.subr.bf16.mxu0 0
    %899 = vmatpush1.bf16.msra.mxu0 0
    %900 = vmatprep.subr.bf16.mxu0 0
    %901 = vmatpush1.bf16.msra.mxu0 0
    %902 = vmatprep.mubr.bf16.mxu0 0
    %903 = vmatmul.mubr.bf16.gmra.mrb[0].mxu0 %v865
    %v904 = vpop.f32.mrb[0].mxu0
    %v905 = vadd.f32 %v826, %v904
    %v906 = vpop.f32.mrb[0].mxu0
    %v907 = vpop.f32.mrb[0].mxu0
    %v908 = vadd.f32 %v829, %v907
    %v909 = vpop.f32.mrb[0].mxu0
    %910 = vmatprep.mubr.bf16.mxu0 0
    %911 = vmatmul.mubr.bf16.gmra.mrb[0].mxu0 %v868
    %v912 = vpop.f32.mrb[0].mxu0
    %v913 = vadd.f32 %v834, %v912
    %v914 = vpop.f32.mrb[0].mxu0
    %v915 = vpop.f32.mrb[0].mxu0
    %v916 = vadd.f32 %v837, %v915
    %v917 = vpop.f32.mrb[0].mxu0
    %918 = vdwg.mxu0
    %v919 = vpack.c.bf16 %v755, %v747
    %v920 = vpack.c.bf16 %v756, %v750
    %v929 = vunpack.c.l.b16 %v265
    %v930 = vunpack.c.l.b16 %v266
    %v931 = vunpack.c.l.b16 %v267
    %v932 = vunpack.c.l.b16 %v268
    %v933 = vunpack.c.l.b16 %v269
    %v934 = vunpack.c.l.b16 %v270
    %v935 = vunpack.c.l.b16 %v271
    %v936 = vunpack.c.l.b16 %v272
    %v937 = vpack.c.b16 %v930, %v929
    %v938 = vpack.c.b16 %v932, %v931
    %v939 = vpack.c.b16 %v934, %v933
    %v940 = vpack.c.b16 %v936, %v935
    %v946 = vsel %vm363, %v919, 0
    %v949 = vsel %vm363, %v920, 0
    %951 = vmatprep.subr.bf16.mxu0 0
    %952 = vmatpush1.bf16.msra.mxu0 %v937
    %953 = vmatprep.subr.bf16.mxu0 0
    %954 = vmatpush1.bf16.msra.mxu0 %v938
    %955 = vmatprep.subr.bf16.mxu0 0
    %956 = vmatpush1.bf16.msra.mxu0 %v939
    %957 = vmatprep.subr.bf16.mxu0 0
    %958 = vmatpush1.bf16.msra.mxu0 %v940
    %959 = vmatprep.subr.bf16.mxu0 0
    %960 = vmatpush1.bf16.msra.mxu0 0
    %961 = vmatprep.subr.bf16.mxu0 0
    %962 = vmatpush1.bf16.msra.mxu0 0
    %963 = vmatprep.subr.bf16.mxu0 0
    %964 = vmatpush1.bf16.msra.mxu0 0
    %965 = vmatprep.subr.bf16.mxu0 0
    %966 = vmatpush1.bf16.msra.mxu0 0
    %967 = vmatprep.subr.bf16.mxu0 0
    %968 = vmatpush1.bf16.msra.mxu0 0
    %969 = vmatprep.subr.bf16.mxu0 0
    %970 = vmatpush1.bf16.msra.mxu0 0
    %971 = vmatprep.subr.bf16.mxu0 0
    %972 = vmatpush1.bf16.msra.mxu0 0
    %973 = vmatprep.subr.bf16.mxu0 0
    %974 = vmatpush1.bf16.msra.mxu0 0
    %975 = vmatprep.subr.bf16.mxu0 0
    %976 = vmatpush1.bf16.msra.mxu0 0
    %977 = vmatprep.subr.bf16.mxu0 0
    %978 = vmatpush1.bf16.msra.mxu0 0
    %979 = vmatprep.subr.bf16.mxu0 0
    %980 = vmatpush1.bf16.msra.mxu0 0
    %981 = vmatprep.subr.bf16.mxu0 0
    %982 = vmatpush1.bf16.msra.mxu0 0
    %983 = vmatprep.mubr.bf16.mxu0 0
    %984 = vmatmul.mubr.bf16.gmra.mrb[0].mxu0 %v946
    %v985 = vpop.f32.mrb[0].mxu0
    %v986 = vadd.f32 0.0, %v985
    %v987 = vpop.f32.mrb[0].mxu0
    %v988 = vpop.f32.mrb[0].mxu0
    %v989 = vadd.f32 0.0, %v988
    %v990 = vpop.f32.mrb[0].mxu0
    %991 = vmatprep.mubr.bf16.mxu0 0
    %992 = vmatmul.mubr.bf16.gmra.mrb[0].mxu0 %v949
    %v993 = vpop.f32.mrb[0].mxu0
    %v994 = vadd.f32 0.0, %v993
    %v995 = vpop.f32.mrb[0].mxu0
    %v996 = vpop.f32.mrb[0].mxu0
    %v997 = vadd.f32 0.0, %v996
    %v998 = vpop.f32.mrb[0].mxu0
    %999 = vdwg.mxu0
    %v1000 = vadd.f32 %v905, %v986
    %v1001 = vadd.f32 %v908, %v989
    %v1002 = vadd.f32 %v913, %v994
    %v1003 = vadd.f32 %v916, %v997
    %v1005 = vlaneseq
    %v1006 = vshrl.u32 %v1005, 7
    %v1007 = vsub.s32 0, %v1006
    %v1008 = vrot.slane %v273, %v1007
    %v1010 = vadd.f32 %v1000, %v1008
    %v1011 = vadd.f32 %v1001, %v1008
    %v1012 = vadd.f32 %v1002, %v1008
    %v1013 = vadd.f32 %v1003, %v1008
    %v1014 = vsel %vm363, %v1010, 0.0
    %v1015 = vsel %vm363, %v1011, 0.0
    %v1016 = vadd.f32 %v1014, %v1015
    %v1017 = vsel %vm363, %v1012, 0.0
    %v1018 = vadd.f32 %v1016, %v1017
    %v1019 = vsel %vm363, %v1013, 0.0
    %v1020 = vadd.f32 %v1018, %v1019
    %v1021 = vrot.slane %v1020, 4
    %v1022 = vadd.f32 %v1020, %v1021
    %v1023 = vrot.slane %v1022, 2
    %v1024 = vadd.f32 %v1022, %v1023
    %v1025 = vrot.slane %v1024, 1
    %v1026 = vadd.f32 %v1024, %v1025
    %v1027 = vmul.f32 %v1026, 0.03125
    %v1028 = vsub.f32 %v1010, %v1027
    %v1029 = vsub.f32 %v1011, %v1027
    %v1030 = vsub.f32 %v1012, %v1027
    %v1031 = vsub.f32 %v1013, %v1027
    %v1032 = vmul.f32 %v1028, %v1028
    %v1033 = vmul.f32 %v1029, %v1029
    %v1034 = vmul.f32 %v1030, %v1030
    %v1035 = vmul.f32 %v1031, %v1031
    %v1036 = vsel %vm363, %v1032, 0.0
    %v1037 = vsel %vm363, %v1033, 0.0
    %v1038 = vadd.f32 %v1036, %v1037
    %v1039 = vsel %vm363, %v1034, 0.0
    %v1040 = vadd.f32 %v1038, %v1039
    %v1041 = vsel %vm363, %v1035, 0.0
    %v1042 = vadd.f32 %v1040, %v1041
    %v1043 = vrot.slane %v1042, 4
    %v1044 = vadd.f32 %v1042, %v1043
    %v1045 = vrot.slane %v1044, 2
    %v1046 = vadd.f32 %v1044, %v1045
    %v1047 = vrot.slane %v1046, 1
    %v1048 = vadd.f32 %v1046, %v1047
    %v1049 = vmul.f32 %v1048, 0.03125
    %v1050 = vadd.f32 %v1049, 1e-05
    %v1051 = vrsqrt.pop %v1050
    %v1052 = vmul.f32 %v274, %v1051
    %v1054 = vlaneseq
    %v1055 = vshrl.u32 %v1054, 7
    %v1056 = vsub.s32 0, %v1055
    %v1057 = vrot.slane %v1052, %v1056
    %v1059 = vmul.f32 %v1028, %v1057
    %v1060 = vmul.f32 %v1029, %v1057
    %v1061 = vmul.f32 %v1030, %v1057
    %v1062 = vmul.f32 %v1031, %v1057
    %v1064 = vlaneseq
    %v1065 = vshrl.u32 %v1064, 7
    %v1066 = vsub.s32 0, %v1065
    %v1067 = vrot.slane %v275, %v1066
    %v1069 = vadd.f32 %v1059, %v1067
    %v1070 = vadd.f32 %v1060, %v1067
    %v1071 = vadd.f32 %v1061, %v1067
    %v1072 = vadd.f32 %v1062, %v1067
    %v1073 = vadd.f32 %v1069, %v419
    %v1074 = vadd.f32 %v1070, %v420
    %v1075 = vadd.f32 %v1071, %v421
    %v1076 = vadd.f32 %v1072, %v422
    %v1077 = vmax.f32 %v1073, 0.0
    %v1078 = vmax.f32 %v1074, 0.0
    %v1079 = vmax.f32 %v1075, 0.0
    %v1080 = vmax.f32 %v1076, 0.0
    %v1081 = vld [vmem:[%s31] sm:$0xf]
    %v1082 = vld [vmem:[%s31 + $0x4] sm:$0xf]
    %v1083 = vld [vmem:[%s31 + $0x8] sm:$0xf]
    %v1084 = vld [vmem:[%s31 + $0xc] sm:$0xf]
    %v1085 = vld [vmem:[%s31 + $0x10] sm:$0xf]
    %v1086 = vld [vmem:[%s31 + $0x14] sm:$0xf]
    %v1087 = vld [vmem:[%s31 + $0x18] sm:$0xf]
    %v1088 = vld [vmem:[%s31 + $0x1c] sm:$0xf]
    %v1089 = vld [vmem:[%s33] sm:$0x3]
    %v1090 = vsel %vm363, %v1077, 0.0
    %v1091 = vsel %vm363, %v1078, 0.0
    %v1092 = vadd.f32 %v1090, %v1091
    %v1093 = vrot.slane %v1092, 4
    %v1094 = vadd.f32 %v1092, %v1093
    %v1095 = vrot.slane %v1094, 2
    %v1096 = vadd.f32 %v1094, %v1095
    %v1097 = vrot.slane %v1096, 1
    %v1098 = vadd.f32 %v1096, %v1097
    %v1099 = vsel %vm363, %v1079, 0.0
    %v1100 = vsel %vm363, %v1080, 0.0
    %v1101 = vadd.f32 %v1099, %v1100
    %v1102 = vrot.slane %v1101, 4
    %v1103 = vadd.f32 %v1101, %v1102
    %v1104 = vrot.slane %v1103, 2
    %v1105 = vadd.f32 %v1103, %v1104
    %v1106 = vrot.slane %v1105, 1
    %v1107 = vadd.f32 %v1105, %v1106
    %v1108 = vrcp.pop 16.0
    %v1109 = vmul.f32 %v1098, %v1108
    %v1110 = vmul.f32 %v1107, %v1108
    %v1111 = vpack.c.bf16 %v1109, %v1109
    %v1112 = vpack.c.bf16 %v1110, %v1110
    %v1115 = vunpack.c.l.b16 %v1111
    %v1116 = vunpack.c.l.b16 %v1112
    %vm1117 = vcmask 1041409
    %v1118 = vsel %vm1117, %v1116, %v1115
    %v1119 = vpack.c.b16 %v1118, %v1118
    %v1128 = vunpack.c.l.b16 %v1081
    %v1129 = vunpack.c.l.b16 %v1082
    %v1130 = vunpack.c.l.b16 %v1083
    %v1131 = vunpack.c.l.b16 %v1084
    %v1132 = vunpack.c.l.b16 %v1085
    %v1133 = vunpack.c.l.b16 %v1086
    %v1134 = vunpack.c.l.b16 %v1087
    %v1135 = vunpack.c.l.b16 %v1088
    %v1136 = vpack.c.b16 %v1129, %v1128
    %v1137 = vpack.c.b16 %v1131, %v1130
    %v1138 = vpack.c.b16 %v1133, %v1132
    %v1139 = vpack.c.b16 %v1135, %v1134
    %v1145 = vsel %vm363, %v1119, 0
    %1147 = vmatprep.subr.bf16.mxu0 0
    %1148 = vmatpush1.bf16.msra.mxu0 %v1136
    %1149 = vmatprep.subr.bf16.mxu0 0
    %1150 = vmatpush1.bf16.msra.mxu0 %v1137
    %1151 = vmatprep.subr.bf16.mxu0 0
    %1152 = vmatpush1.bf16.msra.mxu0 %v1138
    %1153 = vmatprep.subr.bf16.mxu0 0
    %1154 = vmatpush1.bf16.msra.mxu0 %v1139
    %1155 = vmatprep.subr.bf16.mxu0 0
    %1156 = vmatpush1.bf16.msra.mxu0 0
    %1157 = vmatprep.subr.bf16.mxu0 0
    %1158 = vmatpush1.bf16.msra.mxu0 0
    %1159 = vmatprep.subr.bf16.mxu0 0
    %1160 = vmatpush1.bf16.msra.mxu0 0
    %1161 = vmatprep.subr.bf16.mxu0 0
    %1162 = vmatpush1.bf16.msra.mxu0 0
    %1163 = vmatprep.subr.bf16.mxu0 0
    %1164 = vmatpush1.bf16.msra.mxu0 0
    %1165 = vmatprep.subr.bf16.mxu0 0
    %1166 = vmatpush1.bf16.msra.mxu0 0
    %1167 = vmatprep.subr.bf16.mxu0 0
    %1168 = vmatpush1.bf16.msra.mxu0 0
    %1169 = vmatprep.subr.bf16.mxu0 0
    %1170 = vmatpush1.bf16.msra.mxu0 0
    %1171 = vmatprep.subr.bf16.mxu0 0
    %1172 = vmatpush1.bf16.msra.mxu0 0
    %1173 = vmatprep.subr.bf16.mxu0 0
    %1174 = vmatpush1.bf16.msra.mxu0 0
    %1175 = vmatprep.subr.bf16.mxu0 0
    %1176 = vmatpush1.bf16.msra.mxu0 0
    %1177 = vmatprep.subr.bf16.mxu0 0
    %1178 = vmatpush1.bf16.msra.mxu0 0
    %1179 = vmatprep.mubr.bf16.mxu0 0
    %1180 = vmatmul.mubr.bf16.gmra.mrb[0].mxu0 %v1145
    %v1181 = vpop.f32.mrb[0].mxu0
    %v1182 = vadd.f32 0.0, %v1181
    %v1183 = vpop.f32.mrb[0].mxu0
    %v1184 = vpop.f32.mrb[0].mxu0
    %v1185 = vpop.f32.mrb[0].mxu0
    %1186 = vdwg.mxu0
    %v1187 = vmax.f32 %v1182, 0.0
    %v1188 = vpack.c.bf16 %v1187, %v1187
    %vm1189 = vcmask 31744
    %v1191 = vsel %vm1189, %v1188, 0
    %vm1193 = vcmask 1041408
    %v1195 = vsel %vm1193, %v1089, 0
    %1197 = vmatprep.subr.bf16.mxu0 0
    %1198 = vmatpush1.bf16.msra.mxu0 %v1195
    %1199 = vmatprep.subr.bf16.mxu0 0
    %1200 = vmatpush1.bf16.msra.mxu0 0
    %1201 = vmatprep.subr.bf16.mxu0 0
    %1202 = vmatpush1.bf16.msra.mxu0 0
    %1203 = vmatprep.subr.bf16.mxu0 0
    %1204 = vmatpush1.bf16.msra.mxu0 0
    %1205 = vmatprep.subr.bf16.mxu0 0
    %1206 = vmatpush1.bf16.msra.mxu0 0
    %1207 = vmatprep.subr.bf16.mxu0 0
    %1208 = vmatpush1.bf16.msra.mxu0 0
    %1209 = vmatprep.subr.bf16.mxu0 0
    %1210 = vmatpush1.bf16.msra.mxu0 0
    %1211 = vmatprep.subr.bf16.mxu0 0
    %1212 = vmatpush1.bf16.msra.mxu0 0
    %1213 = vmatprep.subr.bf16.mxu0 0
    %1214 = vmatpush1.bf16.msra.mxu0 0
    %1215 = vmatprep.subr.bf16.mxu0 0
    %1216 = vmatpush1.bf16.msra.mxu0 0
    %1217 = vmatprep.subr.bf16.mxu0 0
    %1218 = vmatpush1.bf16.msra.mxu0 0
    %1219 = vmatprep.subr.bf16.mxu0 0
    %1220 = vmatpush1.bf16.msra.mxu0 0
    %1221 = vmatprep.subr.bf16.mxu0 0
    %1222 = vmatpush1.bf16.msra.mxu0 0
    %1223 = vmatprep.subr.bf16.mxu0 0
    %1224 = vmatpush1.bf16.msra.mxu0 0
    %1225 = vmatprep.subr.bf16.mxu0 0
    %1226 = vmatpush1.bf16.msra.mxu0 0
    %1227 = vmatprep.subr.bf16.mxu0 0
    %1228 = vmatpush1.bf16.msra.mxu0 0
    %1229 = vmatprep.mubr.bf16.mxu0 0
    %1230 = vmatmul.mubr.bf16.gmra.mrb[0].mxu0 %v1191
    %v1231 = vpop.f32.mrb[0].mxu0
    %v1232 = vadd.f32 0.0, %v1231
    %v1233 = vpop.f32.mrb[0].mxu0
    %v1234 = vpop.f32.mrb[0].mxu0
    %v1235 = vpop.f32.mrb[0].mxu0
    %1236 = vdwg.mxu0
    %v1237 = vsub.f32 0.0, %v1232
    %v1238 = vmul.f32 %v1237, 1.442695
    %v1239 = vpow.pop %v1238
    %v1240 = vadd.f32 %v1239, 1.0
    %v1241 = vrcp.pop %v1240
    %v1244 = vunpack.c.l.s4 1966171168
    %v1245 = vunpack.c.0.s8 %v1244
    %v1246 = vlaneseq
    %v1247 = vshrl.u32 %v1246, 7
    %v1248 = vsub.s32 %v1245, %v1247
    %v1249 = vrot.slane %v1241, %v1248
    %v1250 = vcombine.high %v1249, %v1249
    %v1252 = vunpack.c.l.s4 1966171168
    %v1253 = vunpack.c.0.s8 %v1252
    %v1254 = vlaneseq
    %v1255 = vshrl.u32 %v1254, 7
    %v1256 = vsub.s32 %v1253, %v1255
    %v1257 = vrot.slane %v1249, %v1256
    %v1259 = vunpack.c.l.s4 1966171168
    %v1260 = vunpack.c.0.s8 %v1259
    %v1261 = vlaneseq
    %v1262 = vshrl.u32 %v1261, 7
    %v1263 = vsub.s32 %v1260, %v1262
    %v1264 = vrot.slane %v1250, %v1263
    %v1265 = vlaneseq
    %v1266 = vshrl.u32 %v1265, 7
    %v1267 = vsub.s32 0, %v1266
    %v1268 = vrot.slane %v1257, %v1267
    %v1269 = vlaneseq
    %v1270 = vshrl.u32 %v1269, 7
    %v1271 = vsub.s32 0, %v1270
    %v1272 = vrot.slane %v1264, %v1271
    %v1275 = vmul.f32 %v1077, %v1268
    %v1276 = vmul.f32 %v1078, %v1268
    %v1277 = vmul.f32 %v1079, %v1272
    %v1278 = vmul.f32 %v1080, %v1272
    %v1279 = vld [vmem:[%s35] sm:$0xf]
    %v1280 = vld [vmem:[%s35 + $0x4] sm:$0xf]
    %v1281 = vld [vmem:[%s35 + $0x8] sm:$0xf]
    %v1282 = vld [vmem:[%s35 + $0xc] sm:$0xf]
    %v1283 = vld [vmem:[%s35 + $0x10] sm:$0xf]
    %v1284 = vld [vmem:[%s35 + $0x14] sm:$0xf]
    %v1285 = vld [vmem:[%s35 + $0x18] sm:$0xf]
    %v1286 = vld [vmem:[%s35 + $0x1c] sm:$0xf]
    %v1287 = vld [vmem:[%s35 + $0x20] sm:$0xf]
    %v1288 = vld [vmem:[%s35 + $0x24] sm:$0xf]
    %v1289 = vld [vmem:[%s35 + $0x28] sm:$0xf]
    %v1290 = vld [vmem:[%s35 + $0x2c] sm:$0xf]
    %v1291 = vld [vmem:[%s35 + $0x30] sm:$0xf]
    %v1292 = vld [vmem:[%s35 + $0x34] sm:$0xf]
    %v1293 = vld [vmem:[%s35 + $0x38] sm:$0xf]
    %v1294 = vld [vmem:[%s35 + $0x3c] sm:$0xf]
    %v1295 = vld [vmem:[%s35 + $0x40] sm:$0xf]
    %v1296 = vld [vmem:[%s35 + $0x44] sm:$0xf]
    %v1297 = vld [vmem:[%s35 + $0x48] sm:$0xf]
    %v1298 = vld [vmem:[%s35 + $0x4c] sm:$0xf]
    %v1299 = vld [vmem:[%s35 + $0x50] sm:$0xf]
    %v1300 = vld [vmem:[%s35 + $0x54] sm:$0xf]
    %v1301 = vld [vmem:[%s35 + $0x58] sm:$0xf]
    %v1302 = vld [vmem:[%s35 + $0x5c] sm:$0xf]
    %v1303 = vld [vmem:[%s37] sm:$0x1]
    %v1304 = vld [vmem:[%s39] sm:$0x1]
    %v1305 = vld [vmem:[%s41] sm:$0x1]
    %v1306 = vld [vmem:[%s43] sm:$0xf]
    %v1307 = vld [vmem:[%s43 + $0x4] sm:$0xf]
    %v1308 = vld [vmem:[%s43 + $0x8] sm:$0xf]
    %v1309 = vld [vmem:[%s43 + $0xc] sm:$0xf]
    %v1310 = vld [vmem:[%s43 + $0x10] sm:$0xf]
    %v1311 = vld [vmem:[%s43 + $0x14] sm:$0xf]
    %v1312 = vld [vmem:[%s43 + $0x18] sm:$0xf]
    %v1313 = vld [vmem:[%s43 + $0x1c] sm:$0xf]
    %v1314 = vld [vmem:[%s43 + $0x20] sm:$0xf]
    %v1315 = vld [vmem:[%s43 + $0x24] sm:$0xf]
    %v1316 = vld [vmem:[%s43 + $0x28] sm:$0xf]
    %v1317 = vld [vmem:[%s43 + $0x2c] sm:$0xf]
    %v1318 = vld [vmem:[%s43 + $0x30] sm:$0xf]
    %v1319 = vld [vmem:[%s43 + $0x34] sm:$0xf]
    %v1320 = vld [vmem:[%s43 + $0x38] sm:$0xf]
    %v1321 = vld [vmem:[%s43 + $0x3c] sm:$0xf]
    %v1322 = vld [vmem:[%s43 + $0x40] sm:$0xf]
    %v1323 = vld [vmem:[%s43 + $0x44] sm:$0xf]
    %v1324 = vld [vmem:[%s43 + $0x48] sm:$0xf]
    %v1325 = vld [vmem:[%s43 + $0x4c] sm:$0xf]
    %v1326 = vld [vmem:[%s43 + $0x50] sm:$0xf]
    %v1327 = vld [vmem:[%s43 + $0x54] sm:$0xf]
    %v1328 = vld [vmem:[%s43 + $0x58] sm:$0xf]
    %v1329 = vld [vmem:[%s43 + $0x5c] sm:$0xf]
    %v1330 = vld [vmem:[%s43 + $0x60] sm:$0xf]
    %v1331 = vld [vmem:[%s43 + $0x64] sm:$0xf]
    %v1332 = vld [vmem:[%s43 + $0x68] sm:$0xf]
    %v1333 = vld [vmem:[%s43 + $0x6c] sm:$0xf]
    %v1334 = vld [vmem:[%s43 + $0x70] sm:$0xf]
    %v1335 = vld [vmem:[%s43 + $0x74] sm:$0xf]
    %v1336 = vld [vmem:[%s43 + $0x78] sm:$0xf]
    %v1337 = vld [vmem:[%s43 + $0x7c] sm:$0xf]
    %v1338 = vld [vmem:[%s43 + $0x80] sm:$0xf]
    %v1339 = vld [vmem:[%s43 + $0x84] sm:$0xf]
    %v1340 = vld [vmem:[%s43 + $0x88] sm:$0xf]
    %v1341 = vld [vmem:[%s43 + $0x8c] sm:$0xf]
    %v1342 = vld [vmem:[%s43 + $0x90] sm:$0xf]
    %v1343 = vld [vmem:[%s43 + $0x94] sm:$0xf]
    %v1344 = vld [vmem:[%s43 + $0x98] sm:$0xf]
    %v1345 = vld [vmem:[%s43 + $0x9c] sm:$0xf]
    %v1346 = vld [vmem:[%s43 + $0xa0] sm:$0xf]
    %v1347 = vld [vmem:[%s43 + $0xa4] sm:$0xf]
    %v1348 = vld [vmem:[%s43 + $0xa8] sm:$0xf]
    %v1349 = vld [vmem:[%s43 + $0xac] sm:$0xf]
    %v1350 = vld [vmem:[%s43 + $0xb0] sm:$0xf]
    %v1351 = vld [vmem:[%s43 + $0xb4] sm:$0xf]
    %v1352 = vld [vmem:[%s43 + $0xb8] sm:$0xf]
    %v1353 = vld [vmem:[%s43 + $0xbc] sm:$0xf]
    %v1354 = vld [vmem:[%s45] sm:$0x1]
    %v1355 = vld [vmem:[%s47] sm:$0x1]
    %v1356 = vld [vmem:[%s49] sm:$0x1]
    %v1357 = vld [vmem:[%s51] sm:$0xf]
    %v1358 = vld [vmem:[%s51 + $0x4] sm:$0xf]
    %v1359 = vld [vmem:[%s51 + $0x8] sm:$0xf]
    %v1360 = vld [vmem:[%s51 + $0xc] sm:$0xf]
    %v1361 = vld [vmem:[%s51 + $0x10] sm:$0xf]
    %v1362 = vld [vmem:[%s51 + $0x14] sm:$0xf]
    %v1363 = vld [vmem:[%s51 + $0x18] sm:$0xf]
    %v1364 = vld [vmem:[%s51 + $0x1c] sm:$0xf]
    %v1365 = vld [vmem:[%s53] sm:$0x1]
    %v1366 = vld [vmem:[%s55] sm:$0x1]
    %v1367 = vld [vmem:[%s57] sm:$0x1]
    %v1368 = vpack.c.bf16 %v1276, %v1275
    %v1369 = vpack.c.bf16 %v1278, %v1277
    %v1378 = vunpack.c.l.b16 %v1357
    %v1379 = vunpack.c.l.b16 %v1358
    %v1380 = vunpack.c.l.b16 %v1359
    %v1381 = vunpack.c.l.b16 %v1360
    %v1382 = vunpack.c.l.b16 %v1361
    %v1383 = vunpack.c.l.b16 %v1362
    %v1384 = vunpack.c.l.b16 %v1363
    %v1385 = vunpack.c.l.b16 %v1364
    %v1386 = vpack.c.b16 %v1379, %v1378
    %v1387 = vpack.c.b16 %v1381, %v1380
    %v1388 = vpack.c.b16 %v1383, %v1382
    %v1389 = vpack.c.b16 %v1385, %v1384
    %v1395 = vsel %vm363, %v1368, 0
    %v1398 = vsel %vm363, %v1369, 0
    %1400 = vmatprep.subr.bf16.mxu0 0
    %1401 = vmatpush1.bf16.msra.mxu0 %v1386
    %1402 = vmatprep.subr.bf16.mxu0 0
    %1403 = vmatpush1.bf16.msra.mxu0 %v1387
    %1404 = vmatprep.subr.bf16.mxu0 0
    %1405 = vmatpush1.bf16.msra.mxu0 %v1388
    %1406 = vmatprep.subr.bf16.mxu0 0
    %1407 = vmatpush1.bf16.msra.mxu0 %v1389
    %1408 = vmatprep.subr.bf16.mxu0 0
    %1409 = vmatpush1.bf16.msra.mxu0 0
    %1410 = vmatprep.subr.bf16.mxu0 0
    %1411 = vmatpush1.bf16.msra.mxu0 0
    %1412 = vmatprep.subr.bf16.mxu0 0
    %1413 = vmatpush1.bf16.msra.mxu0 0
    %1414 = vmatprep.subr.bf16.mxu0 0
    %1415 = vmatpush1.bf16.msra.mxu0 0
    %1416 = vmatprep.subr.bf16.mxu0 0
    %1417 = vmatpush1.bf16.msra.mxu0 0
    %1418 = vmatprep.subr.bf16.mxu0 0
    %1419 = vmatpush1.bf16.msra.mxu0 0
    %1420 = vmatprep.subr.bf16.mxu0 0
    %1421 = vmatpush1.bf16.msra.mxu0 0
    %1422 = vmatprep.subr.bf16.mxu0 0
    %1423 = vmatpush1.bf16.msra.mxu0 0
    %1424 = vmatprep.subr.bf16.mxu0 0
    %1425 = vmatpush1.bf16.msra.mxu0 0
    %1426 = vmatprep.subr.bf16.mxu0 0
    %1427 = vmatpush1.bf16.msra.mxu0 0
    %1428 = vmatprep.subr.bf16.mxu0 0
    %1429 = vmatpush1.bf16.msra.mxu0 0
    %1430 = vmatprep.subr.bf16.mxu0 0
    %1431 = vmatpush1.bf16.msra.mxu0 0
    %1432 = vmatprep.mubr.bf16.mxu0 0
    %1433 = vmatmul.mubr.bf16.gmra.mrb[0].mxu0 %v1395
    %v1434 = vpop.f32.mrb[0].mxu0
    %v1435 = vadd.f32 0.0, %v1434
    %v1436 = vpop.f32.mrb[0].mxu0
    %v1437 = vpop.f32.mrb[0].mxu0
    %v1438 = vadd.f32 0.0, %v1437
    %v1439 = vpop.f32.mrb[0].mxu0
    %1440 = vmatprep.mubr.bf16.mxu0 0
    %1441 = vmatmul.mubr.bf16.gmra.mrb[0].mxu0 %v1398
    %v1442 = vpop.f32.mrb[0].mxu0
    %v1443 = vadd.f32 0.0, %v1442
    %v1444 = vpop.f32.mrb[0].mxu0
    %v1445 = vpop.f32.mrb[0].mxu0
    %v1446 = vadd.f32 0.0, %v1445
    %v1447 = vpop.f32.mrb[0].mxu0
    %1448 = vdwg.mxu0
    %v1450 = vlaneseq
    %v1451 = vshrl.u32 %v1450, 7
    %v1452 = vsub.s32 0, %v1451
    %v1453 = vrot.slane %v1365, %v1452
    %v1455 = vadd.f32 %v1435, %v1453
    %v1456 = vadd.f32 %v1438, %v1453
    %v1457 = vadd.f32 %v1443, %v1453
    %v1458 = vadd.f32 %v1446, %v1453
    %v1459 = vadd.f32 %v1455, %v1456
    %v1460 = vadd.f32 %v1459, %v1457
    %v1461 = vadd.f32 %v1460, %v1458
    %v1462 = vrot.slane %v1461, 4
    %v1463 = vadd.f32 %v1461, %v1462
    %v1464 = vrot.slane %v1463, 2
    %v1465 = vadd.f32 %v1463, %v1464
    %v1466 = vrot.slane %v1465, 1
    %v1467 = vadd.f32 %v1465, %v1466
    %v1468 = vmul.f32 %v1467, 0.03125
    %v1469 = vsub.f32 %v1455, %v1468
    %v1470 = vsub.f32 %v1456, %v1468
    %v1471 = vsub.f32 %v1457, %v1468
    %v1472 = vsub.f32 %v1458, %v1468
    %v1473 = vmul.f32 %v1469, %v1469
    %v1474 = vmul.f32 %v1470, %v1470
    %v1475 = vmul.f32 %v1471, %v1471
    %v1476 = vmul.f32 %v1472, %v1472
    %v1477 = vadd.f32 %v1473, %v1474
    %v1478 = vadd.f32 %v1477, %v1475
    %v1479 = vadd.f32 %v1478, %v1476
    %v1480 = vrot.slane %v1479, 4
    %v1481 = vadd.f32 %v1479, %v1480
    %v1482 = vrot.slane %v1481, 2
    %v1483 = vadd.f32 %v1481, %v1482
    %v1484 = vrot.slane %v1483, 1
    %v1485 = vadd.f32 %v1483, %v1484
    %v1486 = vmul.f32 %v1485, 0.03125
    %v1487 = vadd.f32 %v1486, 1e-05
    %v1488 = vrsqrt.pop %v1487
    %v1489 = vmul.f32 %v1366, %v1488
    %v1491 = vlaneseq
    %v1492 = vshrl.u32 %v1491, 7
    %v1493 = vsub.s32 0, %v1492
    %v1494 = vrot.slane %v1489, %v1493
    %v1496 = vmul.f32 %v1469, %v1494
    %v1497 = vmul.f32 %v1470, %v1494
    %v1498 = vmul.f32 %v1471, %v1494
    %v1499 = vmul.f32 %v1472, %v1494
    %v1501 = vlaneseq
    %v1502 = vshrl.u32 %v1501, 7
    %v1503 = vsub.s32 0, %v1502
    %v1504 = vrot.slane %v1367, %v1503
    %v1506 = vadd.f32 %v1496, %v1504
    %v1507 = vadd.f32 %v1497, %v1504
    %v1508 = vadd.f32 %v1498, %v1504
    %v1509 = vadd.f32 %v1499, %v1504
    %v1514 = vrot.slane %v1275, 7
    %v1515 = vrot.slane %v1276, 7
    %v1516 = vsel %vm427, %v1514, %v1515
    %v1517 = vrot.slane %v1277, 7
    %v1518 = vrot.slane %v1278, 7
    %v1519 = vsel %vm427, %v1517, %v1518
    %v1524 = vsel %vm427, 0.0, %v1514
    %v1525 = vsel %vm427, 0.0, %v1517
    %v1526 = vrot.slane %v1275, 1
    %v1527 = vrot.slane %v1276, 1
    %v1528 = vsel %vm440, %v1526, %v1527
    %v1529 = vrot.slane %v1277, 1
    %v1530 = vrot.slane %v1278, 1
    %v1531 = vsel %vm440, %v1529, %v1530
    %v1536 = vsel %vm440, %v1527, 0.0
    %v1537 = vsel %vm440, %v1530, 0.0
    %v1538 = vpack.c.bf16 %v1516, %v1524
    %v1539 = vpack.c.bf16 %v1519, %v1525
    %v1548 = vunpack.c.l.b16 %v1287
    %v1549 = vunpack.c.l.b16 %v1288
    %v1550 = vunpack.c.l.b16 %v1289
    %v1551 = vunpack.c.l.b16 %v1290
    %v1552 = vunpack.c.l.b16 %v1291
    %v1553 = vunpack.c.l.b16 %v1292
    %v1554 = vunpack.c.l.b16 %v1293
    %v1555 = vunpack.c.l.b16 %v1294
    %v1556 = vpack.c.b16 %v1549, %v1548
    %v1557 = vpack.c.b16 %v1551, %v1550
    %v1558 = vpack.c.b16 %v1553, %v1552
    %v1559 = vpack.c.b16 %v1555, %v1554
    %1564 = vmatprep.subr.bf16.mxu0 0
    %1565 = vmatpush1.bf16.msra.mxu0 %v1556
    %1566 = vmatprep.subr.bf16.mxu0 0
    %1567 = vmatpush1.bf16.msra.mxu0 %v1557
    %1568 = vmatprep.subr.bf16.mxu0 0
    %1569 = vmatpush1.bf16.msra.mxu0 %v1558
    %1570 = vmatprep.subr.bf16.mxu0 0
    %1571 = vmatpush1.bf16.msra.mxu0 %v1559
    %1572 = vmatprep.subr.bf16.mxu0 0
    %1573 = vmatpush1.bf16.msra.mxu0 0
    %1574 = vmatprep.subr.bf16.mxu0 0
    %1575 = vmatpush1.bf16.msra.mxu0 0
    %1576 = vmatprep.subr.bf16.mxu0 0
    %1577 = vmatpush1.bf16.msra.mxu0 0
    %1578 = vmatprep.subr.bf16.mxu0 0
    %1579 = vmatpush1.bf16.msra.mxu0 0
    %1580 = vmatprep.subr.bf16.mxu0 0
    %1581 = vmatpush1.bf16.msra.mxu0 0
    %1582 = vmatprep.subr.bf16.mxu0 0
    %1583 = vmatpush1.bf16.msra.mxu0 0
    %1584 = vmatprep.subr.bf16.mxu0 0
    %1585 = vmatpush1.bf16.msra.mxu0 0
    %1586 = vmatprep.subr.bf16.mxu0 0
    %1587 = vmatpush1.bf16.msra.mxu0 0
    %1588 = vmatprep.subr.bf16.mxu0 0
    %1589 = vmatpush1.bf16.msra.mxu0 0
    %1590 = vmatprep.subr.bf16.mxu0 0
    %1591 = vmatpush1.bf16.msra.mxu0 0
    %1592 = vmatprep.subr.bf16.mxu0 0
    %1593 = vmatpush1.bf16.msra.mxu0 0
    %1594 = vmatprep.subr.bf16.mxu0 0
    %1595 = vmatpush1.bf16.msra.mxu0 0
    %1596 = vmatprep.mubr.bf16.mxu0 0
    %1597 = vmatmul.mubr.bf16.gmra.mrb[0].mxu0 %v1395
    %v1598 = vpop.f32.mrb[0].mxu0
    %v1599 = vadd.f32 0.0, %v1598
    %v1600 = vpop.f32.mrb[0].mxu0
    %v1601 = vpop.f32.mrb[0].mxu0
    %v1602 = vadd.f32 0.0, %v1601
    %v1603 = vpop.f32.mrb[0].mxu0
    %1604 = vmatprep.mubr.bf16.mxu0 0
    %1605 = vmatmul.mubr.bf16.gmra.mrb[0].mxu0 %v1398
    %v1606 = vpop.f32.mrb[0].mxu0
    %v1607 = vadd.f32 0.0, %v1606
    %v1608 = vpop.f32.mrb[0].mxu0
    %v1609 = vpop.f32.mrb[0].mxu0
    %v1610 = vadd.f32 0.0, %v1609
    %v1611 = vpop.f32.mrb[0].mxu0
    %1612 = vdwg.mxu0
    %v1621 = vunpack.c.l.b16 %v1279
    %v1622 = vunpack.c.l.b16 %v1280
    %v1623 = vunpack.c.l.b16 %v1281
    %v1624 = vunpack.c.l.b16 %v1282
    %v1625 = vunpack.c.l.b16 %v1283
    %v1626 = vunpack.c.l.b16 %v1284
    %v1627 = vunpack.c.l.b16 %v1285
    %v1628 = vunpack.c.l.b16 %v1286
    %v1629 = vpack.c.b16 %v1622, %v1621
    %v1630 = vpack.c.b16 %v1624, %v1623
    %v1631 = vpack.c.b16 %v1626, %v1625
    %v1632 = vpack.c.b16 %v1628, %v1627
    %v1638 = vsel %vm363, %v1538, 0
    %v1641 = vsel %vm363, %v1539, 0
    %1643 = vmatprep.subr.bf16.mxu0 0
    %1644 = vmatpush1.bf16.msra.mxu0 %v1629
    %1645 = vmatprep.subr.bf16.mxu0 0
    %1646 = vmatpush1.bf16.msra.mxu0 %v1630
    %1647 = vmatprep.subr.bf16.mxu0 0
    %1648 = vmatpush1.bf16.msra.mxu0 %v1631
    %1649 = vmatprep.subr.bf16.mxu0 0
    %1650 = vmatpush1.bf16.msra.mxu0 %v1632
    %1651 = vmatprep.subr.bf16.mxu0 0
    %1652 = vmatpush1.bf16.msra.mxu0 0
    %1653 = vmatprep.subr.bf16.mxu0 0
    %1654 = vmatpush1.bf16.msra.mxu0 0
    %1655 = vmatprep.subr.bf16.mxu0 0
    %1656 = vmatpush1.bf16.msra.mxu0 0
    %1657 = vmatprep.subr.bf16.mxu0 0
    %1658 = vmatpush1.bf16.msra.mxu0 0
    %1659 = vmatprep.subr.bf16.mxu0 0
    %1660 = vmatpush1.bf16.msra.mxu0 0
    %1661 = vmatprep.subr.bf16.mxu0 0
    %1662 = vmatpush1.bf16.msra.mxu0 0
    %1663 = vmatprep.subr.bf16.mxu0 0
    %1664 = vmatpush1.bf16.msra.mxu0 0
    %1665 = vmatprep.subr.bf16.mxu0 0
    %1666 = vmatpush1.bf16.msra.mxu0 0
    %1667 = vmatprep.subr.bf16.mxu0 0
    %1668 = vmatpush1.bf16.msra.mxu0 0
    %1669 = vmatprep.subr.bf16.mxu0 0
    %1670 = vmatpush1.bf16.msra.mxu0 0
    %1671 = vmatprep.subr.bf16.mxu0 0
    %1672 = vmatpush1.bf16.msra.mxu0 0
    %1673 = vmatprep.subr.bf16.mxu0 0
    %1674 = vmatpush1.bf16.msra.mxu0 0
    %1675 = vmatprep.mubr.bf16.mxu0 0
    %1676 = vmatmul.mubr.bf16.gmra.mrb[0].mxu0 %v1638
    %v1677 = vpop.f32.mrb[0].mxu0
    %v1678 = vadd.f32 %v1599, %v1677
    %v1679 = vpop.f32.mrb[0].mxu0
    %v1680 = vpop.f32.mrb[0].mxu0
    %v1681 = vadd.f32 %v1602, %v1680
    %v1682 = vpop.f32.mrb[0].mxu0
    %1683 = vmatprep.mubr.bf16.mxu0 0
    %1684 = vmatmul.mubr.bf16.gmra.mrb[0].mxu0 %v1641
    %v1685 = vpop.f32.mrb[0].mxu0
    %v1686 = vadd.f32 %v1607, %v1685
    %v1687 = vpop.f32.mrb[0].mxu0
    %v1688 = vpop.f32.mrb[0].mxu0
    %v1689 = vadd.f32 %v1610, %v1688
    %v1690 = vpop.f32.mrb[0].mxu0
    %1691 = vdwg.mxu0
    %v1692 = vpack.c.bf16 %v1536, %v1528
    %v1693 = vpack.c.bf16 %v1537, %v1531
    %v1702 = vunpack.c.l.b16 %v1295
    %v1703 = vunpack.c.l.b16 %v1296
    %v1704 = vunpack.c.l.b16 %v1297
    %v1705 = vunpack.c.l.b16 %v1298
    %v1706 = vunpack.c.l.b16 %v1299
    %v1707 = vunpack.c.l.b16 %v1300
    %v1708 = vunpack.c.l.b16 %v1301
    %v1709 = vunpack.c.l.b16 %v1302
    %v1710 = vpack.c.b16 %v1703, %v1702
    %v1711 = vpack.c.b16 %v1705, %v1704
    %v1712 = vpack.c.b16 %v1707, %v1706
    %v1713 = vpack.c.b16 %v1709, %v1708
    %v1719 = vsel %vm363, %v1692, 0
    %v1722 = vsel %vm363, %v1693, 0
    %1724 = vmatprep.subr.bf16.mxu0 0
    %1725 = vmatpush1.bf16.msra.mxu0 %v1710
    %1726 = vmatprep.subr.bf16.mxu0 0
    %1727 = vmatpush1.bf16.msra.mxu0 %v1711
    %1728 = vmatprep.subr.bf16.mxu0 0
    %1729 = vmatpush1.bf16.msra.mxu0 %v1712
    %1730 = vmatprep.subr.bf16.mxu0 0
    %1731 = vmatpush1.bf16.msra.mxu0 %v1713
    %1732 = vmatprep.subr.bf16.mxu0 0
    %1733 = vmatpush1.bf16.msra.mxu0 0
    %1734 = vmatprep.subr.bf16.mxu0 0
    %1735 = vmatpush1.bf16.msra.mxu0 0
    %1736 = vmatprep.subr.bf16.mxu0 0
    %1737 = vmatpush1.bf16.msra.mxu0 0
    %1738 = vmatprep.subr.bf16.mxu0 0
    %1739 = vmatpush1.bf16.msra.mxu0 0
    %1740 = vmatprep.subr.bf16.mxu0 0
    %1741 = vmatpush1.bf16.msra.mxu0 0
    %1742 = vmatprep.subr.bf16.mxu0 0
    %1743 = vmatpush1.bf16.msra.mxu0 0
    %1744 = vmatprep.subr.bf16.mxu0 0
    %1745 = vmatpush1.bf16.msra.mxu0 0
    %1746 = vmatprep.subr.bf16.mxu0 0
    %1747 = vmatpush1.bf16.msra.mxu0 0
    %1748 = vmatprep.subr.bf16.mxu0 0
    %1749 = vmatpush1.bf16.msra.mxu0 0
    %1750 = vmatprep.subr.bf16.mxu0 0
    %1751 = vmatpush1.bf16.msra.mxu0 0
    %1752 = vmatprep.subr.bf16.mxu0 0
    %1753 = vmatpush1.bf16.msra.mxu0 0
    %1754 = vmatprep.subr.bf16.mxu0 0
    %1755 = vmatpush1.bf16.msra.mxu0 0
    %1756 = vmatprep.mubr.bf16.mxu0 0
    %1757 = vmatmul.mubr.bf16.gmra.mrb[0].mxu0 %v1719
    %v1758 = vpop.f32.mrb[0].mxu0
    %v1759 = vadd.f32 0.0, %v1758
    %v1760 = vpop.f32.mrb[0].mxu0
    %v1761 = vpop.f32.mrb[0].mxu0
    %v1762 = vadd.f32 0.0, %v1761
    %v1763 = vpop.f32.mrb[0].mxu0
    %1764 = vmatprep.mubr.bf16.mxu0 0
    %1765 = vmatmul.mubr.bf16.gmra.mrb[0].mxu0 %v1722
    %v1766 = vpop.f32.mrb[0].mxu0
    %v1767 = vadd.f32 0.0, %v1766
    %v1768 = vpop.f32.mrb[0].mxu0
    %v1769 = vpop.f32.mrb[0].mxu0
    %v1770 = vadd.f32 0.0, %v1769
    %v1771 = vpop.f32.mrb[0].mxu0
    %1772 = vdwg.mxu0
    %v1773 = vadd.f32 %v1678, %v1759
    %v1774 = vadd.f32 %v1681, %v1762
    %v1775 = vadd.f32 %v1686, %v1767
    %v1776 = vadd.f32 %v1689, %v1770
    %v1778 = vlaneseq
    %v1779 = vshrl.u32 %v1778, 7
    %v1780 = vsub.s32 0, %v1779
    %v1781 = vrot.slane %v1303, %v1780
    %v1783 = vadd.f32 %v1773, %v1781
    %v1784 = vadd.f32 %v1774, %v1781
    %v1785 = vadd.f32 %v1775, %v1781
    %v1786 = vadd.f32 %v1776, %v1781
    %v1787 = vadd.f32 %v1783, %v1784
    %v1788 = vadd.f32 %v1787, %v1785
    %v1789 = vadd.f32 %v1788, %v1786
    %v1790 = vrot.slane %v1789, 4
    %v1791 = vadd.f32 %v1789, %v1790
    %v1792 = vrot.slane %v1791, 2
    %v1793 = vadd.f32 %v1791, %v1792
    %v1794 = vrot.slane %v1793, 1
    %v1795 = vadd.f32 %v1793, %v1794
    %v1796 = vmul.f32 %v1795, 0.03125
    %v1797 = vsub.f32 %v1783, %v1796
    %v1798 = vsub.f32 %v1784, %v1796
    %v1799 = vsub.f32 %v1785, %v1796
    %v1800 = vsub.f32 %v1786, %v1796
    %v1801 = vmul.f32 %v1797, %v1797
    %v1802 = vmul.f32 %v1798, %v1798
    %v1803 = vmul.f32 %v1799, %v1799
    %v1804 = vmul.f32 %v1800, %v1800
    %v1805 = vadd.f32 %v1801, %v1802
    %v1806 = vadd.f32 %v1805, %v1803
    %v1807 = vadd.f32 %v1806, %v1804
    %v1808 = vrot.slane %v1807, 4
    %v1809 = vadd.f32 %v1807, %v1808
    %v1810 = vrot.slane %v1809, 2
    %v1811 = vadd.f32 %v1809, %v1810
    %v1812 = vrot.slane %v1811, 1
    %v1813 = vadd.f32 %v1811, %v1812
    %v1814 = vmul.f32 %v1813, 0.03125
    %v1815 = vadd.f32 %v1814, 1e-05
    %v1816 = vrsqrt.pop %v1815
    %v1817 = vmul.f32 %v1304, %v1816
    %v1819 = vlaneseq
    %v1820 = vshrl.u32 %v1819, 7
    %v1821 = vsub.s32 0, %v1820
    %v1822 = vrot.slane %v1817, %v1821
    %v1824 = vmul.f32 %v1797, %v1822
    %v1825 = vmul.f32 %v1798, %v1822
    %v1826 = vmul.f32 %v1799, %v1822
    %v1827 = vmul.f32 %v1800, %v1822
    %v1829 = vlaneseq
    %v1830 = vshrl.u32 %v1829, 7
    %v1831 = vsub.s32 0, %v1830
    %v1832 = vrot.slane %v1305, %v1831
    %v1834 = vadd.f32 %v1824, %v1832
    %v1835 = vadd.f32 %v1825, %v1832
    %v1836 = vadd.f32 %v1826, %v1832
    %v1837 = vadd.f32 %v1827, %v1832
    %v1838 = vmax.f32 %v1834, 0.0
    %v1839 = vmax.f32 %v1835, 0.0
    %v1840 = vmax.f32 %v1836, 0.0
    %v1841 = vmax.f32 %v1837, 0.0
    %v1846 = vrot.slane %v1838, 7
    %v1847 = vrot.slane %v1839, 7
    %v1848 = vsel %vm427, %v1846, %v1847
    %v1849 = vrot.slane %v1840, 7
    %v1850 = vrot.slane %v1841, 7
    %v1851 = vsel %vm427, %v1849, %v1850
    %v1856 = vsel %vm427, 0.0, %v1846
    %v1857 = vsel %vm427, 0.0, %v1849
    %v1858 = vrot.slane %v1838, 1
    %v1859 = vrot.slane %v1839, 1
    %v1860 = vsel %vm440, %v1858, %v1859
    %v1861 = vrot.slane %v1840, 1
    %v1862 = vrot.slane %v1841, 1
    %v1863 = vsel %vm440, %v1861, %v1862
    %v1868 = vsel %vm440, %v1859, 0.0
    %v1869 = vsel %vm440, %v1862, 0.0
    %v1870 = vpack.c.bf16 %v1848, %v1856
    %v1871 = vpack.c.bf16 %v1851, %v1857
    %v1872 = vpack.c.bf16 %v1839, %v1838
    %v1873 = vpack.c.bf16 %v1841, %v1840
    %v1890 = vunpack.c.l.b16 %v1322
    %v1891 = vunpack.c.l.b16 %v1323
    %v1892 = vunpack.c.l.b16 %v1324
    %v1893 = vunpack.c.l.b16 %v1325
    %v1894 = vunpack.c.l.b16 %v1326
    %v1895 = vunpack.c.l.b16 %v1327
    %v1896 = vunpack.c.l.b16 %v1328
    %v1897 = vunpack.c.l.b16 %v1329
    %v1898 = vunpack.c.l.b16 %v1330
    %v1899 = vunpack.c.l.b16 %v1331
    %v1900 = vunpack.c.l.b16 %v1332
    %v1901 = vunpack.c.l.b16 %v1333
    %v1902 = vunpack.c.l.b16 %v1334
    %v1903 = vunpack.c.l.b16 %v1335
    %v1904 = vunpack.c.l.b16 %v1336
    %v1905 = vunpack.c.l.b16 %v1337
    %v1906 = vpack.c.b16 %v1891, %v1890
    %v1907 = vpack.c.b16 %v1893, %v1892
    %v1908 = vpack.c.b16 %v1895, %v1894
    %v1909 = vpack.c.b16 %v1897, %v1896
    %v1910 = vpack.c.b16 %v1899, %v1898
    %v1911 = vpack.c.b16 %v1901, %v1900
    %v1912 = vpack.c.b16 %v1903, %v1902
    %v1913 = vpack.c.b16 %v1905, %v1904
    %1922 = vmatprep.subr.bf16.mxu0 0
    %1923 = vmatpush1.bf16.msra.mxu0 %v1906
    %1924 = vmatprep.subr.bf16.mxu0 0
    %1925 = vmatpush1.bf16.msra.mxu0 %v1907
    %1926 = vmatprep.subr.bf16.mxu0 0
    %1927 = vmatpush1.bf16.msra.mxu0 %v1908
    %1928 = vmatprep.subr.bf16.mxu0 0
    %1929 = vmatpush1.bf16.msra.mxu0 %v1909
    %1930 = vmatprep.subr.bf16.mxu0 0
    %1931 = vmatpush1.bf16.msra.mxu0 %v1910
    %1932 = vmatprep.subr.bf16.mxu0 0
    %1933 = vmatpush1.bf16.msra.mxu0 %v1911
    %1934 = vmatprep.subr.bf16.mxu0 0
    %1935 = vmatpush1.bf16.msra.mxu0 %v1912
    %1936 = vmatprep.subr.bf16.mxu0 0
    %1937 = vmatpush1.bf16.msra.mxu0 %v1913
    %1938 = vmatprep.subr.bf16.mxu0 0
    %1939 = vmatpush1.bf16.msra.mxu0 0
    %1940 = vmatprep.subr.bf16.mxu0 0
    %1941 = vmatpush1.bf16.msra.mxu0 0
    %1942 = vmatprep.subr.bf16.mxu0 0
    %1943 = vmatpush1.bf16.msra.mxu0 0
    %1944 = vmatprep.subr.bf16.mxu0 0
    %1945 = vmatpush1.bf16.msra.mxu0 0
    %1946 = vmatprep.subr.bf16.mxu0 0
    %1947 = vmatpush1.bf16.msra.mxu0 0
    %1948 = vmatprep.subr.bf16.mxu0 0
    %1949 = vmatpush1.bf16.msra.mxu0 0
    %1950 = vmatprep.subr.bf16.mxu0 0
    %1951 = vmatpush1.bf16.msra.mxu0 0
    %1952 = vmatprep.subr.bf16.mxu0 0
    %1953 = vmatpush1.bf16.msra.mxu0 0
    %1954 = vmatprep.mubr.bf16.mxu0 0
    %1955 = vmatmul.mubr.bf16.gmra.mrb[0].mxu0 %v1872
    %v1956 = vpop.f32.mrb[0].mxu0
    %v1957 = vadd.f32 0.0, %v1956
    %v1958 = vpop.f32.mrb[0].mxu0
    %v1959 = vpop.f32.mrb[0].mxu0
    %v1960 = vadd.f32 0.0, %v1959
    %v1961 = vpop.f32.mrb[0].mxu0
    %1962 = vmatprep.mubr.bf16.mxu0 0
    %1963 = vmatmul.mubr.bf16.gmra.mrb[0].mxu0 %v1873
    %v1964 = vpop.f32.mrb[0].mxu0
    %v1965 = vadd.f32 0.0, %v1964
    %v1966 = vpop.f32.mrb[0].mxu0
    %v1967 = vpop.f32.mrb[0].mxu0
    %v1968 = vadd.f32 0.0, %v1967
    %v1969 = vpop.f32.mrb[0].mxu0
    %1970 = vdwg.mxu0
    %v1987 = vunpack.c.l.b16 %v1306
    %v1988 = vunpack.c.l.b16 %v1307
    %v1989 = vunpack.c.l.b16 %v1308
    %v1990 = vunpack.c.l.b16 %v1309
    %v1991 = vunpack.c.l.b16 %v1310
    %v1992 = vunpack.c.l.b16 %v1311
    %v1993 = vunpack.c.l.b16 %v1312
    %v1994 = vunpack.c.l.b16 %v1313
    %v1995 = vunpack.c.l.b16 %v1314
    %v1996 = vunpack.c.l.b16 %v1315
    %v1997 = vunpack.c.l.b16 %v1316
    %v1998 = vunpack.c.l.b16 %v1317
    %v1999 = vunpack.c.l.b16 %v1318
    %v2000 = vunpack.c.l.b16 %v1319
    %v2001 = vunpack.c.l.b16 %v1320
    %v2002 = vunpack.c.l.b16 %v1321
    %v2003 = vpack.c.b16 %v1988, %v1987
    %v2004 = vpack.c.b16 %v1990, %v1989
    %v2005 = vpack.c.b16 %v1992, %v1991
    %v2006 = vpack.c.b16 %v1994, %v1993
    %v2007 = vpack.c.b16 %v1996, %v1995
    %v2008 = vpack.c.b16 %v1998, %v1997
    %v2009 = vpack.c.b16 %v2000, %v1999
    %v2010 = vpack.c.b16 %v2002, %v2001
    %2019 = vmatprep.subr.bf16.mxu0 0
    %2020 = vmatpush1.bf16.msra.mxu0 %v2003
    %2021 = vmatprep.subr.bf16.mxu0 0
    %2022 = vmatpush1.bf16.msra.mxu0 %v2004
    %2023 = vmatprep.subr.bf16.mxu0 0
    %2024 = vmatpush1.bf16.msra.mxu0 %v2005
    %2025 = vmatprep.subr.bf16.mxu0 0
    %2026 = vmatpush1.bf16.msra.mxu0 %v2006
    %2027 = vmatprep.subr.bf16.mxu0 0
    %2028 = vmatpush1.bf16.msra.mxu0 %v2007
    %2029 = vmatprep.subr.bf16.mxu0 0
    %2030 = vmatpush1.bf16.msra.mxu0 %v2008
    %2031 = vmatprep.subr.bf16.mxu0 0
    %2032 = vmatpush1.bf16.msra.mxu0 %v2009
    %2033 = vmatprep.subr.bf16.mxu0 0
    %2034 = vmatpush1.bf16.msra.mxu0 %v2010
    %2035 = vmatprep.subr.bf16.mxu0 0
    %2036 = vmatpush1.bf16.msra.mxu0 0
    %2037 = vmatprep.subr.bf16.mxu0 0
    %2038 = vmatpush1.bf16.msra.mxu0 0
    %2039 = vmatprep.subr.bf16.mxu0 0
    %2040 = vmatpush1.bf16.msra.mxu0 0
    %2041 = vmatprep.subr.bf16.mxu0 0
    %2042 = vmatpush1.bf16.msra.mxu0 0
    %2043 = vmatprep.subr.bf16.mxu0 0
    %2044 = vmatpush1.bf16.msra.mxu0 0
    %2045 = vmatprep.subr.bf16.mxu0 0
    %2046 = vmatpush1.bf16.msra.mxu0 0
    %2047 = vmatprep.subr.bf16.mxu0 0
    %2048 = vmatpush1.bf16.msra.mxu0 0
    %2049 = vmatprep.subr.bf16.mxu0 0
    %2050 = vmatpush1.bf16.msra.mxu0 0
    %2051 = vmatprep.mubr.bf16.mxu0 0
    %2052 = vmatmul.mubr.bf16.gmra.mrb[0].mxu0 %v1870
    %v2053 = vpop.f32.mrb[0].mxu0
    %v2054 = vadd.f32 %v1957, %v2053
    %v2055 = vpop.f32.mrb[0].mxu0
    %v2056 = vpop.f32.mrb[0].mxu0
    %v2057 = vadd.f32 %v1960, %v2056
    %v2058 = vpop.f32.mrb[0].mxu0
    %2059 = vmatprep.mubr.bf16.mxu0 0
    %2060 = vmatmul.mubr.bf16.gmra.mrb[0].mxu0 %v1871
    %v2061 = vpop.f32.mrb[0].mxu0
    %v2062 = vadd.f32 %v1965, %v2061
    %v2063 = vpop.f32.mrb[0].mxu0
    %v2064 = vpop.f32.mrb[0].mxu0
    %v2065 = vadd.f32 %v1968, %v2064
    %v2066 = vpop.f32.mrb[0].mxu0
    %2067 = vdwg.mxu0
    %v2068 = vpack.c.bf16 %v1868, %v1860
    %v2069 = vpack.c.bf16 %v1869, %v1863
    %v2086 = vunpack.c.l.b16 %v1338
    %v2087 = vunpack.c.l.b16 %v1339
    %v2088 = vunpack.c.l.b16 %v1340
    %v2089 = vunpack.c.l.b16 %v1341
    %v2090 = vunpack.c.l.b16 %v1342
    %v2091 = vunpack.c.l.b16 %v1343
    %v2092 = vunpack.c.l.b16 %v1344
    %v2093 = vunpack.c.l.b16 %v1345
    %v2094 = vunpack.c.l.b16 %v1346
    %v2095 = vunpack.c.l.b16 %v1347
    %v2096 = vunpack.c.l.b16 %v1348
    %v2097 = vunpack.c.l.b16 %v1349
    %v2098 = vunpack.c.l.b16 %v1350
    %v2099 = vunpack.c.l.b16 %v1351
    %v2100 = vunpack.c.l.b16 %v1352
    %v2101 = vunpack.c.l.b16 %v1353
    %v2102 = vpack.c.b16 %v2087, %v2086
    %v2103 = vpack.c.b16 %v2089, %v2088
    %v2104 = vpack.c.b16 %v2091, %v2090
    %v2105 = vpack.c.b16 %v2093, %v2092
    %v2106 = vpack.c.b16 %v2095, %v2094
    %v2107 = vpack.c.b16 %v2097, %v2096
    %v2108 = vpack.c.b16 %v2099, %v2098
    %v2109 = vpack.c.b16 %v2101, %v2100
    %2118 = vmatprep.subr.bf16.mxu0 0
    %2119 = vmatpush1.bf16.msra.mxu0 %v2102
    %2120 = vmatprep.subr.bf16.mxu0 0
    %2121 = vmatpush1.bf16.msra.mxu0 %v2103
    %2122 = vmatprep.subr.bf16.mxu0 0
    %2123 = vmatpush1.bf16.msra.mxu0 %v2104
    %2124 = vmatprep.subr.bf16.mxu0 0
    %2125 = vmatpush1.bf16.msra.mxu0 %v2105
    %2126 = vmatprep.subr.bf16.mxu0 0
    %2127 = vmatpush1.bf16.msra.mxu0 %v2106
    %2128 = vmatprep.subr.bf16.mxu0 0
    %2129 = vmatpush1.bf16.msra.mxu0 %v2107
    %2130 = vmatprep.subr.bf16.mxu0 0
    %2131 = vmatpush1.bf16.msra.mxu0 %v2108
    %2132 = vmatprep.subr.bf16.mxu0 0
    %2133 = vmatpush1.bf16.msra.mxu0 %v2109
    %2134 = vmatprep.subr.bf16.mxu0 0
    %2135 = vmatpush1.bf16.msra.mxu0 0
    %2136 = vmatprep.subr.bf16.mxu0 0
    %2137 = vmatpush1.bf16.msra.mxu0 0
    %2138 = vmatprep.subr.bf16.mxu0 0
    %2139 = vmatpush1.bf16.msra.mxu0 0
    %2140 = vmatprep.subr.bf16.mxu0 0
    %2141 = vmatpush1.bf16.msra.mxu0 0
    %2142 = vmatprep.subr.bf16.mxu0 0
    %2143 = vmatpush1.bf16.msra.mxu0 0
    %2144 = vmatprep.subr.bf16.mxu0 0
    %2145 = vmatpush1.bf16.msra.mxu0 0
    %2146 = vmatprep.subr.bf16.mxu0 0
    %2147 = vmatpush1.bf16.msra.mxu0 0
    %2148 = vmatprep.subr.bf16.mxu0 0
    %2149 = vmatpush1.bf16.msra.mxu0 0
    %2150 = vmatprep.mubr.bf16.mxu0 0
    %2151 = vmatmul.mubr.bf16.gmra.mrb[0].mxu0 %v2068
    %v2152 = vpop.f32.mrb[0].mxu0
    %v2153 = vadd.f32 0.0, %v2152
    %v2154 = vpop.f32.mrb[0].mxu0
    %v2155 = vpop.f32.mrb[0].mxu0
    %v2156 = vadd.f32 0.0, %v2155
    %v2157 = vpop.f32.mrb[0].mxu0
    %2158 = vmatprep.mubr.bf16.mxu0 0
    %2159 = vmatmul.mubr.bf16.gmra.mrb[0].mxu0 %v2069
    %v2160 = vpop.f32.mrb[0].mxu0
    %v2161 = vadd.f32 0.0, %v2160
    %v2162 = vpop.f32.mrb[0].mxu0
    %v2163 = vpop.f32.mrb[0].mxu0
    %v2164 = vadd.f32 0.0, %v2163
    %v2165 = vpop.f32.mrb[0].mxu0
    %2166 = vdwg.mxu0
    %v2167 = vadd.f32 %v2054, %v2153
    %v2168 = vadd.f32 %v2057, %v2156
    %v2169 = vadd.f32 %v2062, %v2161
    %v2170 = vadd.f32 %v2065, %v2164
    %v2172 = vlaneseq
    %v2173 = vshrl.u32 %v2172, 7
    %v2174 = vsub.s32 0, %v2173
    %v2175 = vrot.slane %v1354, %v2174
    %v2177 = vadd.f32 %v2167, %v2175
    %v2178 = vadd.f32 %v2168, %v2175
    %v2179 = vadd.f32 %v2169, %v2175
    %v2180 = vadd.f32 %v2170, %v2175
    %v2181 = vadd.f32 %v2177, %v2178
    %v2182 = vadd.f32 %v2181, %v2179
    %v2183 = vadd.f32 %v2182, %v2180
    %v2184 = vrot.slane %v2183, 4
    %v2185 = vadd.f32 %v2183, %v2184
    %v2186 = vrot.slane %v2185, 2
    %v2187 = vadd.f32 %v2185, %v2186
    %v2188 = vrot.slane %v2187, 1
    %v2189 = vadd.f32 %v2187, %v2188
    %v2190 = vmul.f32 %v2189, 0.03125
    %v2191 = vsub.f32 %v2177, %v2190
    %v2192 = vsub.f32 %v2178, %v2190
    %v2193 = vsub.f32 %v2179, %v2190
    %v2194 = vsub.f32 %v2180, %v2190
    %v2195 = vmul.f32 %v2191, %v2191
    %v2196 = vmul.f32 %v2192, %v2192
    %v2197 = vmul.f32 %v2193, %v2193
    %v2198 = vmul.f32 %v2194, %v2194
    %v2199 = vadd.f32 %v2195, %v2196
    %v2200 = vadd.f32 %v2199, %v2197
    %v2201 = vadd.f32 %v2200, %v2198
    %v2202 = vrot.slane %v2201, 4
    %v2203 = vadd.f32 %v2201, %v2202
    %v2204 = vrot.slane %v2203, 2
    %v2205 = vadd.f32 %v2203, %v2204
    %v2206 = vrot.slane %v2205, 1
    %v2207 = vadd.f32 %v2205, %v2206
    %v2208 = vmul.f32 %v2207, 0.03125
    %v2209 = vadd.f32 %v2208, 1e-05
    %v2210 = vrsqrt.pop %v2209
    %v2211 = vmul.f32 %v1355, %v2210
    %v2213 = vlaneseq
    %v2214 = vshrl.u32 %v2213, 7
    %v2215 = vsub.s32 0, %v2214
    %v2216 = vrot.slane %v2211, %v2215
    %v2218 = vmul.f32 %v2191, %v2216
    %v2219 = vmul.f32 %v2192, %v2216
    %v2220 = vmul.f32 %v2193, %v2216
    %v2221 = vmul.f32 %v2194, %v2216
    %v2223 = vlaneseq
    %v2224 = vshrl.u32 %v2223, 7
    %v2225 = vsub.s32 0, %v2224
    %v2226 = vrot.slane %v1356, %v2225
    %v2228 = vadd.f32 %v2218, %v2226
    %v2229 = vadd.f32 %v2219, %v2226
    %v2230 = vadd.f32 %v2220, %v2226
    %v2231 = vadd.f32 %v2221, %v2226
    %v2232 = vadd.f32 %v2228, %v1506
    %v2233 = vadd.f32 %v2229, %v1507
    %v2234 = vadd.f32 %v2230, %v1508
    %v2235 = vadd.f32 %v2231, %v1509
    %v2236 = vmax.f32 %v2232, 0.0
    %v2237 = vmax.f32 %v2233, 0.0
    %v2238 = vmax.f32 %v2234, 0.0
    %v2239 = vmax.f32 %v2235, 0.0
    %v2240 = vld [vmem:[%s59] sm:$0xf]
    %v2241 = vld [vmem:[%s59 + $0x4] sm:$0xf]
    %v2242 = vld [vmem:[%s59 + $0x8] sm:$0xf]
    %v2243 = vld [vmem:[%s59 + $0xc] sm:$0xf]
    %v2244 = vld [vmem:[%s59 + $0x10] sm:$0xf]
    %v2245 = vld [vmem:[%s59 + $0x14] sm:$0xf]
    %v2246 = vld [vmem:[%s59 + $0x18] sm:$0xf]
    %v2247 = vld [vmem:[%s59 + $0x1c] sm:$0xf]
    %v2248 = vld [vmem:[%s59 + $0x20] sm:$0xf]
    %v2249 = vld [vmem:[%s59 + $0x24] sm:$0xf]
    %v2250 = vld [vmem:[%s59 + $0x28] sm:$0xf]
    %v2251 = vld [vmem:[%s59 + $0x2c] sm:$0xf]
    %v2252 = vld [vmem:[%s59 + $0x30] sm:$0xf]
    %v2253 = vld [vmem:[%s59 + $0x34] sm:$0xf]
    %v2254 = vld [vmem:[%s59 + $0x38] sm:$0xf]
    %v2255 = vld [vmem:[%s59 + $0x3c] sm:$0xf]
    %v2256 = vld [vmem:[%s61] sm:$0xf]
    %v2257 = vadd.f32 %v2236, %v2237
    %v2258 = vrot.slane %v2257, 4
    %v2259 = vadd.f32 %v2257, %v2258
    %v2260 = vrot.slane %v2259, 2
    %v2261 = vadd.f32 %v2259, %v2260
    %v2262 = vrot.slane %v2261, 1
    %v2263 = vadd.f32 %v2261, %v2262
    %v2264 = vadd.f32 %v2238, %v2239
    %v2265 = vrot.slane %v2264, 4
    %v2266 = vadd.f32 %v2264, %v2265
    %v2267 = vrot.slane %v2266, 2
    %v2268 = vadd.f32 %v2266, %v2267
    %v2269 = vrot.slane %v2268, 1
    %v2270 = vadd.f32 %v2268, %v2269
    %v2271 = vmul.f32 %v2263, %v1108
    %v2272 = vmul.f32 %v2270, %v1108
    %v2273 = vpack.c.bf16 %v2271, %v2271
    %v2274 = vpack.c.bf16 %v2272, %v2272
    %v2277 = vunpack.c.l.b16 %v2273
    %v2278 = vunpack.c.l.b16 %v2274
    %v2279 = vsel %vm1117, %v2278, %v2277
    %v2280 = vpack.c.b16 %v2279, %v2279
    %v2298 = vunpack.c.l.b16 %v2240
    %v2299 = vunpack.c.l.b16 %v2241
    %v2300 = vunpack.c.l.b16 %v2242
    %v2301 = vunpack.c.l.b16 %v2243
    %v2302 = vunpack.c.l.b16 %v2244
    %v2303 = vunpack.c.l.b16 %v2245
    %v2304 = vunpack.c.l.b16 %v2246
    %v2305 = vunpack.c.l.b16 %v2247
    %v2306 = vunpack.c.l.b16 %v2248
    %v2307 = vunpack.c.l.b16 %v2249
    %v2308 = vunpack.c.l.b16 %v2250
    %v2309 = vunpack.c.l.b16 %v2251
    %v2310 = vunpack.c.l.b16 %v2252
    %v2311 = vunpack.c.l.b16 %v2253
    %v2312 = vunpack.c.l.b16 %v2254
    %v2313 = vunpack.c.l.b16 %v2255
    %v2314 = vpack.c.b16 %v2299, %v2298
    %v2315 = vpack.c.b16 %v2301, %v2300
    %v2316 = vpack.c.b16 %v2303, %v2302
    %v2317 = vpack.c.b16 %v2305, %v2304
    %v2318 = vpack.c.b16 %v2307, %v2306
    %v2319 = vpack.c.b16 %v2309, %v2308
    %v2320 = vpack.c.b16 %v2311, %v2310
    %v2321 = vpack.c.b16 %v2313, %v2312
    %2330 = vmatprep.subr.bf16.mxu0 0
    %2331 = vmatpush1.bf16.msra.mxu0 %v2314
    %2332 = vmatprep.subr.bf16.mxu0 0
    %2333 = vmatpush1.bf16.msra.mxu0 %v2315
    %2334 = vmatprep.subr.bf16.mxu0 0
    %2335 = vmatpush1.bf16.msra.mxu0 %v2316
    %2336 = vmatprep.subr.bf16.mxu0 0
    %2337 = vmatpush1.bf16.msra.mxu0 %v2317
    %2338 = vmatprep.subr.bf16.mxu0 0
    %2339 = vmatpush1.bf16.msra.mxu0 %v2318
    %2340 = vmatprep.subr.bf16.mxu0 0
    %2341 = vmatpush1.bf16.msra.mxu0 %v2319
    %2342 = vmatprep.subr.bf16.mxu0 0
    %2343 = vmatpush1.bf16.msra.mxu0 %v2320
    %2344 = vmatprep.subr.bf16.mxu0 0
    %2345 = vmatpush1.bf16.msra.mxu0 %v2321
    %2346 = vmatprep.subr.bf16.mxu0 0
    %2347 = vmatpush1.bf16.msra.mxu0 0
    %2348 = vmatprep.subr.bf16.mxu0 0
    %2349 = vmatpush1.bf16.msra.mxu0 0
    %2350 = vmatprep.subr.bf16.mxu0 0
    %2351 = vmatpush1.bf16.msra.mxu0 0
    %2352 = vmatprep.subr.bf16.mxu0 0
    %2353 = vmatpush1.bf16.msra.mxu0 0
    %2354 = vmatprep.subr.bf16.mxu0 0
    %2355 = vmatpush1.bf16.msra.mxu0 0
    %2356 = vmatprep.subr.bf16.mxu0 0
    %2357 = vmatpush1.bf16.msra.mxu0 0
    %2358 = vmatprep.subr.bf16.mxu0 0
    %2359 = vmatpush1.bf16.msra.mxu0 0
    %2360 = vmatprep.subr.bf16.mxu0 0
    %2361 = vmatpush1.bf16.msra.mxu0 0
    %2362 = vmatprep.mubr.bf16.mxu0 0
    %2363 = vmatmul.mubr.bf16.gmra.mrb[0].mxu0 %v2280
    %v2364 = vpop.f32.mrb[0].mxu0
    %v2365 = vadd.f32 0.0, %v2364
    %v2366 = vpop.f32.mrb[0].mxu0
    %v2367 = vpop.f32.mrb[0].mxu0
    %v2368 = vpop.f32.mrb[0].mxu0
    %2369 = vdwg.mxu0
    %v2370 = vmax.f32 %v2365, 0.0
    %v2371 = vpack.c.bf16 %v2370, %v2370
    %v2373 = vsel %vm163, %v2371, 0
    %v2376 = vsel %vm170, %v2256, 0
    %2378 = vmatprep.subr.bf16.mxu0 0
    %2379 = vmatpush1.bf16.msra.mxu0 %v2376
    %2380 = vmatprep.subr.bf16.mxu0 0
    %2381 = vmatpush1.bf16.msra.mxu0 0
    %2382 = vmatprep.subr.bf16.mxu0 0
    %2383 = vmatpush1.bf16.msra.mxu0 0
    %2384 = vmatprep.subr.bf16.mxu0 0
    %2385 = vmatpush1.bf16.msra.mxu0 0
    %2386 = vmatprep.subr.bf16.mxu0 0
    %2387 = vmatpush1.bf16.msra.mxu0 0
    %2388 = vmatprep.subr.bf16.mxu0 0
    %2389 = vmatpush1.bf16.msra.mxu0 0
    %2390 = vmatprep.subr.bf16.mxu0 0
    %2391 = vmatpush1.bf16.msra.mxu0 0
    %2392 = vmatprep.subr.bf16.mxu0 0
    %2393 = vmatpush1.bf16.msra.mxu0 0
    %2394 = vmatprep.subr.bf16.mxu0 0
    %2395 = vmatpush1.bf16.msra.mxu0 0
    %2396 = vmatprep.subr.bf16.mxu0 0
    %2397 = vmatpush1.bf16.msra.mxu0 0
    %2398 = vmatprep.subr.bf16.mxu0 0
    %2399 = vmatpush1.bf16.msra.mxu0 0
    %2400 = vmatprep.subr.bf16.mxu0 0
    %2401 = vmatpush1.bf16.msra.mxu0 0
    %2402 = vmatprep.subr.bf16.mxu0 0
    %2403 = vmatpush1.bf16.msra.mxu0 0
    %2404 = vmatprep.subr.bf16.mxu0 0
    %2405 = vmatpush1.bf16.msra.mxu0 0
    %2406 = vmatprep.subr.bf16.mxu0 0
    %2407 = vmatpush1.bf16.msra.mxu0 0
    %2408 = vmatprep.subr.bf16.mxu0 0
    %2409 = vmatpush1.bf16.msra.mxu0 0
    %2410 = vmatprep.mubr.bf16.mxu0 0
    %2411 = vmatmul.mubr.bf16.gmra.mrb[0].mxu0 %v2373
    %v2412 = vpop.f32.mrb[0].mxu0
    %v2413 = vadd.f32 0.0, %v2412
    %v2414 = vpop.f32.mrb[0].mxu0
    %v2415 = vpop.f32.mrb[0].mxu0
    %v2416 = vpop.f32.mrb[0].mxu0
    %2417 = vdwg.mxu0
    %v2418 = vsub.f32 0.0, %v2413
    %v2419 = vmul.f32 %v2418, 1.442695
    %v2420 = vpow.pop %v2419
    %v2421 = vadd.f32 %v2420, 1.0
    %v2422 = vrcp.pop %v2421
    %v2425 = vunpack.c.l.s4 1966171168
    %v2426 = vunpack.c.0.s8 %v2425
    %v2427 = vlaneseq
    %v2428 = vshrl.u32 %v2427, 7
    %v2429 = vsub.s32 %v2426, %v2428
    %v2430 = vrot.slane %v2422, %v2429
    %v2431 = vcombine.high %v2430, %v2430
    %v2433 = vunpack.c.l.s4 1966171168
    %v2434 = vunpack.c.0.s8 %v2433
    %v2435 = vlaneseq
    %v2436 = vshrl.u32 %v2435, 7
    %v2437 = vsub.s32 %v2434, %v2436
    %v2438 = vrot.slane %v2430, %v2437
    %v2440 = vunpack.c.l.s4 1966171168
    %v2441 = vunpack.c.0.s8 %v2440
    %v2442 = vlaneseq
    %v2443 = vshrl.u32 %v2442, 7
    %v2444 = vsub.s32 %v2441, %v2443
    %v2445 = vrot.slane %v2431, %v2444
    %v2446 = vlaneseq
    %v2447 = vshrl.u32 %v2446, 7
    %v2448 = vsub.s32 0, %v2447
    %v2449 = vrot.slane %v2438, %v2448
    %v2450 = vlaneseq
    %v2451 = vshrl.u32 %v2450, 7
    %v2452 = vsub.s32 0, %v2451
    %v2453 = vrot.slane %v2445, %v2452
    %v2456 = vmul.f32 %v2236, %v2449
    %v2457 = vmul.f32 %v2237, %v2449
    %v2458 = vmul.f32 %v2238, %v2453
    %v2459 = vmul.f32 %v2239, %v2453
    %v2460 = vld [vmem:[%s63] sm:$0xff]
    %v2461 = vld [vmem:[%s63 + $0x8] sm:$0xf]
    %v2462 = vld [vmem:[%s63 + $0xc] sm:$0xff]
    %v2463 = vld [vmem:[%s63 + $0x14] sm:$0xf]
    %v2464 = vld [vmem:[%s63 + $0x18] sm:$0xff]
    %v2465 = vld [vmem:[%s63 + $0x20] sm:$0xf]
    %v2466 = vld [vmem:[%s63 + $0x24] sm:$0xff]
    %v2467 = vld [vmem:[%s63 + $0x2c] sm:$0xf]
    %v2468 = vld [vmem:[%s63 + $0x30] sm:$0xff]
    %v2469 = vld [vmem:[%s63 + $0x38] sm:$0xf]
    %v2470 = vld [vmem:[%s63 + $0x3c] sm:$0xff]
    %v2471 = vld [vmem:[%s63 + $0x44] sm:$0xf]
    %v2472 = vld [vmem:[%s63 + $0x48] sm:$0xff]
    %v2473 = vld [vmem:[%s63 + $0x50] sm:$0xf]
    %v2474 = vld [vmem:[%s63 + $0x54] sm:$0xff]
    %v2475 = vld [vmem:[%s63 + $0x5c] sm:$0xf]
    %v2476 = vld [vmem:[%s63 + $0x60] sm:$0xff]
    %v2477 = vld [vmem:[%s63 + $0x68] sm:$0xf]
    %v2478 = vld [vmem:[%s63 + $0x6c] sm:$0xff]
    %v2479 = vld [vmem:[%s63 + $0x74] sm:$0xf]
    %v2480 = vld [vmem:[%s63 + $0x78] sm:$0xff]
    %v2481 = vld [vmem:[%s63 + $0x80] sm:$0xf]
    %v2482 = vld [vmem:[%s63 + $0x84] sm:$0xff]
    %v2483 = vld [vmem:[%s63 + $0x8c] sm:$0xf]
    %v2484 = vld [vmem:[%s63 + $0x90] sm:$0xff]
    %v2485 = vld [vmem:[%s63 + $0x98] sm:$0xf]
    %v2486 = vld [vmem:[%s63 + $0x9c] sm:$0xff]
    %v2487 = vld [vmem:[%s63 + $0xa4] sm:$0xf]
    %v2488 = vld [vmem:[%s63 + $0xa8] sm:$0xff]
    %v2489 = vld [vmem:[%s63 + $0xb0] sm:$0xf]
    %v2490 = vld [vmem:[%s63 + $0xb4] sm:$0xff]
    %v2491 = vld [vmem:[%s63 + $0xbc] sm:$0xf]
    %v2492 = vpack.c.bf16 %v2457, %v2456
    %v2493 = vpack.c.bf16 %v2459, %v2458
    %v2494 = vld [vmem:[%s65] sm:$0x7]
    %v2496 = vlaneseq
    %v2497 = vshrl.u32 %v2496, 7
    %v2498 = vsub.s32 0, %v2497
    %v2499 = vrot.slane %v2494, %v2498
    %v2500 = vlaneseq
    %v2501 = vshrl.u32 %v2500, 7
    %v2502 = vsub.s32 1, %v2501
    %v2503 = vrot.slane %v2494, %v2502
    %v2504 = vlaneseq
    %v2505 = vshrl.u32 %v2504, 7
    %v2506 = vsub.s32 2, %v2505
    %v2507 = vrot.slane %v2494, %v2506
    %v2543 = vunpack.c.l.b16 %v2460
    %v2544 = vunpack.c.h.b16 %v2460
    %v2545 = vunpack.c.l.b16 %v2461
    %v2546 = vunpack.c.l.b16 %v2462
    %v2547 = vunpack.c.h.b16 %v2462
    %v2548 = vunpack.c.l.b16 %v2463
    %v2549 = vunpack.c.l.b16 %v2464
    %v2550 = vunpack.c.h.b16 %v2464
    %v2551 = vunpack.c.l.b16 %v2465
    %v2552 = vunpack.c.l.b16 %v2466
    %v2553 = vunpack.c.h.b16 %v2466
    %v2554 = vunpack.c.l.b16 %v2467
    %v2555 = vunpack.c.l.b16 %v2468
    %v2556 = vunpack.c.h.b16 %v2468
    %v2557 = vunpack.c.l.b16 %v2469
    %v2558 = vunpack.c.l.b16 %v2470
    %v2559 = vunpack.c.h.b16 %v2470
    %v2560 = vunpack.c.l.b16 %v2471
    %v2561 = vunpack.c.l.b16 %v2472
    %v2562 = vunpack.c.h.b16 %v2472
    %v2563 = vunpack.c.l.b16 %v2473
    %v2564 = vunpack.c.l.b16 %v2474
    %v2565 = vunpack.c.h.b16 %v2474
    %v2566 = vunpack.c.l.b16 %v2475
    %v2567 = vunpack.c.l.b16 %v2476
    %v2568 = vunpack.c.h.b16 %v2476
    %v2569 = vunpack.c.l.b16 %v2477
    %v2570 = vunpack.c.l.b16 %v2478
    %v2571 = vunpack.c.h.b16 %v2478
    %v2572 = vunpack.c.l.b16 %v2479
    %v2573 = vunpack.c.l.b16 %v2480
    %v2574 = vunpack.c.h.b16 %v2480
    %v2575 = vunpack.c.l.b16 %v2481
    %v2576 = vunpack.c.l.b16 %v2482
    %v2577 = vunpack.c.h.b16 %v2482
    %v2578 = vunpack.c.l.b16 %v2483
    %v2579 = vunpack.c.l.b16 %v2484
    %v2580 = vunpack.c.h.b16 %v2484
    %v2581 = vunpack.c.l.b16 %v2485
    %v2582 = vunpack.c.l.b16 %v2486
    %v2583 = vunpack.c.h.b16 %v2486
    %v2584 = vunpack.c.l.b16 %v2487
    %v2585 = vunpack.c.l.b16 %v2488
    %v2586 = vunpack.c.h.b16 %v2488
    %v2587 = vunpack.c.l.b16 %v2489
    %v2588 = vunpack.c.l.b16 %v2490
    %v2589 = vunpack.c.h.b16 %v2490
    %v2590 = vunpack.c.l.b16 %v2491
    %v2591 = vpack.c.b16 %v2546, %v2543
    %v2592 = vpack.c.b16 %v2547, %v2544
    %v2593 = vpack.c.b16 %v2548, %v2545
    %v2594 = vpack.c.b16 %v2552, %v2549
    %v2595 = vpack.c.b16 %v2553, %v2550
    %v2596 = vpack.c.b16 %v2554, %v2551
    %v2597 = vpack.c.b16 %v2558, %v2555
    %v2598 = vpack.c.b16 %v2559, %v2556
    %v2599 = vpack.c.b16 %v2560, %v2557
    %v2600 = vpack.c.b16 %v2564, %v2561
    %v2601 = vpack.c.b16 %v2565, %v2562
    %v2602 = vpack.c.b16 %v2566, %v2563
    %v2603 = vpack.c.b16 %v2570, %v2567
    %v2604 = vpack.c.b16 %v2571, %v2568
    %v2605 = vpack.c.b16 %v2572, %v2569
    %v2606 = vpack.c.b16 %v2576, %v2573
    %v2607 = vpack.c.b16 %v2577, %v2574
    %v2608 = vpack.c.b16 %v2578, %v2575
    %v2609 = vpack.c.b16 %v2582, %v2579
    %v2610 = vpack.c.b16 %v2583, %v2580
    %v2611 = vpack.c.b16 %v2584, %v2581
    %v2612 = vpack.c.b16 %v2588, %v2585
    %v2613 = vpack.c.b16 %v2589, %v2586
    %v2614 = vpack.c.b16 %v2590, %v2587
    %2639 = vmatprep.subr.bf16.mxu0 %v2592
    %2640 = vmatpush1.bf16.msra.mxu0 %v2591
    %2641 = vmatprep.subr.bf16.mxu0 %v2595
    %2642 = vmatpush1.bf16.msra.mxu0 %v2594
    %2643 = vmatprep.subr.bf16.mxu0 %v2598
    %2644 = vmatpush1.bf16.msra.mxu0 %v2597
    %2645 = vmatprep.subr.bf16.mxu0 %v2601
    %2646 = vmatpush1.bf16.msra.mxu0 %v2600
    %2647 = vmatprep.subr.bf16.mxu0 %v2604
    %2648 = vmatpush1.bf16.msra.mxu0 %v2603
    %2649 = vmatprep.subr.bf16.mxu0 %v2607
    %2650 = vmatpush1.bf16.msra.mxu0 %v2606
    %2651 = vmatprep.subr.bf16.mxu0 %v2610
    %2652 = vmatpush1.bf16.msra.mxu0 %v2609
    %2653 = vmatprep.subr.bf16.mxu0 %v2613
    %2654 = vmatpush1.bf16.msra.mxu0 %v2612
    %2655 = vmatprep.subr.bf16.mxu0 0
    %2656 = vmatpush1.bf16.msra.mxu0 0
    %2657 = vmatprep.subr.bf16.mxu0 0
    %2658 = vmatpush1.bf16.msra.mxu0 0
    %2659 = vmatprep.subr.bf16.mxu0 0
    %2660 = vmatpush1.bf16.msra.mxu0 0
    %2661 = vmatprep.subr.bf16.mxu0 0
    %2662 = vmatpush1.bf16.msra.mxu0 0
    %2663 = vmatprep.subr.bf16.mxu0 0
    %2664 = vmatpush1.bf16.msra.mxu0 0
    %2665 = vmatprep.subr.bf16.mxu0 0
    %2666 = vmatpush1.bf16.msra.mxu0 0
    %2667 = vmatprep.subr.bf16.mxu0 0
    %2668 = vmatpush1.bf16.msra.mxu0 0
    %2669 = vmatprep.subr.bf16.mxu0 0
    %2670 = vmatpush1.bf16.msra.mxu0 0
    %2671 = vmatprep.mubr.bf16.mxu0 0
    %2672 = vmatmul.mubr.bf16.gmra.mrb[0].mxu0 %v2492
    %v2673 = vpop.f32.mrb[0].mxu0
    %v2674 = vadd.f32 %v2499, %v2673
    %v2675 = vpop.f32.mrb[0].mxu0
    %v2676 = vadd.f32 %v2503, %v2675
    %v2677 = vpop.f32.mrb[0].mxu0
    %v2678 = vadd.f32 %v2499, %v2677
    %v2679 = vpop.f32.mrb[0].mxu0
    %v2680 = vadd.f32 %v2503, %v2679
    %2681 = vmatprep.mubr.bf16.mxu0 0
    %2682 = vmatmul.mubr.bf16.gmra.mrb[0].mxu0 %v2493
    %v2683 = vpop.f32.mrb[0].mxu0
    %v2684 = vadd.f32 %v2499, %v2683
    %v2685 = vpop.f32.mrb[0].mxu0
    %v2686 = vadd.f32 %v2503, %v2685
    %v2687 = vpop.f32.mrb[0].mxu0
    %v2688 = vadd.f32 %v2499, %v2687
    %v2689 = vpop.f32.mrb[0].mxu0
    %v2690 = vadd.f32 %v2503, %v2689
    %2691 = vdwg.mxu0
    %2692 = vmatprep.subr.bf16.mxu0 0
    %2693 = vmatpush1.bf16.msra.mxu0 %v2593
    %2694 = vmatprep.subr.bf16.mxu0 0
    %2695 = vmatpush1.bf16.msra.mxu0 %v2596
    %2696 = vmatprep.subr.bf16.mxu0 0
    %2697 = vmatpush1.bf16.msra.mxu0 %v2599
    %2698 = vmatprep.subr.bf16.mxu0 0
    %2699 = vmatpush1.bf16.msra.mxu0 %v2602
    %2700 = vmatprep.subr.bf16.mxu0 0
    %2701 = vmatpush1.bf16.msra.mxu0 %v2605
    %2702 = vmatprep.subr.bf16.mxu0 0
    %2703 = vmatpush1.bf16.msra.mxu0 %v2608
    %2704 = vmatprep.subr.bf16.mxu0 0
    %2705 = vmatpush1.bf16.msra.mxu0 %v2611
    %2706 = vmatprep.subr.bf16.mxu0 0
    %2707 = vmatpush1.bf16.msra.mxu0 %v2614
    %2708 = vmatprep.subr.bf16.mxu0 0
    %2709 = vmatpush1.bf16.msra.mxu0 0
    %2710 = vmatprep.subr.bf16.mxu0 0
    %2711 = vmatpush1.bf16.msra.mxu0 0
    %2712 = vmatprep.subr.bf16.mxu0 0
    %2713 = vmatpush1.bf16.msra.mxu0 0
    %2714 = vmatprep.subr.bf16.mxu0 0
    %2715 = vmatpush1.bf16.msra.mxu0 0
    %2716 = vmatprep.subr.bf16.mxu0 0
    %2717 = vmatpush1.bf16.msra.mxu0 0
    %2718 = vmatprep.subr.bf16.mxu0 0
    %2719 = vmatpush1.bf16.msra.mxu0 0
    %2720 = vmatprep.subr.bf16.mxu0 0
    %2721 = vmatpush1.bf16.msra.mxu0 0
    %2722 = vmatprep.subr.bf16.mxu0 0
    %2723 = vmatpush1.bf16.msra.mxu0 0
    %2724 = vmatprep.mubr.bf16.mxu0 0
    %2725 = vmatmul.mubr.bf16.gmra.mrb[0].mxu0 %v2492
    %v2726 = vpop.f32.mrb[0].mxu0
    %v2727 = vadd.f32 %v2507, %v2726
    %v2728 = vpop.f32.mrb[0].mxu0
    %v2729 = vpop.f32.mrb[0].mxu0
    %v2730 = vadd.f32 %v2507, %v2729
    %v2731 = vpop.f32.mrb[0].mxu0
    %2732 = vmatprep.mubr.bf16.mxu0 0
    %2733 = vmatmul.mubr.bf16.gmra.mrb[0].mxu0 %v2493
    %v2734 = vpop.f32.mrb[0].mxu0
    %v2735 = vadd.f32 %v2507, %v2734
    %v2736 = vpop.f32.mrb[0].mxu0
    %v2737 = vpop.f32.mrb[0].mxu0
    %v2738 = vadd.f32 %v2507, %v2737
    %v2739 = vpop.f32.mrb[0].mxu0
    %2740 = vdwg.mxu0
    %v2741 = vpack.c.bf16 %v2678, %v2674
    %v2742 = vpack.c.bf16 %v2688, %v2684
    %v2743 = vpack.c.bf16 %v2680, %v2676
    %v2744 = vpack.c.bf16 %v2690, %v2686
    %2745 = vmatprep.subr.bf16.mxu0 0
    %2746 = vmatpush1.bf16.xpose.msra.mxu0 %v2743
    %2747 = vmatprep.subr.bf16.mxu0 0
    %2748 = vmatpush1.bf16.xpose.msra.mxu0 0
    %2749 = vmatprep.subr.bf16.mxu0 0
    %2750 = vmatpush1.bf16.xpose.msra.mxu0 0
    %2751 = vmatprep.subr.bf16.mxu0 0
    %2752 = vmatpush1.bf16.xpose.msra.mxu0 0
    %2753 = vmatprep.subr.bf16.mxu0 0
    %2754 = vmatpush1.bf16.xpose.msra.mxu0 0
    %2755 = vmatprep.subr.bf16.mxu0 0
    %2756 = vmatpush1.bf16.xpose.msra.mxu0 0
    %2757 = vmatprep.subr.bf16.mxu0 0
    %2758 = vmatpush1.bf16.xpose.msra.mxu0 0
    %2759 = vmatprep.subr.bf16.mxu0 0
    %2760 = vmatpush1.bf16.xpose.msra.mxu0 0
    %2761 = vmatprep.subr.bf16.mxu0 0
    %2762 = vmatpush1.bf16.xpose.msra.mxu0 0
    %2763 = vmatprep.subr.bf16.mxu0 0
    %2764 = vmatpush1.bf16.xpose.msra.mxu0 0
    %2765 = vmatprep.subr.bf16.mxu0 0
    %2766 = vmatpush1.bf16.xpose.msra.mxu0 0
    %2767 = vmatprep.subr.bf16.mxu0 0
    %2768 = vmatpush1.bf16.xpose.msra.mxu0 0
    %2769 = vmatprep.subr.bf16.mxu0 0
    %2770 = vmatpush1.bf16.xpose.msra.mxu0 0
    %2771 = vmatprep.subr.bf16.mxu0 0
    %2772 = vmatpush1.bf16.xpose.msra.mxu0 0
    %2773 = vmatprep.subr.bf16.mxu0 0
    %2774 = vmatpush1.bf16.xpose.msra.mxu0 0
    %2775 = vmatprep.subr.bf16.mxu0 0
    %2776 = vmatpush1.bf16.xpose.msra.mxu0 0
    %2777 = vmatprep.mubr.bf16.mxu0 0
    %2778 = vmatmul.mubr.bf16.gmra.mrb[0].mxu0 %v2741
    %v2779 = vpop.f32.mrb[0].mxu0
    %v2780 = vadd.f32 0.0, %v2779
    %v2781 = vpop.f32.mrb[0].mxu0
    %v2782 = vpop.f32.mrb[0].mxu0
    %v2783 = vadd.f32 0.0, %v2782
    %v2784 = vpop.f32.mrb[0].mxu0
    %2785 = vdwg.mxu0
    %2786 = vmatprep.subr.bf16.mxu0 0
    %2787 = vmatpush1.bf16.xpose.msra.mxu0 %v2744
    %2788 = vmatprep.subr.bf16.mxu0 0
    %2789 = vmatpush1.bf16.xpose.msra.mxu0 0
    %2790 = vmatprep.subr.bf16.mxu0 0
    %2791 = vmatpush1.bf16.xpose.msra.mxu0 0
    %2792 = vmatprep.subr.bf16.mxu0 0
    %2793 = vmatpush1.bf16.xpose.msra.mxu0 0
    %2794 = vmatprep.subr.bf16.mxu0 0
    %2795 = vmatpush1.bf16.xpose.msra.mxu0 0
    %2796 = vmatprep.subr.bf16.mxu0 0
    %2797 = vmatpush1.bf16.xpose.msra.mxu0 0
    %2798 = vmatprep.subr.bf16.mxu0 0
    %2799 = vmatpush1.bf16.xpose.msra.mxu0 0
    %2800 = vmatprep.subr.bf16.mxu0 0
    %2801 = vmatpush1.bf16.xpose.msra.mxu0 0
    %2802 = vmatprep.subr.bf16.mxu0 0
    %2803 = vmatpush1.bf16.xpose.msra.mxu0 0
    %2804 = vmatprep.subr.bf16.mxu0 0
    %2805 = vmatpush1.bf16.xpose.msra.mxu0 0
    %2806 = vmatprep.subr.bf16.mxu0 0
    %2807 = vmatpush1.bf16.xpose.msra.mxu0 0
    %2808 = vmatprep.subr.bf16.mxu0 0
    %2809 = vmatpush1.bf16.xpose.msra.mxu0 0
    %2810 = vmatprep.subr.bf16.mxu0 0
    %2811 = vmatpush1.bf16.xpose.msra.mxu0 0
    %2812 = vmatprep.subr.bf16.mxu0 0
    %2813 = vmatpush1.bf16.xpose.msra.mxu0 0
    %2814 = vmatprep.subr.bf16.mxu0 0
    %2815 = vmatpush1.bf16.xpose.msra.mxu0 0
    %2816 = vmatprep.subr.bf16.mxu0 0
    %2817 = vmatpush1.bf16.xpose.msra.mxu0 0
    %2818 = vmatprep.mubr.bf16.mxu0 0
    %2819 = vmatmul.mubr.bf16.gmra.mrb[0].mxu0 %v2742
    %v2820 = vpop.f32.mrb[0].mxu0
    %v2821 = vadd.f32 0.0, %v2820
    %v2822 = vpop.f32.mrb[0].mxu0
    %v2823 = vpop.f32.mrb[0].mxu0
    %v2824 = vadd.f32 0.0, %v2823
    %v2825 = vpop.f32.mrb[0].mxu0
    %2826 = vdwg.mxu0
    %v2827 = vmul.f32 %v2780, 0.088388346
    %v2828 = vmul.f32 %v2783, 0.088388346
    %v2829 = vmul.f32 %v2821, 0.088388346
    %v2830 = vmul.f32 %v2824, 0.088388346
    %vm2831 = vcmask 130048
    %v2832 = vsel %vm2831, %v2827, -inf
    %2833 = vmax.xlane.f32.xlu0 %v2832
    %v2834 = vpop.xlane.xlu0 %2833
    %v2835 = vsel %vm2831, %v2828, -inf
    %2836 = vmax.xlane.f32.xlu0 %v2835
    %v2837 = vpop.xlane.xlu0 %2836
    %v2838 = vsel %vm2831, %v2829, -inf
    %2839 = vmax.xlane.f32.xlu0 %v2838
    %v2840 = vpop.xlane.xlu0 %2839
    %v2841 = vsel %vm2831, %v2830, -inf
    %2842 = vmax.xlane.f32.xlu0 %v2841
    %v2843 = vpop.xlane.xlu0 %2842
    %v2844 = vsub.f32 %v2827, %v2834
    %v2845 = vsub.f32 %v2828, %v2837
    %v2846 = vsub.f32 %v2829, %v2840
    %v2847 = vsub.f32 %v2830, %v2843
    %v2848 = vmul.f32 %v2844, 1.442695
    %v2849 = vpow.pop %v2848
    %v2850 = vmul.f32 %v2845, 1.442695
    %v2851 = vpow.pop %v2850
    %v2852 = vmul.f32 %v2846, 1.442695
    %v2853 = vpow.pop %v2852
    %v2854 = vmul.f32 %v2847, 1.442695
    %v2855 = vpow.pop %v2854
    %v2856 = vsel %vm2831, %v2849, 0.0
    %2857 = vadd.xlane.f32.xlu0 %v2856
    %v2858 = vpop.xlane.xlu0 %2857
    %v2859 = vsel %vm2831, %v2851, 0.0
    %2860 = vadd.xlane.f32.xlu0 %v2859
    %v2861 = vpop.xlane.xlu0 %2860
    %v2862 = vsel %vm2831, %v2853, 0.0
    %2863 = vadd.xlane.f32.xlu0 %v2862
    %v2864 = vpop.xlane.xlu0 %2863
    %v2865 = vsel %vm2831, %v2855, 0.0
    %2866 = vadd.xlane.f32.xlu0 %v2865
    %v2867 = vpop.xlane.xlu0 %2866
    %v2868 = vrcp.pop %v2858
    %v2869 = vrcp.pop %v2861
    %v2870 = vrcp.pop %v2864
    %v2871 = vrcp.pop %v2867
    %v2872 = vmul.f32 %v2849, %v2868
    %v2873 = vmul.f32 %v2851, %v2869
    %v2874 = vmul.f32 %v2853, %v2870
    %v2875 = vmul.f32 %v2855, %v2871
    %v2876 = vpack.c.bf16 %v2873, %v2872
    %v2877 = vpack.c.bf16 %v2875, %v2874
    %v2878 = vpack.c.bf16 %v2730, %v2727
    %v2879 = vpack.c.bf16 %v2738, %v2735
    %v2881 = vsel %vm2831, %v2876, 0
    %2883 = vmatprep.subr.bf16.mxu0 0
    %2884 = vmatpush1.bf16.msra.mxu0 %v2878
    %2885 = vmatprep.subr.bf16.mxu0 0
    %2886 = vmatpush1.bf16.msra.mxu0 0
    %2887 = vmatprep.subr.bf16.mxu0 0
    %2888 = vmatpush1.bf16.msra.mxu0 0
    %2889 = vmatprep.subr.bf16.mxu0 0
    %2890 = vmatpush1.bf16.msra.mxu0 0
    %2891 = vmatprep.subr.bf16.mxu0 0
    %2892 = vmatpush1.bf16.msra.mxu0 0
    %2893 = vmatprep.subr.bf16.mxu0 0
    %2894 = vmatpush1.bf16.msra.mxu0 0
    %2895 = vmatprep.subr.bf16.mxu0 0
    %2896 = vmatpush1.bf16.msra.mxu0 0
    %2897 = vmatprep.subr.bf16.mxu0 0
    %2898 = vmatpush1.bf16.msra.mxu0 0
    %2899 = vmatprep.subr.bf16.mxu0 0
    %2900 = vmatpush1.bf16.msra.mxu0 0
    %2901 = vmatprep.subr.bf16.mxu0 0
    %2902 = vmatpush1.bf16.msra.mxu0 0
    %2903 = vmatprep.subr.bf16.mxu0 0
    %2904 = vmatpush1.bf16.msra.mxu0 0
    %2905 = vmatprep.subr.bf16.mxu0 0
    %2906 = vmatpush1.bf16.msra.mxu0 0
    %2907 = vmatprep.subr.bf16.mxu0 0
    %2908 = vmatpush1.bf16.msra.mxu0 0
    %2909 = vmatprep.subr.bf16.mxu0 0
    %2910 = vmatpush1.bf16.msra.mxu0 0
    %2911 = vmatprep.subr.bf16.mxu0 0
    %2912 = vmatpush1.bf16.msra.mxu0 0
    %2913 = vmatprep.subr.bf16.mxu0 0
    %2914 = vmatpush1.bf16.msra.mxu0 0
    %2915 = vmatprep.mubr.bf16.mxu0 0
    %2916 = vmatmul.mubr.bf16.gmra.mrb[0].mxu0 %v2881
    %v2917 = vpop.f32.mrb[0].mxu0
    %v2918 = vadd.f32 %v2456, %v2917
    %v2919 = vpop.f32.mrb[0].mxu0
    %v2920 = vpop.f32.mrb[0].mxu0
    %v2921 = vadd.f32 %v2457, %v2920
    %v2922 = vpop.f32.mrb[0].mxu0
    %2923 = vdwg.mxu0
    %v2925 = vsel %vm2831, %v2877, 0
    %2927 = vmatprep.subr.bf16.mxu0 0
    %2928 = vmatpush1.bf16.msra.mxu0 %v2879
    %2929 = vmatprep.subr.bf16.mxu0 0
    %2930 = vmatpush1.bf16.msra.mxu0 0
    %2931 = vmatprep.subr.bf16.mxu0 0
    %2932 = vmatpush1.bf16.msra.mxu0 0
    %2933 = vmatprep.subr.bf16.mxu0 0
    %2934 = vmatpush1.bf16.msra.mxu0 0
    %2935 = vmatprep.subr.bf16.mxu0 0
    %2936 = vmatpush1.bf16.msra.mxu0 0
    %2937 = vmatprep.subr.bf16.mxu0 0
    %2938 = vmatpush1.bf16.msra.mxu0 0
    %2939 = vmatprep.subr.bf16.mxu0 0
    %2940 = vmatpush1.bf16.msra.mxu0 0
    %2941 = vmatprep.subr.bf16.mxu0 0
    %2942 = vmatpush1.bf16.msra.mxu0 0
    %2943 = vmatprep.subr.bf16.mxu0 0
    %2944 = vmatpush1.bf16.msra.mxu0 0
    %2945 = vmatprep.subr.bf16.mxu0 0
    %2946 = vmatpush1.bf16.msra.mxu0 0
    %2947 = vmatprep.subr.bf16.mxu0 0
    %2948 = vmatpush1.bf16.msra.mxu0 0
    %2949 = vmatprep.subr.bf16.mxu0 0
    %2950 = vmatpush1.bf16.msra.mxu0 0
    %2951 = vmatprep.subr.bf16.mxu0 0
    %2952 = vmatpush1.bf16.msra.mxu0 0
    %2953 = vmatprep.subr.bf16.mxu0 0
    %2954 = vmatpush1.bf16.msra.mxu0 0
    %2955 = vmatprep.subr.bf16.mxu0 0
    %2956 = vmatpush1.bf16.msra.mxu0 0
    %2957 = vmatprep.subr.bf16.mxu0 0
    %2958 = vmatpush1.bf16.msra.mxu0 0
    %2959 = vmatprep.mubr.bf16.mxu0 0
    %2960 = vmatmul.mubr.bf16.gmra.mrb[0].mxu0 %v2925
    %v2961 = vpop.f32.mrb[0].mxu0
    %v2962 = vadd.f32 %v2458, %v2961
    %v2963 = vpop.f32.mrb[0].mxu0
    %v2964 = vpop.f32.mrb[0].mxu0
    %v2965 = vadd.f32 %v2459, %v2964
    %v2966 = vpop.f32.mrb[0].mxu0
    %2967 = vdwg.mxu0
    %v2968 = vadd.f32 %v2918, %v2921
    %v2969 = vrot.slane %v2968, 4
    %v2970 = vadd.f32 %v2968, %v2969
    %v2971 = vrot.slane %v2970, 2
    %v2972 = vadd.f32 %v2970, %v2971
    %v2973 = vrot.slane %v2972, 1
    %v2974 = vadd.f32 %v2972, %v2973
    %v2975 = vadd.f32 %v2962, %v2965
    %v2976 = vrot.slane %v2975, 4
    %v2977 = vadd.f32 %v2975, %v2976
    %v2978 = vrot.slane %v2977, 2
    %v2979 = vadd.f32 %v2977, %v2978
    %v2980 = vrot.slane %v2979, 1
    %v2981 = vadd.f32 %v2979, %v2980
    %v2982 = vmul.f32 %v2974, %v1108
    %v2983 = vmul.f32 %v2981, %v1108
    %v2984 = vmax.f32 %v2918, %v2921
    %v2985 = vrot.slane %v2984, 4
    %v2986 = vmax.f32 %v2984, %v2985
    %v2987 = vrot.slane %v2986, 2
    %v2988 = vmax.f32 %v2986, %v2987
    %v2989 = vrot.slane %v2988, 1
    %v2990 = vmax.f32 %v2988, %v2989
    %v2991 = vmax.f32 %v2962, %v2965
    %v2992 = vrot.slane %v2991, 4
    %v2993 = vmax.f32 %v2991, %v2992
    %v2994 = vrot.slane %v2993, 2
    %v2995 = vmax.f32 %v2993, %v2994
    %v2996 = vrot.slane %v2995, 1
    %v2997 = vmax.f32 %v2995, %v2996
    %v3000 = vsel %vm1117, %v2983, %v2982
    %v3004 = vsel %vm1117, %v2997, %v2990
    %v3006 = vld [vmem:[%s67] sm:$0xf]
    %v3007 = vld [vmem:[%s67 + $0x4] sm:$0xf]
    %v3008 = vld [vmem:[%s67 + $0x8] sm:$0xf]
    %v3009 = vld [vmem:[%s67 + $0xc] sm:$0xf]
    %v3010 = vld [vmem:[%s67 + $0x10] sm:$0xf]
    %v3011 = vld [vmem:[%s67 + $0x14] sm:$0xf]
    %v3012 = vld [vmem:[%s67 + $0x18] sm:$0xf]
    %v3013 = vld [vmem:[%s67 + $0x1c] sm:$0xf]
    %v3014 = vld [vmem:[%s67 + $0x20] sm:$0xf]
    %v3015 = vld [vmem:[%s67 + $0x24] sm:$0xf]
    %v3016 = vld [vmem:[%s67 + $0x28] sm:$0xf]
    %v3017 = vld [vmem:[%s67 + $0x2c] sm:$0xf]
    %v3018 = vld [vmem:[%s67 + $0x30] sm:$0xf]
    %v3019 = vld [vmem:[%s67 + $0x34] sm:$0xf]
    %v3020 = vld [vmem:[%s67 + $0x38] sm:$0xf]
    %v3021 = vld [vmem:[%s67 + $0x3c] sm:$0xf]
    %v3022 = vld [vmem:[%s67 + $0x40] sm:$0xf]
    %v3023 = vld [vmem:[%s67 + $0x44] sm:$0xf]
    %v3024 = vld [vmem:[%s67 + $0x48] sm:$0xf]
    %v3025 = vld [vmem:[%s67 + $0x4c] sm:$0xf]
    %v3026 = vld [vmem:[%s67 + $0x50] sm:$0xf]
    %v3027 = vld [vmem:[%s67 + $0x54] sm:$0xf]
    %v3028 = vld [vmem:[%s67 + $0x58] sm:$0xf]
    %v3029 = vld [vmem:[%s67 + $0x5c] sm:$0xf]
    %v3030 = vld [vmem:[%s67 + $0x60] sm:$0xf]
    %v3031 = vld [vmem:[%s67 + $0x64] sm:$0xf]
    %v3032 = vld [vmem:[%s67 + $0x68] sm:$0xf]
    %v3033 = vld [vmem:[%s67 + $0x6c] sm:$0xf]
    %v3034 = vld [vmem:[%s67 + $0x70] sm:$0xf]
    %v3035 = vld [vmem:[%s67 + $0x74] sm:$0xf]
    %v3036 = vld [vmem:[%s67 + $0x78] sm:$0xf]
    %v3037 = vld [vmem:[%s67 + $0x7c] sm:$0xf]
    %v3038 = vpack.c.bf16 %v3000, %v3000
    %v3039 = vpack.c.bf16 %v3004, %v3004
    %v3040 = vld [vmem:[%s69] sm:$0x1]
    %v3042 = vlaneseq
    %v3043 = vshrl.u32 %v3042, 7
    %v3044 = vsub.s32 0, %v3043
    %v3045 = vrot.slane %v3040, %v3044
    %v3079 = vunpack.c.l.b16 %v3006
    %v3080 = vunpack.c.l.b16 %v3007
    %v3081 = vunpack.c.l.b16 %v3008
    %v3082 = vunpack.c.l.b16 %v3009
    %v3083 = vunpack.c.l.b16 %v3010
    %v3084 = vunpack.c.l.b16 %v3011
    %v3085 = vunpack.c.l.b16 %v3012
    %v3086 = vunpack.c.l.b16 %v3013
    %v3087 = vunpack.c.l.b16 %v3014
    %v3088 = vunpack.c.l.b16 %v3015
    %v3089 = vunpack.c.l.b16 %v3016
    %v3090 = vunpack.c.l.b16 %v3017
    %v3091 = vunpack.c.l.b16 %v3018
    %v3092 = vunpack.c.l.b16 %v3019
    %v3093 = vunpack.c.l.b16 %v3020
    %v3094 = vunpack.c.l.b16 %v3021
    %v3095 = vunpack.c.l.b16 %v3022
    %v3096 = vunpack.c.l.b16 %v3023
    %v3097 = vunpack.c.l.b16 %v3024
    %v3098 = vunpack.c.l.b16 %v3025
    %v3099 = vunpack.c.l.b16 %v3026
    %v3100 = vunpack.c.l.b16 %v3027
    %v3101 = vunpack.c.l.b16 %v3028
    %v3102 = vunpack.c.l.b16 %v3029
    %v3103 = vunpack.c.l.b16 %v3030
    %v3104 = vunpack.c.l.b16 %v3031
    %v3105 = vunpack.c.l.b16 %v3032
    %v3106 = vunpack.c.l.b16 %v3033
    %v3107 = vunpack.c.l.b16 %v3034
    %v3108 = vunpack.c.l.b16 %v3035
    %v3109 = vunpack.c.l.b16 %v3036
    %v3110 = vunpack.c.l.b16 %v3037
    %v3111 = vpack.c.b16 %v3080, %v3079
    %v3112 = vpack.c.b16 %v3082, %v3081
    %v3113 = vpack.c.b16 %v3084, %v3083
    %v3114 = vpack.c.b16 %v3086, %v3085
    %v3115 = vpack.c.b16 %v3088, %v3087
    %v3116 = vpack.c.b16 %v3090, %v3089
    %v3117 = vpack.c.b16 %v3092, %v3091
    %v3118 = vpack.c.b16 %v3094, %v3093
    %v3119 = vpack.c.b16 %v3096, %v3095
    %v3120 = vpack.c.b16 %v3098, %v3097
    %v3121 = vpack.c.b16 %v3100, %v3099
    %v3122 = vpack.c.b16 %v3102, %v3101
    %v3123 = vpack.c.b16 %v3104, %v3103
    %v3124 = vpack.c.b16 %v3106, %v3105
    %v3125 = vpack.c.b16 %v3108, %v3107
    %v3126 = vpack.c.b16 %v3110, %v3109
    %3143 = vmatprep.subr.bf16.mxu0 0
    %3144 = vmatpush1.bf16.msra.mxu0 %v3111
    %3145 = vmatprep.subr.bf16.mxu0 0
    %3146 = vmatpush1.bf16.msra.mxu0 %v3112
    %3147 = vmatprep.subr.bf16.mxu0 0
    %3148 = vmatpush1.bf16.msra.mxu0 %v3113
    %3149 = vmatprep.subr.bf16.mxu0 0
    %3150 = vmatpush1.bf16.msra.mxu0 %v3114
    %3151 = vmatprep.subr.bf16.mxu0 0
    %3152 = vmatpush1.bf16.msra.mxu0 %v3115
    %3153 = vmatprep.subr.bf16.mxu0 0
    %3154 = vmatpush1.bf16.msra.mxu0 %v3116
    %3155 = vmatprep.subr.bf16.mxu0 0
    %3156 = vmatpush1.bf16.msra.mxu0 %v3117
    %3157 = vmatprep.subr.bf16.mxu0 0
    %3158 = vmatpush1.bf16.msra.mxu0 %v3118
    %3159 = vmatprep.subr.bf16.mxu0 0
    %3160 = vmatpush1.bf16.msra.mxu0 %v3119
    %3161 = vmatprep.subr.bf16.mxu0 0
    %3162 = vmatpush1.bf16.msra.mxu0 %v3120
    %3163 = vmatprep.subr.bf16.mxu0 0
    %3164 = vmatpush1.bf16.msra.mxu0 %v3121
    %3165 = vmatprep.subr.bf16.mxu0 0
    %3166 = vmatpush1.bf16.msra.mxu0 %v3122
    %3167 = vmatprep.subr.bf16.mxu0 0
    %3168 = vmatpush1.bf16.msra.mxu0 %v3123
    %3169 = vmatprep.subr.bf16.mxu0 0
    %3170 = vmatpush1.bf16.msra.mxu0 %v3124
    %3171 = vmatprep.subr.bf16.mxu0 0
    %3172 = vmatpush1.bf16.msra.mxu0 %v3125
    %3173 = vmatprep.subr.bf16.mxu0 0
    %3174 = vmatpush1.bf16.msra.mxu0 %v3126
    %3175 = vmatprep.mubr.bf16.mxu0 %v3039
    %3176 = vmatmul.mubr.bf16.gmra.mrb[0].mxu0 %v3038
    %v3177 = vpop.f32.mrb[0].mxu0
    %v3178 = vadd.f32 %v3045, %v3177
    %v3179 = vpop.f32.mrb[0].mxu0
    %v3180 = vpop.f32.mrb[0].mxu0
    %v3181 = vpop.f32.mrb[0].mxu0
    %3182 = vdwg.mxu0
    %v3183 = vsel %vm1193, %v3178, 0.0
    %3184 = vadd.xlane.f32.xlu0 %v3183
    %v3185 = vpop.xlane.xlu0 %3184
    %v3186 = vrcp.pop 128.0
    %v3187 = vmul.f32 %v3185, %v3186
    %v3188 = vsub.f32 %v3178, %v3187
    %v3189 = vmul.f32 %v3188, %v3188
    %v3190 = vsel %vm1193, %v3189, 0.0
    %3191 = vadd.xlane.f32.xlu0 %v3190
    %v3192 = vpop.xlane.xlu0 %3191
    %v3193 = vmul.f32 %v3192, %v3186
    %v3194 = vadd.f32 %v3193, 1e-05
    %v3195 = vrsqrt.pop %v3194
    %v3196 = vmul.f32 %v3188, %v3195
    %v3197 = vld [vmem:[%s71] sm:$0x1]
    %v3199 = vlaneseq
    %v3200 = vshrl.u32 %v3199, 7
    %v3201 = vsub.s32 0, %v3200
    %v3202 = vrot.slane %v3197, %v3201
    %v3204 = vmul.f32 %v3196, %v3202
    %v3205 = vld [vmem:[%s73] sm:$0x1]
    %v3207 = vlaneseq
    %v3208 = vshrl.u32 %v3207, 7
    %v3209 = vsub.s32 0, %v3208
    %v3210 = vrot.slane %v3205, %v3209
    %v3212 = vadd.f32 %v3204, %v3210
    %v3213 = vmax.f32 %v3212, 0.0
    %3214 = vst [vmem:[#allocation2] sm:$0x3] %v3213
    // Predicated region
    $region150: #{emg_encoder_forward.1} parent=1 // pred_check
      _
    $region151: #{emg_encoder_forward.1} parent=1 // pred_check_branch
      %3216 = sbr.rel (0) target = $region153
    $region152: #{emg_encoder_forward.1} parent=1 // pred_region
      %s3218 = ssub.s32 32, 32
      %3219 = vsyncadd [#allocation3], %s3218
      %s3221 = sshll.u32 [#allocation2], 4
      %s3222 = int_to_ptr.vmem [resolvable:$true] %s3221
      %3224 = dma.vmem_to_hbm [thread:$0]  %s3222, 32, %s75, [#allocation3]
    $region153: #{emg_encoder_forward.1} parent=1 // pred_fallthru
      _
    // Predicated region
    $region154: #{emg_encoder_forward.1} parent=1 // pred_check
      _
    $region155: #{emg_encoder_forward.1} parent=1 // pred_check_branch
      %3226 = sbr.rel (0) target = $region157
    $region156: #{emg_encoder_forward.1} parent=1 // pred_region
      %3227 = dma.done [#allocation3], 32
    $region157: #{emg_encoder_forward.1} parent=1 // pred_fallthru
      _
    %3228 = vsyncpa [#allocation3], 1

</llo_original>
